<compile_context>
chip_gen: v5e
topology: v5e:2x2
jax: 0.10.0
libtpu: 0.0.40
codegen_flags: <defaults>
</compile_context>

<pallas_src>
import functools
import math

import jax
import jax.numpy as jnp
from jax.experimental import pallas as pl
from jax.experimental.pallas import tpu as pltpu

_VMEM_LIMIT = 48 * 1024 * 1024   # > default scoped limit everywhere, < v7x physical


# ----------------------------------------------------------------------------
# Helpers
# ----------------------------------------------------------------------------
def _round_up(x: int, m: int) -> int:
    return ((x + m - 1) // m) * m


def _tile(dim: int, target: int, align: int) -> int:
    """Largest multiple of `align` that divides `dim` and is <= target, else `dim`.

    Returning `dim` (full extent) is always layout-legal for a BlockSpec; callers
    pad K/N to multiples of 128 first so the fallback only triggers on small dims.
    """
    if dim <= target:
        return dim
    t = (min(target, dim) // align) * align
    while t >= align:
        if dim % t == 0:
            return t
        t -= align
    return dim


def _apply_activation(y, activation):
    if activation == "leaky_relu":
        return jnp.where(y >= 0, y, 0.01 * y)
    if activation == "gelu":
        # TODO(synk): tanh-approx GELU (HF default is exact erf GELU).
        return 0.5 * y * (1.0 + jnp.tanh(0.7978845608028654
                                         * (y + 0.044715 * y * y * y)))
    if activation == "tanh":
        return jnp.tanh(y)
    return y


# ----------------------------------------------------------------------------
# Kernel 1a: tiled  Y = X @ W + b   (no activation; accumulate into f32 output)
# ----------------------------------------------------------------------------
def _linear_noact_kernel(x_ref, w_ref, b_ref, o_ref):
    k = pl.program_id(2)

    @pl.when(k == 0)
    def _():
        o_ref[...] = jnp.zeros_like(o_ref) + b_ref[...].astype(o_ref.dtype)

    o_ref[...] += jnp.dot(x_ref[...].astype(jnp.bfloat16), w_ref[...],
                          preferred_element_type=jnp.float32).astype(o_ref.dtype)


# ----------------------------------------------------------------------------
# Kernel 1b: tiled  Y = act(X @ W + b)  (f32 scratch accumulator)
# ----------------------------------------------------------------------------
def _linear_act_kernel(x_ref, w_ref, b_ref, o_ref, acc_ref, *, activation):
    k = pl.program_id(2)

    @pl.when(k == 0)
    def _():
        acc_ref[...] = jnp.zeros_like(acc_ref)

    acc_ref[...] += jnp.dot(x_ref[...].astype(jnp.bfloat16), w_ref[...],
                            preferred_element_type=jnp.float32)

    @pl.when(k == pl.num_programs(2) - 1)
    def _():
        y = acc_ref[...] + b_ref[...].astype(jnp.float32)
        o_ref[...] = _apply_activation(y, activation).astype(o_ref.dtype)


def linear(x2d, w, b, *, activation="none",
           tm_target=256, tn_target=512, tk_target=512):
    """x2d: (M, K) f32, w: (K, N) bf16, b: (1, N) f32 -> (M, N) f32."""
    M, K = x2d.shape
    Kw, N = w.shape
    assert K == Kw and b.shape == (1, N)

    # Zero-pad K / N to multiples of 128 (exact math; output sliced back).
    Kp, Np = _round_up(K, 128), _round_up(N, 128)
    if Kp != K:
        x2d = jnp.pad(x2d, ((0, 0), (0, Kp - K)))
        w = jnp.pad(w, ((0, Kp - K), (0, 0)))
    if Np != N:
        w = jnp.pad(w, ((0, 0), (0, Np - N)))
        b = jnp.pad(b, ((0, 0), (0, Np - N)))

    tm = _tile(M, tm_target, 8)
    tn = _tile(Np, tn_target, 128)
    tk = _tile(Kp, tk_target, 128)
    grid = (M // tm, Np // tn, Kp // tk)

    if activation == "none":
        kernel = _linear_noact_kernel
        scratch = []
    else:
        kernel = functools.partial(_linear_act_kernel, activation=activation)
        scratch = [pltpu.VMEM((tm, tn), jnp.float32)]

    out = pl.pallas_call(
        kernel,
        out_shape=jax.ShapeDtypeStruct((M, Np), jnp.float32),
        grid_spec=pltpu.PrefetchScalarGridSpec(
            num_scalar_prefetch=0,
            grid=grid,
            in_specs=[
                pl.BlockSpec((tm, tk), lambda i, j, k: (i, k)),
                pl.BlockSpec((tk, tn), lambda i, j, k: (k, j)),
                pl.BlockSpec((1, tn), lambda i, j, k: (0, j)),
            ],
            out_specs=pl.BlockSpec((tm, tn), lambda i, j, k: (i, j)),
            scratch_shapes=scratch,
        ),
        compiler_params=pltpu.CompilerParams(
            dimension_semantics=("parallel", "parallel", "arbitrary"),
            vmem_limit_bytes=_VMEM_LIMIT),
        cost_estimate=pl.CostEstimate(
            flops=2 * M * Np * Kp,
            transcendentals=0,
            bytes_accessed=M * Kp * 4 + Kp * Np * 2 + M * Np * 4),
    )(x2d, w, b)
    return out[:, :N] if Np != N else out


# ----------------------------------------------------------------------------
# Kernel 2: fused  Y = LayerNorm(X @ W + b + residual) * gamma + beta
#           (N = H untiled so LN sees whole rows in the f32 accumulator)
# ----------------------------------------------------------------------------
def _linear_add_ln_kernel(x_ref, w_ref, b_ref, r_ref, g_ref, bb_ref,
                          o_ref, acc_ref, *, eps):
    k = pl.program_id(1)

    @pl.when(k == 0)
    def _():
        acc_ref[...] = jnp.zeros_like(acc_ref)

    acc_ref[...] += jnp.dot(x_ref[...].astype(jnp.bfloat16), w_ref[...],
                            preferred_element_type=jnp.float32)

    @pl.when(k == pl.num_programs(1) - 1)
    def _():
        y = (acc_ref[...] + b_ref[...].astype(jnp.float32)
             + r_ref[...].astype(jnp.float32))
        mean = jnp.mean(y, axis=-1, keepdims=True)
        c = y - mean
        var = jnp.mean(c * c, axis=-1, keepdims=True)
        out = c * jax.lax.rsqrt(var + eps) * g_ref[...] + bb_ref[...]
        o_ref[...] = out.astype(o_ref.dtype)


def linear_add_layernorm(x2d, w, b, residual, gamma, beta, *, eps=1e-12,
                         tm_target=256, tk_target=512):
    """x2d: (M, K) f32, w: (K, H) bf16, residual: (M, H) f32 -> (M, H) f32."""
    M, K = x2d.shape
    _, H = w.shape
    Kp = _round_up(K, 128)
    if Kp != K:
        x2d = jnp.pad(x2d, ((0, 0), (0, Kp - K)))
        w = jnp.pad(w, ((0, Kp - K), (0, 0)))

    tm = _tile(M, tm_target, 8)
    tk = _tile(Kp, tk_target, 128)
    grid = (M // tm, Kp // tk)

    return pl.pallas_call(
        functools.partial(_linear_add_ln_kernel, eps=eps),
        out_shape=jax.ShapeDtypeStruct((M, H), jnp.float32),
        grid_spec=pltpu.PrefetchScalarGridSpec(
            num_scalar_prefetch=0,
            grid=grid,
            in_specs=[
                pl.BlockSpec((tm, tk), lambda i, k: (i, k)),
                pl.BlockSpec((tk, H), lambda i, k: (k, 0)),
                pl.BlockSpec((1, H), lambda i, k: (0, 0)),
                pl.BlockSpec((tm, H), lambda i, k: (i, 0)),
                pl.BlockSpec((1, H), lambda i, k: (0, 0)),
                pl.BlockSpec((1, H), lambda i, k: (0, 0)),
            ],
            out_specs=pl.BlockSpec((tm, H), lambda i, k: (i, 0)),
            scratch_shapes=[pltpu.VMEM((tm, H), jnp.float32)],
        ),
        compiler_params=pltpu.CompilerParams(
            dimension_semantics=("parallel", "arbitrary"),
            vmem_limit_bytes=_VMEM_LIMIT),
        cost_estimate=pl.CostEstimate(
            flops=2 * M * H * Kp,
            transcendentals=0,
            bytes_accessed=M * Kp * 4 + Kp * H * 2 + 2 * M * H * 4),
    )(x2d, w, b, residual, gamma, beta)


# ----------------------------------------------------------------------------
# Kernel 3: standalone  Y = LayerNorm(X + R) * gamma + beta   (embeddings)
# ----------------------------------------------------------------------------
def _add_layernorm_kernel(x_ref, r_ref, g_ref, b_ref, o_ref, *, eps):
    y = x_ref[...].astype(jnp.float32) + r_ref[...].astype(jnp.float32)
    mean = jnp.mean(y, axis=-1, keepdims=True)
    c = y - mean
    var = jnp.mean(c * c, axis=-1, keepdims=True)
    o_ref[...] = (c * jax.lax.rsqrt(var + eps) * g_ref[...]
                  + b_ref[...]).astype(o_ref.dtype)


def add_layernorm(x2d, r2d, gamma, beta, *, eps=1e-12, tm_target=256):
    M, H = x2d.shape
    tm = _tile(M, tm_target, 8)
    return pl.pallas_call(
        functools.partial(_add_layernorm_kernel, eps=eps),
        out_shape=jax.ShapeDtypeStruct((M, H), jnp.float32),
        grid_spec=pltpu.PrefetchScalarGridSpec(
            num_scalar_prefetch=0,
            grid=(M // tm,),
            in_specs=[
                pl.BlockSpec((tm, H), lambda i: (i, 0)),
                pl.BlockSpec((tm, H), lambda i: (i, 0)),
                pl.BlockSpec((1, H), lambda i: (0, 0)),
                pl.BlockSpec((1, H), lambda i: (0, 0)),
            ],
            out_specs=pl.BlockSpec((tm, H), lambda i: (i, 0)),
        ),
        compiler_params=pltpu.CompilerParams(
            dimension_semantics=("parallel",),
            vmem_limit_bytes=_VMEM_LIMIT),
    )(x2d, r2d, gamma, beta)


# ----------------------------------------------------------------------------
# Kernel 4: attention on packed layout.  One grid step per batch, all heads.
#           qkv: (B, S1, 3H)  ->  context: (B, S1, H)
# ----------------------------------------------------------------------------
def _attention_kernel(qkv_ref, o_ref, *, num_heads, head_dim, scale):
    H = num_heads * head_dim
    qkv = qkv_ref[0]                                   # (S1, 3H) f32
    for h in range(num_heads):                         # static unroll over heads
        lo, hi = h * head_dim, (h + 1) * head_dim
        qh = qkv[:, lo:hi].astype(jnp.bfloat16)
        kh = qkv[:, H + lo:H + hi].astype(jnp.bfloat16)
        vh = qkv[:, 2 * H + lo:2 * H + hi].astype(jnp.bfloat16)
        s = jax.lax.dot_general(qh, kh, (((1,), (1,)), ((), ())),
                                preferred_element_type=jnp.float32) * scale
        m = jnp.max(s, axis=-1, keepdims=True)
        p = jnp.exp(s - m)
        denom = jnp.sum(p, axis=-1, keepdims=True)
        p = p * pl.reciprocal(denom, approx=True)      # EUP slot, not VPU divide
        ctx = jnp.dot(p.astype(jnp.bfloat16), vh,
                      preferred_element_type=jnp.float32)
        o_ref[0, :, lo:hi] = ctx.astype(o_ref.dtype)


def attention(qkv3d, *, num_heads, scale):
    B, S1, threeH = qkv3d.shape
    H = threeH // 3
    hd = H // num_heads
    return pl.pallas_call(
        functools.partial(_attention_kernel, num_heads=num_heads,
                          head_dim=hd, scale=scale),
        out_shape=jax.ShapeDtypeStruct((B, S1, H), jnp.float32),
        grid_spec=pltpu.PrefetchScalarGridSpec(
            num_scalar_prefetch=0,
            grid=(B,),
            in_specs=[pl.BlockSpec((1, S1, threeH), lambda b: (b, 0, 0))],
            out_specs=pl.BlockSpec((1, S1, H), lambda b: (b, 0, 0)),
        ),
        compiler_params=pltpu.CompilerParams(
            dimension_semantics=("parallel",),
            vmem_limit_bytes=_VMEM_LIMIT),
    )(qkv3d)


# ----------------------------------------------------------------------------
# Parameters (mirrors HF BertModel + cls_embedding + cls_id buffer)
# Weights stored bf16 (MXU path / half the weight-stream bytes); biases,
# LayerNorm params and embeddings stay f32.
# ----------------------------------------------------------------------------
def init_params(key, *, batch_size, hidden_size, num_heads, num_layers,
                intermediate_size, max_position_embeddings):
    std = 0.02
    counter = iter(range(10_000))

    def nk():
        return jax.random.fold_in(key, next(counter))

    def dense(fan_in, fan_out):
        w = (std * jax.random.normal(nk(), (fan_in, fan_out),
                                     jnp.float32)).astype(jnp.bfloat16)
        b = jnp.zeros((1, fan_out), jnp.float32)
        return w, b

    H, I = hidden_size, intermediate_size
    params = {
        "cls_id": jnp.full((batch_size, 1, H), 0.5, jnp.float32),   # buffer(0.5)
        "pos_emb": std * jax.random.normal(nk(), (max_position_embeddings, H),
                                           jnp.float32),
        "type_emb": std * jax.random.normal(nk(), (1, H), jnp.float32),
        "emb_ln_g": jnp.ones((1, H), jnp.float32),
        "emb_ln_b": jnp.zeros((1, H), jnp.float32),
        "layers": [],
    }
    params["cls_w"], params["cls_b"] = dense(H, H)
    for _ in range(num_layers):
        layer = {}
        wq, bq = dense(H, H)
        wk, bk = dense(H, H)
        wv, bv = dense(H, H)
        layer["wqkv"] = jnp.concatenate([wq, wk, wv], axis=1)        # (H, 3H)
        layer["bqkv"] = jnp.concatenate([bq, bk, bv], axis=1)        # (1, 3H)
        layer["wo"], layer["bo"] = dense(H, H)
        layer["attn_ln_g"] = jnp.ones((1, H), jnp.float32)
        layer["attn_ln_b"] = jnp.zeros((1, H), jnp.float32)
        layer["wi"], layer["bi"] = dense(H, I)
        layer["wd"], layer["bd"] = dense(I, H)
        layer["out_ln_g"] = jnp.ones((1, H), jnp.float32)
        layer["out_ln_b"] = jnp.zeros((1, H), jnp.float32)
        params["layers"].append(layer)
    params["pool_w"], params["pool_b"] = dense(H, H)
    return params


# ----------------------------------------------------------------------------
# Forward pass (Pallas kernels + thin XLA glue for concat / reshape)
# ----------------------------------------------------------------------------
def transformer_block_forward(params, x, *, num_heads):
    B, S, H = x.shape
    S1 = S + 1
    hd = H // num_heads
    scale = 1.0 / math.sqrt(hd)

    # cls_token = LeakyReLU(Linear(cls_id)); prepend to the sequence.
    cls_tok = linear(params["cls_id"].reshape(B, H), params["cls_w"],
                     params["cls_b"], activation="leaky_relu")
    h = jnp.concatenate([cls_tok[:, None, :], x], axis=1).reshape(B * S1, H)

    # BERT embeddings: LN(inputs_embeds + position_emb + token_type_emb[0]).
    addend = params["pos_emb"][:S1, :] + params["type_emb"]          # (S1, H)
    addend_full = jnp.broadcast_to(addend[None], (B, S1, H)).reshape(B * S1, H)
    h = add_layernorm(h, addend_full, params["emb_ln_g"], params["emb_ln_b"])

    for lp in params["layers"]:
        # Fused QKV projection (single matmul), packed (M, 3H) lane-dense output.
        qkv = linear(h, lp["wqkv"], lp["bqkv"])                      # (M, 3H)
        ctx = attention(qkv.reshape(B, S1, 3 * H),
                        num_heads=num_heads, scale=scale)            # (B, S1, H)
        ctx2d = ctx.reshape(B * S1, H)
        # O-projection with fused residual-add + LayerNorm.
        h = linear_add_layernorm(ctx2d, lp["wo"], lp["bo"], h,
                                 lp["attn_ln_g"], lp["attn_ln_b"])
        # FFN: GELU intermediate, then output matmul with fused add + LN.
        inter = linear(h, lp["wi"], lp["bi"], activation="gelu")
        h = linear_add_layernorm(inter, lp["wd"], lp["bd"], h,
                                 lp["out_ln_g"], lp["out_ln_b"])

    h3 = h.reshape(B, S1, H)
    sequence = h3[:, 1:, :]                                          # drop CLS
    pooled = linear(h3[:, 0, :], params["pool_w"], params["pool_b"],
                    activation="tanh")                               # BertPooler
    return {"sequence": sequence, "cls": pooled}


# ----------------------------------------------------------------------------
# Pure-JAX reference (same math & same bf16 MXU casts) for correctness checking
# ----------------------------------------------------------------------------
def reference_forward(params, x, *, num_heads):
    B, S, H = x.shape
    S1 = S + 1
    hd = H // num_heads
    scale = 1.0 / math.sqrt(hd)

    def mm(a, w):
        return jnp.dot(a.astype(jnp.bfloat16), w.astype(jnp.bfloat16),
                       preferred_element_type=jnp.float32)

    def leaky(v):
        return jnp.where(v >= 0, v, 0.01 * v)

    def gelu(v):
        return 0.5 * v * (1.0 + jnp.tanh(0.7978845608028654
                                         * (v + 0.044715 * v * v * v)))

    def ln(v, g, b, eps=1e-12):
        m = jnp.mean(v, -1, keepdims=True)
        c = v - m
        var = jnp.mean(c * c, -1, keepdims=True)
        return c * jax.lax.rsqrt(var + eps) * g + b

    cls_tok = leaky(mm(params["cls_id"].reshape(B, H), params["cls_w"])
                    + params["cls_b"])
    h = jnp.concatenate([cls_tok[:, None, :], x], axis=1)
    addend = params["pos_emb"][:S1, :] + params["type_emb"]
    h = ln(h + addend, params["emb_ln_g"], params["emb_ln_b"]).reshape(B * S1, H)

    for lp in params["layers"]:
        qkv = (mm(h, lp["wqkv"]) + lp["bqkv"]).reshape(B, S1, 3, num_heads, hd)
        q = qkv[:, :, 0].transpose(0, 2, 1, 3)
        k = qkv[:, :, 1].transpose(0, 2, 1, 3)
        v = qkv[:, :, 2].transpose(0, 2, 1, 3)
        s = jnp.einsum("bhqd,bhkd->bhqk", q.astype(jnp.bfloat16),
                       k.astype(jnp.bfloat16),
                       preferred_element_type=jnp.float32) * scale
        p = jax.nn.softmax(s, axis=-1)
        ctx = jnp.einsum("bhqk,bhkd->bhqd", p.astype(jnp.bfloat16),
                         v.astype(jnp.bfloat16),
                         preferred_element_type=jnp.float32)
        ctx = ctx.transpose(0, 2, 1, 3).reshape(B * S1, H)
        h = ln(mm(ctx, lp["wo"]) + lp["bo"] + h,
               lp["attn_ln_g"], lp["attn_ln_b"])
        inter = gelu(mm(h, lp["wi"]) + lp["bi"])
        h = ln(mm(inter, lp["wd"]) + lp["bd"] + h,
               lp["out_ln_g"], lp["out_ln_b"])

    h3 = h.reshape(B, S1, H)
    pooled = jnp.tanh(mm(h3[:, 0, :], params["pool_w"]) + params["pool_b"])
    return {"sequence": h3[:, 1:, :], "cls": pooled}


# ----------------------------------------------------------------------------
if __name__ == "__main__":
    # Small, structure-faithful config (real module: H=2640, 16 heads, 12 layers;
    # unaligned H is handled by the in-wrapper 128-padding of K/N).
    B, S, H = 2, 7, 256          # seq becomes S+1 = 8 after CLS prepend
    NUM_HEADS, NUM_LAYERS, INTERMEDIATE = 2, 2, 1024

    key = jax.random.PRNGKey(0)
    k_param, k_x = jax.random.split(key)
    params = init_params(k_param, batch_size=B, hidden_size=H,
                         num_heads=NUM_HEADS, num_layers=NUM_LAYERS,
                         intermediate_size=INTERMEDIATE,
                         max_position_embeddings=30)
    x = 0.5 * jax.random.normal(k_x, (B, S, H), dtype=jnp.float32)

    fwd = jax.jit(functools.partial(transformer_block_forward,
                                    num_heads=NUM_HEADS))
    out = jax.block_until_ready(fwd(params, x))

    assert out["sequence"].shape == (B, S, H)
    assert out["cls"].shape == (B, H)
    assert bool(jnp.all(jnp.isfinite(out["sequence"])))
    assert bool(jnp.all(jnp.isfinite(out["cls"])))

    ref = reference_forward(params, x, num_heads=NUM_HEADS)
    seq_err = float(jnp.max(jnp.abs(out["sequence"] - ref["sequence"])))
    cls_err = float(jnp.max(jnp.abs(out["cls"] - ref["cls"])))
    assert seq_err < 2e-2 and cls_err < 2e-2, (seq_err, cls_err)

    print("KERNEL_OK")
</pallas_src>

<mosaic_0001>
module attributes {stable_mosaic.version = 11 : i64} {
  func.func @_linear_act_kernel(%arg0: i32, %arg1: i32, %arg2: i32, %arg3: memref<2x256xf32, #tpu.memory_space<vmem>>, %arg4: memref<256x256xbf16, #tpu.memory_space<vmem>>, %arg5: memref<1x256xf32, #tpu.memory_space<vmem>>, %arg6: memref<2x256xf32, #tpu.memory_space<vmem>>, %arg7: memref<2x256xf32, #tpu.memory_space<vmem>>) attributes {dimension_semantics = [#tpu.dimension_semantics<parallel>, #tpu.dimension_semantics<parallel>, #tpu.dimension_semantics<arbitrary>], iteration_bounds = array<i64: 1, 1, 1>, scalar_prefetch = 0 : i64, scratch_operands = 1 : i64, tpu.core_type = #tpu.core_type<tc>, window_params = [{transform_indices = @transform_0, window_bounds = array<i64: 2, 256>}, {transform_indices = @transform_1, window_bounds = array<i64: 256, 256>}, {transform_indices = @transform_2, window_bounds = array<i64: 1, 256>}, {transform_indices = @transform_3, window_bounds = array<i64: 2, 256>}]} {
    %c0_i32 = arith.constant 0 : i32
    %0 = arith.cmpi eq, %arg2, %c0_i32 : i32
    %1 = arith.extui %0 : i1 to i32
    %c0_i32_0 = arith.constant 0 : i32
    %2 = arith.cmpi ne, %1, %c0_i32_0 : i32
    scf.if %2 {
      %cst_10 = arith.constant 0.000000e+00 : f32
      %13 = vector.broadcast %cst_10 : f32 to vector<2x256xf32>
      %c0_11 = arith.constant 0 : index
      %c0_12 = arith.constant 0 : index
      %14 = vector.load %arg7[%c0_11, %c0_12] : memref<2x256xf32, #tpu.memory_space<vmem>>, vector<2x256xf32>
      tpu.vector_store %arg7[%c0_11, %c0_12], %13 {strides = array<i32>} : memref<2x256xf32, #tpu.memory_space<vmem>>, vector<2x256xf32>,
    } else {
    }
    %c0 = arith.constant 0 : index
    %c0_1 = arith.constant 0 : index
    %3 = vector.load %arg7[%c0, %c0_1] : memref<2x256xf32, #tpu.memory_space<vmem>>, vector<2x256xf32>
    %c0_2 = arith.constant 0 : index
    %c0_3 = arith.constant 0 : index
    %4 = vector.load %arg3[%c0_2, %c0_3] : memref<2x256xf32, #tpu.memory_space<vmem>>, vector<2x256xf32>
    %5 = arith.truncf %4 : vector<2x256xf32> to vector<2x256xbf16>
    %c0_4 = arith.constant 0 : index
    %c0_5 = arith.constant 0 : index
    %6 = vector.load %arg4[%c0_4, %c0_5] : memref<256x256xbf16, #tpu.memory_space<vmem>>, vector<256x256xbf16>
    %cst = arith.constant dense<0.000000e+00> : vector<2x256xf32>
    %7 = tpu.matmul %5, %6, %cst {dimension_numbers = #tpu.dot_dimension_numbers<[1], [0], [0], [1], [0, 0, 1, 1], [], []>} : vector<2x256xbf16>, vector<256x256xbf16>, vector<2x256xf32> -> vector<2x256xf32>
    %8 = arith.addf %3, %7 : vector<2x256xf32>
    %c0_6 = arith.constant 0 : index
    %c0_7 = arith.constant 0 : index
    %9 = vector.load %arg7[%c0_6, %c0_7] : memref<2x256xf32, #tpu.memory_space<vmem>>, vector<2x256xf32>
    tpu.vector_store %arg7[%c0_6, %c0_7], %8 {strides = array<i32>} : memref<2x256xf32, #tpu.memory_space<vmem>>, vector<2x256xf32>,
    %c0_i32_8 = arith.constant 0 : i32
    %10 = arith.cmpi eq, %arg2, %c0_i32_8 : i32
    %11 = arith.extui %10 : i1 to i32
    %c0_i32_9 = arith.constant 0 : i32
    %12 = arith.cmpi ne, %11, %c0_i32_9 : i32
    scf.if %12 {
      %c0_10 = arith.constant 0 : index
      %c0_11 = arith.constant 0 : index
      %13 = vector.load %arg7[%c0_10, %c0_11] : memref<2x256xf32, #tpu.memory_space<vmem>>, vector<2x256xf32>
      %c0_12 = arith.constant 0 : index
      %c0_13 = arith.constant 0 : index
      %14 = vector.load %arg5[%c0_12, %c0_13] : memref<1x256xf32, #tpu.memory_space<vmem>>, vector<1x256xf32>
      %15 = vector.broadcast %14 : vector<1x256xf32> to vector<2x256xf32>
      %16 = arith.addf %13, %15 : vector<2x256xf32>
      %cst_14 = arith.constant 0.000000e+00 : f32
      %17 = vector.broadcast %cst_14 : f32 to vector<2x256xf32>
      %18 = arith.cmpf oge, %16, %17 : vector<2x256xf32>
      %cst_15 = arith.constant 0.00999999977 : f32
      %19 = vector.broadcast %cst_15 : f32 to vector<2x256xf32>
      %20 = arith.mulf %19, %16 : vector<2x256xf32>
      %21 = arith.select %18, %16, %20 : vector<2x256xi1>, vector<2x256xf32>
      %c0_16 = arith.constant 0 : index
      %c0_17 = arith.constant 0 : index
      %22 = vector.load %arg6[%c0_16, %c0_17] : memref<2x256xf32, #tpu.memory_space<vmem>>, vector<2x256xf32>
      tpu.vector_store %arg6[%c0_16, %c0_17], %21 {strides = array<i32>} : memref<2x256xf32, #tpu.memory_space<vmem>>, vector<2x256xf32>,
    } else {
    }
    return
  }
  func.func @transform_0(%arg0: i32, %arg1: i32, %arg2: i32) -> (i32, i32) {
    %c0_i32 = arith.constant 0 : i32
    return %arg0, %arg2 : i32, i32
  }
  func.func @transform_1(%arg0: i32, %arg1: i32, %arg2: i32) -> (i32, i32) {
    %c0_i32 = arith.constant 0 : i32
    return %arg2, %arg1 : i32, i32
  }
  func.func @transform_2(%arg0: i32, %arg1: i32, %arg2: i32) -> (i32, i32) {
    %c0_i32 = arith.constant 0 : i32
    %c0_i32_0 = arith.constant 0 : i32
    return %c0_i32, %arg1 : i32, i32
  }
  func.func @transform_3(%arg0: i32, %arg1: i32, %arg2: i32) -> (i32, i32) {
    %c0_i32 = arith.constant 0 : i32
    return %arg0, %arg1 : i32, i32
  }
}

module attributes {stable_mosaic.version = 11 : i64} {
  func.func @_linear_noact_kernel(%arg0: i32, %arg1: i32, %arg2: i32, %arg3: memref<16x256xf32, #tpu.memory_space<vmem>>, %arg4: memref<256x384xbf16, #tpu.memory_space<vmem>>, %arg5: memref<1x384xf32, #tpu.memory_space<vmem>>, %arg6: memref<16x384xf32, #tpu.memory_space<vmem>>) attributes {dimension_semantics = [#tpu.dimension_semantics<parallel>, #tpu.dimension_semantics<parallel>, #tpu.dimension_semantics<arbitrary>], iteration_bounds = array<i64: 1, 2, 1>, scalar_prefetch = 0 : i64, scratch_operands = 0 : i64, tpu.core_type = #tpu.core_type<tc>, window_params = [{transform_indices = @transform_0, window_bounds = array<i64: 16, 256>}, {transform_indices = @transform_1, window_bounds = array<i64: 256, 384>}, {transform_indices = @transform_2, window_bounds = array<i64: 1, 384>}, {transform_indices = @transform_3, window_bounds = array<i64: 16, 384>}]} {
    %c0_i32 = arith.constant 0 : i32
    %0 = arith.cmpi eq, %arg2, %c0_i32 : i32
    %1 = arith.extui %0 : i1 to i32
    %c0_i32_0 = arith.constant 0 : i32
    %2 = arith.cmpi ne, %1, %c0_i32_0 : i32
    scf.if %2 {
      %cst_8 = arith.constant 0.000000e+00 : f32
      %10 = vector.broadcast %cst_8 : f32 to vector<16x384xf32>
      %c0_9 = arith.constant 0 : index
      %c0_10 = arith.constant 0 : index
      %11 = vector.load %arg5[%c0_9, %c0_10] : memref<1x384xf32, #tpu.memory_space<vmem>>, vector<1x384xf32>
      %12 = vector.broadcast %11 : vector<1x384xf32> to vector<16x384xf32>
      %13 = arith.addf %10, %12 : vector<16x384xf32>
      %c0_11 = arith.constant 0 : index
      %c0_12 = arith.constant 0 : index
      %14 = vector.load %arg6[%c0_11, %c0_12] : memref<16x384xf32, #tpu.memory_space<vmem>>, vector<16x384xf32>
      tpu.vector_store %arg6[%c0_11, %c0_12], %13 {strides = array<i32>} : memref<16x384xf32, #tpu.memory_space<vmem>>, vector<16x384xf32>,
    } else {
    }
    %c0 = arith.constant 0 : index
    %c0_1 = arith.constant 0 : index
    %3 = vector.load %arg6[%c0, %c0_1] : memref<16x384xf32, #tpu.memory_space<vmem>>, vector<16x384xf32>
    %c0_2 = arith.constant 0 : index
    %c0_3 = arith.constant 0 : index
    %4 = vector.load %arg3[%c0_2, %c0_3] : memref<16x256xf32, #tpu.memory_space<vmem>>, vector<16x256xf32>
    %5 = arith.truncf %4 : vector<16x256xf32> to vector<16x256xbf16>
    %c0_4 = arith.constant 0 : index
    %c0_5 = arith.constant 0 : index
    %6 = vector.load %arg4[%c0_4, %c0_5] : memref<256x384xbf16, #tpu.memory_space<vmem>>, vector<256x384xbf16>
    %cst = arith.constant dense<0.000000e+00> : vector<16x384xf32>
    %7 = tpu.matmul %5, %6, %cst {dimension_numbers = #tpu.dot_dimension_numbers<[1], [0], [0], [1], [0, 0, 1, 1], [], []>} : vector<16x256xbf16>, vector<256x384xbf16>, vector<16x384xf32> -> vector<16x384xf32>
    %8 = arith.addf %3, %7 : vector<16x384xf32>
    %c0_6 = arith.constant 0 : index
    %c0_7 = arith.constant 0 : index
    %9 = vector.load %arg6[%c0_6, %c0_7] : memref<16x384xf32, #tpu.memory_space<vmem>>, vector<16x384xf32>
    tpu.vector_store %arg6[%c0_6, %c0_7], %8 {strides = array<i32>} : memref<16x384xf32, #tpu.memory_space<vmem>>, vector<16x384xf32>,
    return
  }
  func.func @transform_0(%arg0: i32, %arg1: i32, %arg2: i32) -> (i32, i32) {
    %c0_i32 = arith.constant 0 : i32
    return %arg0, %arg2 : i32, i32
  }
  func.func @transform_1(%arg0: i32, %arg1: i32, %arg2: i32) -> (i32, i32) {
    %c0_i32 = arith.constant 0 : i32
    return %arg2, %arg1 : i32, i32
  }
  func.func @transform_2(%arg0: i32, %arg1: i32, %arg2: i32) -> (i32, i32) {
    %c0_i32 = arith.constant 0 : i32
    %c0_i32_0 = arith.constant 0 : i32
    return %c0_i32, %arg1 : i32, i32
  }
  func.func @transform_3(%arg0: i32, %arg1: i32, %arg2: i32) -> (i32, i32) {
    %c0_i32 = arith.constant 0 : i32
    return %arg0, %arg1 : i32, i32
  }
}

module attributes {stable_mosaic.version = 11 : i64} {
  func.func @_attention_kernel(%arg0: i32, %arg1: memref<1x8x768xf32, #tpu.memory_space<vmem>>, %arg2: memref<1x8x256xf32, #tpu.memory_space<vmem>>) attributes {dimension_semantics = [#tpu.dimension_semantics<parallel>], iteration_bounds = array<i64: 2>, scalar_prefetch = 0 : i64, scratch_operands = 0 : i64, tpu.core_type = #tpu.core_type<tc>, window_params = [{transform_indices = @transform_0, window_bounds = array<i64: 1, 8, 768>}, {transform_indices = @transform_1, window_bounds = array<i64: 1, 8, 256>}]} {
    %c0 = arith.constant 0 : index
    %c0_0 = arith.constant 0 : index
    %c0_1 = arith.constant 0 : index
    %0 = vector.load %arg1[%c0, %c0_0, %c0_1] : memref<1x8x768xf32, #tpu.memory_space<vmem>>, vector<1x8x768xf32>
    %1 = vector.shape_cast %0 : vector<1x8x768xf32> to vector<8x768xf32>
    %2 = vector.extract_strided_slice %1 {offsets = [0, 0], sizes = [8, 128], strides = [1, 1]} : vector<8x768xf32> to vector<8x128xf32>
    %3 = arith.truncf %2 : vector<8x128xf32> to vector<8x128xbf16>
    %4 = vector.extract_strided_slice %1 {offsets = [0, 256], sizes = [8, 128], strides = [1, 1]} : vector<8x768xf32> to vector<8x128xf32>
    %5 = arith.truncf %4 : vector<8x128xf32> to vector<8x128xbf16>
    %6 = vector.extract_strided_slice %1 {offsets = [0, 512], sizes = [8, 128], strides = [1, 1]} : vector<8x768xf32> to vector<8x128xf32>
    %7 = arith.truncf %6 : vector<8x128xf32> to vector<8x128xbf16>
    %cst = arith.constant dense<0.000000e+00> : vector<8x8xf32>
    %8 = tpu.matmul %3, %5, %cst {dimension_numbers = #tpu.dot_dimension_numbers<[1], [1], [0], [0], [0, 0, 1, 0], [], []>} : vector<8x128xbf16>, vector<8x128xbf16>, vector<8x8xf32> -> vector<8x8xf32>
    %cst_2 = arith.constant 0.0883883461 : f32
    %9 = vector.broadcast %cst_2 : f32 to vector<8x8xf32>
    %10 = arith.mulf %8, %9 : vector<8x8xf32>
    %cst_3 = arith.constant dense<0xFF800000> : vector<8xf32>
    %11 = vector.multi_reduction <maximumf>, %10, %cst_3 [1] : vector<8x8xf32> to vector<8xf32>
    %12 = vector.shape_cast %11 : vector<8xf32> to vector<8x1xf32>
    %13 = vector.broadcast %12 : vector<8x1xf32> to vector<8x8xf32>
    %14 = arith.subf %10, %13 : vector<8x8xf32>
    %15 = math.exp %14 : vector<8x8xf32>
    %cst_4 = arith.constant dense<0.000000e+00> : vector<8xf32>
    %16 = vector.multi_reduction <add>, %15, %cst_4 [1] : vector<8x8xf32> to vector<8xf32>
    %17 = vector.shape_cast %16 : vector<8xf32> to vector<8x1xf32>
    %18 = tpu.reciprocal %17 {approx = true} : vector<8x1xf32> -> vector<8x1xf32>
    %19 = vector.broadcast %18 : vector<8x1xf32> to vector<8x8xf32>
    %20 = arith.mulf %15, %19 : vector<8x8xf32>
    %21 = arith.truncf %20 : vector<8x8xf32> to vector<8x8xbf16>
    %cst_5 = arith.constant dense<0.000000e+00> : vector<8x128xf32>
    %22 = tpu.matmul %21, %7, %cst_5 {dimension_numbers = #tpu.dot_dimension_numbers<[1], [0], [0], [1], [0, 0, 1, 1], [], []>} : vector<8x8xbf16>, vector<8x128xbf16>, vector<8x128xf32> -> vector<8x128xf32>
    %c0_6 = arith.constant 0 : index
    %c0_7 = arith.constant 0 : index
    %c0_8 = arith.constant 0 : index
    %23 = vector.load %arg2[%c0_6, %c0_7, %c0_8] : memref<1x8x256xf32, #tpu.memory_space<vmem>>, vector<1x8x128xf32>
    %24 = vector.shape_cast %23 : vector<1x8x128xf32> to vector<8x128xf32>
    %25 = vector.shape_cast %22 : vector<8x128xf32> to vector<1x8x128xf32>
    tpu.vector_store %arg2[%c0_6, %c0_7, %c0_8], %25 {strides = array<i32>} : memref<1x8x256xf32, #tpu.memory_space<vmem>>, vector<1x8x128xf32>,
    %26 = vector.extract_strided_slice %1 {offsets = [0, 128], sizes = [8, 128], strides = [1, 1]} : vector<8x768xf32> to vector<8x128xf32>
    %27 = arith.truncf %26 : vector<8x128xf32> to vector<8x128xbf16>
    %28 = vector.extract_strided_slice %1 {offsets = [0, 384], sizes = [8, 128], strides = [1, 1]} : vector<8x768xf32> to vector<8x128xf32>
    %29 = arith.truncf %28 : vector<8x128xf32> to vector<8x128xbf16>
    %30 = vector.extract_strided_slice %1 {offsets = [0, 640], sizes = [8, 128], strides = [1, 1]} : vector<8x768xf32> to vector<8x128xf32>
    %31 = arith.truncf %30 : vector<8x128xf32> to vector<8x128xbf16>
    %cst_9 = arith.constant dense<0.000000e+00> : vector<8x8xf32>
    %32 = tpu.matmul %27, %29, %cst_9 {dimension_numbers = #tpu.dot_dimension_numbers<[1], [1], [0], [0], [0, 0, 1, 0], [], []>} : vector<8x128xbf16>, vector<8x128xbf16>, vector<8x8xf32> -> vector<8x8xf32>
    %cst_10 = arith.constant 0.0883883461 : f32
    %33 = vector.broadcast %cst_10 : f32 to vector<8x8xf32>
    %34 = arith.mulf %32, %33 : vector<8x8xf32>
    %cst_11 = arith.constant dense<0xFF800000> : vector<8xf32>
    %35 = vector.multi_reduction <maximumf>, %34, %cst_11 [1] : vector<8x8xf32> to vector<8xf32>
    %36 = vector.shape_cast %35 : vector<8xf32> to vector<8x1xf32>
    %37 = vector.broadcast %36 : vector<8x1xf32> to vector<8x8xf32>
    %38 = arith.subf %34, %37 : vector<8x8xf32>
    %39 = math.exp %38 : vector<8x8xf32>
    %cst_12 = arith.constant dense<0.000000e+00> : vector<8xf32>
    %40 = vector.multi_reduction <add>, %39, %cst_12 [1] : vector<8x8xf32> to vector<8xf32>
    %41 = vector.shape_cast %40 : vector<8xf32> to vector<8x1xf32>
    %42 = tpu.reciprocal %41 {approx = true} : vector<8x1xf32> -> vector<8x1xf32>
    %43 = vector.broadcast %42 : vector<8x1xf32> to vector<8x8xf32>
    %44 = arith.mulf %39, %43 : vector<8x8xf32>
    %45 = arith.truncf %44 : vector<8x8xf32> to vector<8x8xbf16>
    %cst_13 = arith.constant dense<0.000000e+00> : vector<8x128xf32>
    %46 = tpu.matmul %45, %31, %cst_13 {dimension_numbers = #tpu.dot_dimension_numbers<[1], [0], [0], [1], [0, 0, 1, 1], [], []>} : vector<8x8xbf16>, vector<8x128xbf16>, vector<8x128xf32> -> vector<8x128xf32>
    %c0_14 = arith.constant 0 : index
    %c0_15 = arith.constant 0 : index
    %c128 = arith.constant 128 : index
    %47 = vector.load %arg2[%c0_14, %c0_15, %c128] : memref<1x8x256xf32, #tpu.memory_space<vmem>>, vector<1x8x128xf32>
    %48 = vector.shape_cast %47 : vector<1x8x128xf32> to vector<8x128xf32>
    %49 = vector.shape_cast %46 : vector<8x128xf32> to vector<1x8x128xf32>
    tpu.vector_store %arg2[%c0_14, %c0_15, %c128], %49 {strides = array<i32>} : memref<1x8x256xf32, #tpu.memory_space<vmem>>, vector<1x8x128xf32>,
    return
  }
  func.func @transform_0(%arg0: i32) -> (i32, i32, i32) {
    %c0_i32 = arith.constant 0 : i32
    %c0_i32_0 = arith.constant 0 : i32
    %c0_i32_1 = arith.constant 0 : i32
    return %arg0, %c0_i32, %c0_i32_0 : i32, i32, i32
  }
  func.func @transform_1(%arg0: i32) -> (i32, i32, i32) {
    %c0_i32 = arith.constant 0 : i32
    %c0_i32_0 = arith.constant 0 : i32
    %c0_i32_1 = arith.constant 0 : i32
    return %arg0, %c0_i32, %c0_i32_0 : i32, i32, i32
  }
}

module attributes {stable_mosaic.version = 11 : i64} {
  func.func @_add_layernorm_kernel(%arg0: i32, %arg1: memref<16x256xf32, #tpu.memory_space<vmem>>, %arg2: memref<16x256xf32, #tpu.memory_space<vmem>>, %arg3: memref<1x256xf32, #tpu.memory_space<vmem>>, %arg4: memref<1x256xf32, #tpu.memory_space<vmem>>, %arg5: memref<16x256xf32, #tpu.memory_space<vmem>>) attributes {dimension_semantics = [#tpu.dimension_semantics<parallel>], iteration_bounds = array<i64: 1>, scalar_prefetch = 0 : i64, scratch_operands = 0 : i64, tpu.core_type = #tpu.core_type<tc>, window_params = [{transform_indices = @transform_0, window_bounds = array<i64: 16, 256>}, {transform_indices = @transform_1, window_bounds = array<i64: 16, 256>}, {pipeline_mode = #tpu.pipeline_mode<synchronous>, transform_indices = @transform_2, window_bounds = array<i64: 1, 256>}, {pipeline_mode = #tpu.pipeline_mode<synchronous>, transform_indices = @transform_3, window_bounds = array<i64: 1, 256>}, {transform_indices = @transform_4, window_bounds = array<i64: 16, 256>}]} {
    %c0 = arith.constant 0 : index
    %c0_0 = arith.constant 0 : index
    %0 = vector.load %arg1[%c0, %c0_0] : memref<16x256xf32, #tpu.memory_space<vmem>>, vector<16x256xf32>
    %c0_1 = arith.constant 0 : index
    %c0_2 = arith.constant 0 : index
    %1 = vector.load %arg2[%c0_1, %c0_2] : memref<16x256xf32, #tpu.memory_space<vmem>>, vector<16x256xf32>
    %2 = arith.addf %0, %1 : vector<16x256xf32>
    %cst = arith.constant dense<0.000000e+00> : vector<16xf32>
    %3 = vector.multi_reduction <add>, %2, %cst [1] : vector<16x256xf32> to vector<16xf32>
    %4 = vector.shape_cast %3 : vector<16xf32> to vector<16x1xf32>
    %cst_3 = arith.constant 2.560000e+02 : f32
    %5 = vector.broadcast %cst_3 : f32 to vector<16x1xf32>
    %6 = arith.divf %4, %5 : vector<16x1xf32>
    %7 = vector.broadcast %6 : vector<16x1xf32> to vector<16x256xf32>
    %8 = arith.subf %2, %7 : vector<16x256xf32>
    %9 = arith.mulf %8, %8 : vector<16x256xf32>
    %cst_4 = arith.constant dense<0.000000e+00> : vector<16xf32>
    %10 = vector.multi_reduction <add>, %9, %cst_4 [1] : vector<16x256xf32> to vector<16xf32>
    %11 = vector.shape_cast %10 : vector<16xf32> to vector<16x1xf32>
    %cst_5 = arith.constant 2.560000e+02 : f32
    %12 = vector.broadcast %cst_5 : f32 to vector<16x1xf32>
    %13 = arith.divf %11, %12 : vector<16x1xf32>
    %cst_6 = arith.constant 9.99999996E-13 : f32
    %14 = vector.broadcast %cst_6 : f32 to vector<16x1xf32>
    %15 = arith.addf %13, %14 : vector<16x1xf32>
    %16 = math.rsqrt %15 : vector<16x1xf32>
    %17 = vector.broadcast %16 : vector<16x1xf32> to vector<16x256xf32>
    %18 = arith.mulf %8, %17 : vector<16x256xf32>
    %c0_7 = arith.constant 0 : index
    %c0_8 = arith.constant 0 : index
    %19 = vector.load %arg3[%c0_7, %c0_8] : memref<1x256xf32, #tpu.memory_space<vmem>>, vector<1x256xf32>
    %20 = vector.broadcast %19 : vector<1x256xf32> to vector<16x256xf32>
    %21 = arith.mulf %18, %20 : vector<16x256xf32>
    %c0_9 = arith.constant 0 : index
    %c0_10 = arith.constant 0 : index
    %22 = vector.load %arg4[%c0_9, %c0_10] : memref<1x256xf32, #tpu.memory_space<vmem>>, vector<1x256xf32>
    %23 = vector.broadcast %22 : vector<1x256xf32> to vector<16x256xf32>
    %24 = arith.addf %21, %23 : vector<16x256xf32>
    %c0_11 = arith.constant 0 : index
    %c0_12 = arith.constant 0 : index
    %25 = vector.load %arg5[%c0_11, %c0_12] : memref<16x256xf32, #tpu.memory_space<vmem>>, vector<16x256xf32>
    tpu.vector_store %arg5[%c0_11, %c0_12], %24 {strides = array<i32>} : memref<16x256xf32, #tpu.memory_space<vmem>>, vector<16x256xf32>,
    return
  }
  func.func @transform_0(%arg0: i32) -> (i32, i32) {
    %c0_i32 = arith.constant 0 : i32
    %c0_i32_0 = arith.constant 0 : i32
    return %arg0, %c0_i32 : i32, i32
  }
  func.func @transform_1(%arg0: i32) -> (i32, i32) {
    %c0_i32 = arith.constant 0 : i32
    %c0_i32_0 = arith.constant 0 : i32
    return %arg0, %c0_i32 : i32, i32
  }
  func.func @transform_2(%arg0: i32) -> (i32, i32) {
    %c0_i32 = arith.constant 0 : i32
    %c0_i32_0 = arith.constant 0 : i32
    %c0_i32_1 = arith.constant 0 : i32
    return %c0_i32, %c0_i32_0 : i32, i32
  }
  func.func @transform_3(%arg0: i32) -> (i32, i32) {
    %c0_i32 = arith.constant 0 : i32
    %c0_i32_0 = arith.constant 0 : i32
    %c0_i32_1 = arith.constant 0 : i32
    return %c0_i32, %c0_i32_0 : i32, i32
  }
  func.func @transform_4(%arg0: i32) -> (i32, i32) {
    %c0_i32 = arith.constant 0 : i32
    %c0_i32_0 = arith.constant 0 : i32
    return %arg0, %c0_i32 : i32, i32
  }
}

module attributes {stable_mosaic.version = 11 : i64} {
  func.func @_linear_add_ln_kernel(%arg0: i32, %arg1: i32, %arg2: memref<16x256xf32, #tpu.memory_space<vmem>>, %arg3: memref<256x256xbf16, #tpu.memory_space<vmem>>, %arg4: memref<1x256xf32, #tpu.memory_space<vmem>>, %arg5: memref<16x256xf32, #tpu.memory_space<vmem>>, %arg6: memref<1x256xf32, #tpu.memory_space<vmem>>, %arg7: memref<1x256xf32, #tpu.memory_space<vmem>>, %arg8: memref<16x256xf32, #tpu.memory_space<vmem>>, %arg9: memref<16x256xf32, #tpu.memory_space<vmem>>) attributes {dimension_semantics = [#tpu.dimension_semantics<parallel>, #tpu.dimension_semantics<arbitrary>], iteration_bounds = array<i64: 1, 1>, scalar_prefetch = 0 : i64, scratch_operands = 1 : i64, tpu.core_type = #tpu.core_type<tc>, window_params = [{transform_indices = @transform_0, window_bounds = array<i64: 16, 256>}, {transform_indices = @transform_1, window_bounds = array<i64: 256, 256>}, {pipeline_mode = #tpu.pipeline_mode<synchronous>, transform_indices = @transform_2, window_bounds = array<i64: 1, 256>}, {transform_indices = @transform_3, window_bounds = array<i64: 16, 256>}, {pipeline_mode = #tpu.pipeline_mode<synchronous>, transform_indices = @transform_4, window_bounds = array<i64: 1, 256>}, {pipeline_mode = #tpu.pipeline_mode<synchronous>, transform_indices = @transform_5, window_bounds = array<i64: 1, 256>}, {transform_indices = @transform_6, window_bounds = array<i64: 16, 256>}]} {
    %c0_i32 = arith.constant 0 : i32
    %0 = arith.cmpi eq, %arg1, %c0_i32 : i32
    %1 = arith.extui %0 : i1 to i32
    %c0_i32_0 = arith.constant 0 : i32
    %2 = arith.cmpi ne, %1, %c0_i32_0 : i32
    scf.if %2 {
      %cst_10 = arith.constant 0.000000e+00 : f32
      %13 = vector.broadcast %cst_10 : f32 to vector<16x256xf32>
      %c0_11 = arith.constant 0 : index
      %c0_12 = arith.constant 0 : index
      %14 = vector.load %arg9[%c0_11, %c0_12] : memref<16x256xf32, #tpu.memory_space<vmem>>, vector<16x256xf32>
      tpu.vector_store %arg9[%c0_11, %c0_12], %13 {strides = array<i32>} : memref<16x256xf32, #tpu.memory_space<vmem>>, vector<16x256xf32>,
    } else {
    }
    %c0 = arith.constant 0 : index
    %c0_1 = arith.constant 0 : index
    %3 = vector.load %arg9[%c0, %c0_1] : memref<16x256xf32, #tpu.memory_space<vmem>>, vector<16x256xf32>
    %c0_2 = arith.constant 0 : index
    %c0_3 = arith.constant 0 : index
    %4 = vector.load %arg2[%c0_2, %c0_3] : memref<16x256xf32, #tpu.memory_space<vmem>>, vector<16x256xf32>
    %5 = arith.truncf %4 : vector<16x256xf32> to vector<16x256xbf16>
    %c0_4 = arith.constant 0 : index
    %c0_5 = arith.constant 0 : index
    %6 = vector.load %arg3[%c0_4, %c0_5] : memref<256x256xbf16, #tpu.memory_space<vmem>>, vector<256x256xbf16>
    %cst = arith.constant dense<0.000000e+00> : vector<16x256xf32>
    %7 = tpu.matmul %5, %6, %cst {dimension_numbers = #tpu.dot_dimension_numbers<[1], [0], [0], [1], [0, 0, 1, 1], [], []>} : vector<16x256xbf16>, vector<256x256xbf16>, vector<16x256xf32> -> vector<16x256xf32>
    %8 = arith.addf %3, %7 : vector<16x256xf32>
    %c0_6 = arith.constant 0 : index
    %c0_7 = arith.constant 0 : index
    %9 = vector.load %arg9[%c0_6, %c0_7] : memref<16x256xf32, #tpu.memory_space<vmem>>, vector<16x256xf32>
    tpu.vector_store %arg9[%c0_6, %c0_7], %8 {strides = array<i32>} : memref<16x256xf32, #tpu.memory_space<vmem>>, vector<16x256xf32>,
    %c0_i32_8 = arith.constant 0 : i32
    %10 = arith.cmpi eq, %arg1, %c0_i32_8 : i32
    %11 = arith.extui %10 : i1 to i32
    %c0_i32_9 = arith.constant 0 : i32
    %12 = arith.cmpi ne, %11, %c0_i32_9 : i32
    scf.if %12 {
      %c0_10 = arith.constant 0 : index
      %c0_11 = arith.constant 0 : index
      %13 = vector.load %arg9[%c0_10, %c0_11] : memref<16x256xf32, #tpu.memory_space<vmem>>, vector<16x256xf32>
      %c0_12 = arith.constant 0 : index
      %c0_13 = arith.constant 0 : index
      %14 = vector.load %arg4[%c0_12, %c0_13] : memref<1x256xf32, #tpu.memory_space<vmem>>, vector<1x256xf32>
      %15 = vector.broadcast %14 : vector<1x256xf32> to vector<16x256xf32>
      %16 = arith.addf %13, %15 : vector<16x256xf32>
      %c0_14 = arith.constant 0 : index
      %c0_15 = arith.constant 0 : index
      %17 = vector.load %arg5[%c0_14, %c0_15] : memref<16x256xf32, #tpu.memory_space<vmem>>, vector<16x256xf32>
      %18 = arith.addf %16, %17 : vector<16x256xf32>
      %cst_16 = arith.constant dense<0.000000e+00> : vector<16xf32>
      %19 = vector.multi_reduction <add>, %18, %cst_16 [1] : vector<16x256xf32> to vector<16xf32>
      %20 = vector.shape_cast %19 : vector<16xf32> to vector<16x1xf32>
      %cst_17 = arith.constant 2.560000e+02 : f32
      %21 = vector.broadcast %cst_17 : f32 to vector<16x1xf32>
      %22 = arith.divf %20, %21 : vector<16x1xf32>
      %23 = vector.broadcast %22 : vector<16x1xf32> to vector<16x256xf32>
      %24 = arith.subf %18, %23 : vector<16x256xf32>
      %25 = arith.mulf %24, %24 : vector<16x256xf32>
      %cst_18 = arith.constant dense<0.000000e+00> : vector<16xf32>
      %26 = vector.multi_reduction <add>, %25, %cst_18 [1] : vector<16x256xf32> to vector<16xf32>
      %27 = vector.shape_cast %26 : vector<16xf32> to vector<16x1xf32>
      %cst_19 = arith.constant 2.560000e+02 : f32
      %28 = vector.broadcast %cst_19 : f32 to vector<16x1xf32>
      %29 = arith.divf %27, %28 : vector<16x1xf32>
      %cst_20 = arith.constant 9.99999996E-13 : f32
      %30 = vector.broadcast %cst_20 : f32 to vector<16x1xf32>
      %31 = arith.addf %29, %30 : vector<16x1xf32>
      %32 = math.rsqrt %31 : vector<16x1xf32>
      %33 = vector.broadcast %32 : vector<16x1xf32> to vector<16x256xf32>
      %34 = arith.mulf %24, %33 : vector<16x256xf32>
      %c0_21 = arith.constant 0 : index
      %c0_22 = arith.constant 0 : index
      %35 = vector.load %arg6[%c0_21, %c0_22] : memref<1x256xf32, #tpu.memory_space<vmem>>, vector<1x256xf32>
      %36 = vector.broadcast %35 : vector<1x256xf32> to vector<16x256xf32>
      %37 = arith.mulf %34, %36 : vector<16x256xf32>
      %c0_23 = arith.constant 0 : index
      %c0_24 = arith.constant 0 : index
      %38 = vector.load %arg7[%c0_23, %c0_24] : memref<1x256xf32, #tpu.memory_space<vmem>>, vector<1x256xf32>
      %39 = vector.broadcast %38 : vector<1x256xf32> to vector<16x256xf32>
      %40 = arith.addf %37, %39 : vector<16x256xf32>
      %c0_25 = arith.constant 0 : index
      %c0_26 = arith.constant 0 : index
      %41 = vector.load %arg8[%c0_25, %c0_26] : memref<16x256xf32, #tpu.memory_space<vmem>>, vector<16x256xf32>
      tpu.vector_store %arg8[%c0_25, %c0_26], %40 {strides = array<i32>} : memref<16x256xf32, #tpu.memory_space<vmem>>, vector<16x256xf32>,
    } else {
    }
    return
  }
  func.func @transform_0(%arg0: i32, %arg1: i32) -> (i32, i32) {
    %c0_i32 = arith.constant 0 : i32
    return %arg0, %arg1 : i32, i32
  }
  func.func @transform_1(%arg0: i32, %arg1: i32) -> (i32, i32) {
    %c0_i32 = arith.constant 0 : i32
    %c0_i32_0 = arith.constant 0 : i32
    return %arg1, %c0_i32 : i32, i32
  }
  func.func @transform_2(%arg0: i32, %arg1: i32) -> (i32, i32) {
    %c0_i32 = arith.constant 0 : i32
    %c0_i32_0 = arith.constant 0 : i32
    %c0_i32_1 = arith.constant 0 : i32
    return %c0_i32, %c0_i32_0 : i32, i32
  }
  func.func @transform_3(%arg0: i32, %arg1: i32) -> (i32, i32) {
    %c0_i32 = arith.constant 0 : i32
    %c0_i32_0 = arith.constant 0 : i32
    return %arg0, %c0_i32 : i32, i32
  }
  func.func @transform_4(%arg0: i32, %arg1: i32) -> (i32, i32) {
    %c0_i32 = arith.constant 0 : i32
    %c0_i32_0 = arith.constant 0 : i32
    %c0_i32_1 = arith.constant 0 : i32
    return %c0_i32, %c0_i32_0 : i32, i32
  }
  func.func @transform_5(%arg0: i32, %arg1: i32) -> (i32, i32) {
    %c0_i32 = arith.constant 0 : i32
    %c0_i32_0 = arith.constant 0 : i32
    %c0_i32_1 = arith.constant 0 : i32
    return %c0_i32, %c0_i32_0 : i32, i32
  }
  func.func @transform_6(%arg0: i32, %arg1: i32) -> (i32, i32) {
    %c0_i32 = arith.constant 0 : i32
    %c0_i32_0 = arith.constant 0 : i32
    return %arg0, %c0_i32 : i32, i32
  }
}

module attributes {stable_mosaic.version = 11 : i64} {
  func.func @_linear_add_ln_kernel(%arg0: i32, %arg1: i32, %arg2: memref<16x512xf32, #tpu.memory_space<vmem>>, %arg3: memref<512x256xbf16, #tpu.memory_space<vmem>>, %arg4: memref<1x256xf32, #tpu.memory_space<vmem>>, %arg5: memref<16x256xf32, #tpu.memory_space<vmem>>, %arg6: memref<1x256xf32, #tpu.memory_space<vmem>>, %arg7: memref<1x256xf32, #tpu.memory_space<vmem>>, %arg8: memref<16x256xf32, #tpu.memory_space<vmem>>, %arg9: memref<16x256xf32, #tpu.memory_space<vmem>>) attributes {dimension_semantics = [#tpu.dimension_semantics<parallel>, #tpu.dimension_semantics<arbitrary>], iteration_bounds = array<i64: 1, 2>, scalar_prefetch = 0 : i64, scratch_operands = 1 : i64, tpu.core_type = #tpu.core_type<tc>, window_params = [{transform_indices = @transform_0, window_bounds = array<i64: 16, 512>}, {transform_indices = @transform_1, window_bounds = array<i64: 512, 256>}, {pipeline_mode = #tpu.pipeline_mode<synchronous>, transform_indices = @transform_2, window_bounds = array<i64: 1, 256>}, {transform_indices = @transform_3, window_bounds = array<i64: 16, 256>}, {pipeline_mode = #tpu.pipeline_mode<synchronous>, transform_indices = @transform_4, window_bounds = array<i64: 1, 256>}, {pipeline_mode = #tpu.pipeline_mode<synchronous>, transform_indices = @transform_5, window_bounds = array<i64: 1, 256>}, {transform_indices = @transform_6, window_bounds = array<i64: 16, 256>}]} {
    %c0_i32 = arith.constant 0 : i32
    %0 = arith.cmpi eq, %arg1, %c0_i32 : i32
    %1 = arith.extui %0 : i1 to i32
    %c0_i32_0 = arith.constant 0 : i32
    %2 = arith.cmpi ne, %1, %c0_i32_0 : i32
    scf.if %2 {
      %cst_9 = arith.constant 0.000000e+00 : f32
      %13 = vector.broadcast %cst_9 : f32 to vector<16x256xf32>
      %c0_10 = arith.constant 0 : index
      %c0_11 = arith.constant 0 : index
      %14 = vector.load %arg9[%c0_10, %c0_11] : memref<16x256xf32, #tpu.memory_space<vmem>>, vector<16x256xf32>
      tpu.vector_store %arg9[%c0_10, %c0_11], %13 {strides = array<i32>} : memref<16x256xf32, #tpu.memory_space<vmem>>, vector<16x256xf32>,
    } else {
    }
    %c0 = arith.constant 0 : index
    %c0_1 = arith.constant 0 : index
    %3 = vector.load %arg9[%c0, %c0_1] : memref<16x256xf32, #tpu.memory_space<vmem>>, vector<16x256xf32>
    %c0_2 = arith.constant 0 : index
    %c0_3 = arith.constant 0 : index
    %4 = vector.load %arg2[%c0_2, %c0_3] : memref<16x512xf32, #tpu.memory_space<vmem>>, vector<16x512xf32>
    %5 = arith.truncf %4 : vector<16x512xf32> to vector<16x512xbf16>
    %c0_4 = arith.constant 0 : index
    %c0_5 = arith.constant 0 : index
    %6 = vector.load %arg3[%c0_4, %c0_5] : memref<512x256xbf16, #tpu.memory_space<vmem>>, vector<512x256xbf16>
    %cst = arith.constant dense<0.000000e+00> : vector<16x256xf32>
    %7 = tpu.matmul %5, %6, %cst {dimension_numbers = #tpu.dot_dimension_numbers<[1], [0], [0], [1], [0, 0, 1, 1], [], []>} : vector<16x512xbf16>, vector<512x256xbf16>, vector<16x256xf32> -> vector<16x256xf32>
    %8 = arith.addf %3, %7 : vector<16x256xf32>
    %c0_6 = arith.constant 0 : index
    %c0_7 = arith.constant 0 : index
    %9 = vector.load %arg9[%c0_6, %c0_7] : memref<16x256xf32, #tpu.memory_space<vmem>>, vector<16x256xf32>
    tpu.vector_store %arg9[%c0_6, %c0_7], %8 {strides = array<i32>} : memref<16x256xf32, #tpu.memory_space<vmem>>, vector<16x256xf32>,
    %c1_i32 = arith.constant 1 : i32
    %10 = arith.cmpi eq, %arg1, %c1_i32 : i32
    %11 = arith.extui %10 : i1 to i32
    %c0_i32_8 = arith.constant 0 : i32
    %12 = arith.cmpi ne, %11, %c0_i32_8 : i32
    scf.if %12 {
      %c0_9 = arith.constant 0 : index
      %c0_10 = arith.constant 0 : index
      %13 = vector.load %arg9[%c0_9, %c0_10] : memref<16x256xf32, #tpu.memory_space<vmem>>, vector<16x256xf32>
      %c0_11 = arith.constant 0 : index
      %c0_12 = arith.constant 0 : index
      %14 = vector.load %arg4[%c0_11, %c0_12] : memref<1x256xf32, #tpu.memory_space<vmem>>, vector<1x256xf32>
      %15 = vector.broadcast %14 : vector<1x256xf32> to vector<16x256xf32>
      %16 = arith.addf %13, %15 : vector<16x256xf32>
      %c0_13 = arith.constant 0 : index
      %c0_14 = arith.constant 0 : index
      %17 = vector.load %arg5[%c0_13, %c0_14] : memref<16x256xf32, #tpu.memory_space<vmem>>, vector<16x256xf32>
      %18 = arith.addf %16, %17 : vector<16x256xf32>
      %cst_15 = arith.constant dense<0.000000e+00> : vector<16xf32>
      %19 = vector.multi_reduction <add>, %18, %cst_15 [1] : vector<16x256xf32> to vector<16xf32>
      %20 = vector.shape_cast %19 : vector<16xf32> to vector<16x1xf32>
      %cst_16 = arith.constant 2.560000e+02 : f32
      %21 = vector.broadcast %cst_16 : f32 to vector<16x1xf32>
      %22 = arith.divf %20, %21 : vector<16x1xf32>
      %23 = vector.broadcast %22 : vector<16x1xf32> to vector<16x256xf32>
      %24 = arith.subf %18, %23 : vector<16x256xf32>
      %25 = arith.mulf %24, %24 : vector<16x256xf32>
      %cst_17 = arith.constant dense<0.000000e+00> : vector<16xf32>
      %26 = vector.multi_reduction <add>, %25, %cst_17 [1] : vector<16x256xf32> to vector<16xf32>
      %27 = vector.shape_cast %26 : vector<16xf32> to vector<16x1xf32>
      %cst_18 = arith.constant 2.560000e+02 : f32
      %28 = vector.broadcast %cst_18 : f32 to vector<16x1xf32>
      %29 = arith.divf %27, %28 : vector<16x1xf32>
      %cst_19 = arith.constant 9.99999996E-13 : f32
      %30 = vector.broadcast %cst_19 : f32 to vector<16x1xf32>
      %31 = arith.addf %29, %30 : vector<16x1xf32>
      %32 = math.rsqrt %31 : vector<16x1xf32>
      %33 = vector.broadcast %32 : vector<16x1xf32> to vector<16x256xf32>
      %34 = arith.mulf %24, %33 : vector<16x256xf32>
      %c0_20 = arith.constant 0 : index
      %c0_21 = arith.constant 0 : index
      %35 = vector.load %arg6[%c0_20, %c0_21] : memref<1x256xf32, #tpu.memory_space<vmem>>, vector<1x256xf32>
      %36 = vector.broadcast %35 : vector<1x256xf32> to vector<16x256xf32>
      %37 = arith.mulf %34, %36 : vector<16x256xf32>
      %c0_22 = arith.constant 0 : index
      %c0_23 = arith.constant 0 : index
      %38 = vector.load %arg7[%c0_22, %c0_23] : memref<1x256xf32, #tpu.memory_space<vmem>>, vector<1x256xf32>
      %39 = vector.broadcast %38 : vector<1x256xf32> to vector<16x256xf32>
      %40 = arith.addf %37, %39 : vector<16x256xf32>
      %c0_24 = arith.constant 0 : index
      %c0_25 = arith.constant 0 : index
      %41 = vector.load %arg8[%c0_24, %c0_25] : memref<16x256xf32, #tpu.memory_space<vmem>>, vector<16x256xf32>
      tpu.vector_store %arg8[%c0_24, %c0_25], %40 {strides = array<i32>} : memref<16x256xf32, #tpu.memory_space<vmem>>, vector<16x256xf32>,
    } else {
    }
    return
  }
  func.func @transform_0(%arg0: i32, %arg1: i32) -> (i32, i32) {
    %c0_i32 = arith.constant 0 : i32
    return %arg0, %arg1 : i32, i32
  }
  func.func @transform_1(%arg0: i32, %arg1: i32) -> (i32, i32) {
    %c0_i32 = arith.constant 0 : i32
    %c0_i32_0 = arith.constant 0 : i32
    return %arg1, %c0_i32 : i32, i32
  }
  func.func @transform_2(%arg0: i32, %arg1: i32) -> (i32, i32) {
    %c0_i32 = arith.constant 0 : i32
    %c0_i32_0 = arith.constant 0 : i32
    %c0_i32_1 = arith.constant 0 : i32
    return %c0_i32, %c0_i32_0 : i32, i32
  }
  func.func @transform_3(%arg0: i32, %arg1: i32) -> (i32, i32) {
    %c0_i32 = arith.constant 0 : i32
    %c0_i32_0 = arith.constant 0 : i32
    return %arg0, %c0_i32 : i32, i32
  }
  func.func @transform_4(%arg0: i32, %arg1: i32) -> (i32, i32) {
    %c0_i32 = arith.constant 0 : i32
    %c0_i32_0 = arith.constant 0 : i32
    %c0_i32_1 = arith.constant 0 : i32
    return %c0_i32, %c0_i32_0 : i32, i32
  }
  func.func @transform_5(%arg0: i32, %arg1: i32) -> (i32, i32) {
    %c0_i32 = arith.constant 0 : i32
    %c0_i32_0 = arith.constant 0 : i32
    %c0_i32_1 = arith.constant 0 : i32
    return %c0_i32, %c0_i32_0 : i32, i32
  }
  func.func @transform_6(%arg0: i32, %arg1: i32) -> (i32, i32) {
    %c0_i32 = arith.constant 0 : i32
    %c0_i32_0 = arith.constant 0 : i32
    return %arg0, %c0_i32 : i32, i32
  }
}

module attributes {stable_mosaic.version = 11 : i64} {
  func.func @_linear_act_kernel(%arg0: i32, %arg1: i32, %arg2: i32, %arg3: memref<16x256xf32, #tpu.memory_space<vmem>>, %arg4: memref<256x512xbf16, #tpu.memory_space<vmem>>, %arg5: memref<1x512xf32, #tpu.memory_space<vmem>>, %arg6: memref<16x512xf32, #tpu.memory_space<vmem>>, %arg7: memref<16x512xf32, #tpu.memory_space<vmem>>) attributes {dimension_semantics = [#tpu.dimension_semantics<parallel>, #tpu.dimension_semantics<parallel>, #tpu.dimension_semantics<arbitrary>], iteration_bounds = array<i64: 1, 2, 1>, scalar_prefetch = 0 : i64, scratch_operands = 1 : i64, tpu.core_type = #tpu.core_type<tc>, window_params = [{transform_indices = @transform_0, window_bounds = array<i64: 16, 256>}, {transform_indices = @transform_1, window_bounds = array<i64: 256, 512>}, {transform_indices = @transform_2, window_bounds = array<i64: 1, 512>}, {transform_indices = @transform_3, window_bounds = array<i64: 16, 512>}]} {
    %c0_i32 = arith.constant 0 : i32
    %0 = arith.cmpi eq, %arg2, %c0_i32 : i32
    %1 = arith.extui %0 : i1 to i32
    %c0_i32_0 = arith.constant 0 : i32
    %2 = arith.cmpi ne, %1, %c0_i32_0 : i32
    scf.if %2 {
      %cst_10 = arith.constant 0.000000e+00 : f32
      %13 = vector.broadcast %cst_10 : f32 to vector<16x512xf32>
      %c0_11 = arith.constant 0 : index
      %c0_12 = arith.constant 0 : index
      %14 = vector.load %arg7[%c0_11, %c0_12] : memref<16x512xf32, #tpu.memory_space<vmem>>, vector<16x512xf32>
      tpu.vector_store %arg7[%c0_11, %c0_12], %13 {strides = array<i32>} : memref<16x512xf32, #tpu.memory_space<vmem>>, vector<16x512xf32>,
    } else {
    }
    %c0 = arith.constant 0 : index
    %c0_1 = arith.constant 0 : index
    %3 = vector.load %arg7[%c0, %c0_1] : memref<16x512xf32, #tpu.memory_space<vmem>>, vector<16x512xf32>
    %c0_2 = arith.constant 0 : index
    %c0_3 = arith.constant 0 : index
    %4 = vector.load %arg3[%c0_2, %c0_3] : memref<16x256xf32, #tpu.memory_space<vmem>>, vector<16x256xf32>
    %5 = arith.truncf %4 : vector<16x256xf32> to vector<16x256xbf16>
    %c0_4 = arith.constant 0 : index
    %c0_5 = arith.constant 0 : index
    %6 = vector.load %arg4[%c0_4, %c0_5] : memref<256x512xbf16, #tpu.memory_space<vmem>>, vector<256x512xbf16>
    %cst = arith.constant dense<0.000000e+00> : vector<16x512xf32>
    %7 = tpu.matmul %5, %6, %cst {dimension_numbers = #tpu.dot_dimension_numbers<[1], [0], [0], [1], [0, 0, 1, 1], [], []>} : vector<16x256xbf16>, vector<256x512xbf16>, vector<16x512xf32> -> vector<16x512xf32>
    %8 = arith.addf %3, %7 : vector<16x512xf32>
    %c0_6 = arith.constant 0 : index
    %c0_7 = arith.constant 0 : index
    %9 = vector.load %arg7[%c0_6, %c0_7] : memref<16x512xf32, #tpu.memory_space<vmem>>, vector<16x512xf32>
    tpu.vector_store %arg7[%c0_6, %c0_7], %8 {strides = array<i32>} : memref<16x512xf32, #tpu.memory_space<vmem>>, vector<16x512xf32>,
    %c0_i32_8 = arith.constant 0 : i32
    %10 = arith.cmpi eq, %arg2, %c0_i32_8 : i32
    %11 = arith.extui %10 : i1 to i32
    %c0_i32_9 = arith.constant 0 : i32
    %12 = arith.cmpi ne, %11, %c0_i32_9 : i32
    scf.if %12 {
      %c0_10 = arith.constant 0 : index
      %c0_11 = arith.constant 0 : index
      %13 = vector.load %arg7[%c0_10, %c0_11] : memref<16x512xf32, #tpu.memory_space<vmem>>, vector<16x512xf32>
      %c0_12 = arith.constant 0 : index
      %c0_13 = arith.constant 0 : index
      %14 = vector.load %arg5[%c0_12, %c0_13] : memref<1x512xf32, #tpu.memory_space<vmem>>, vector<1x512xf32>
      %15 = vector.broadcast %14 : vector<1x512xf32> to vector<16x512xf32>
      %16 = arith.addf %13, %15 : vector<16x512xf32>
      %cst_14 = arith.constant 5.000000e-01 : f32
      %17 = vector.broadcast %cst_14 : f32 to vector<16x512xf32>
      %18 = arith.mulf %17, %16 : vector<16x512xf32>
      %cst_15 = arith.constant 4.471500e-02 : f32
      %19 = vector.broadcast %cst_15 : f32 to vector<16x512xf32>
      %20 = arith.mulf %19, %16 : vector<16x512xf32>
      %21 = arith.mulf %20, %16 : vector<16x512xf32>
      %22 = arith.mulf %21, %16 : vector<16x512xf32>
      %23 = arith.addf %16, %22 : vector<16x512xf32>
      %cst_16 = arith.constant 0.797884583 : f32
      %24 = vector.broadcast %cst_16 : f32 to vector<16x512xf32>
      %25 = arith.mulf %24, %23 : vector<16x512xf32>
      %26 = math.tanh %25 : vector<16x512xf32>
      %cst_17 = arith.constant 1.000000e+00 : f32
      %27 = vector.broadcast %cst_17 : f32 to vector<16x512xf32>
      %28 = arith.addf %27, %26 : vector<16x512xf32>
      %29 = arith.mulf %18, %28 : vector<16x512xf32>
      %c0_18 = arith.constant 0 : index
      %c0_19 = arith.constant 0 : index
      %30 = vector.load %arg6[%c0_18, %c0_19] : memref<16x512xf32, #tpu.memory_space<vmem>>, vector<16x512xf32>
      tpu.vector_store %arg6[%c0_18, %c0_19], %29 {strides = array<i32>} : memref<16x512xf32, #tpu.memory_space<vmem>>, vector<16x512xf32>,
    } else {
    }
    return
  }
  func.func @transform_0(%arg0: i32, %arg1: i32, %arg2: i32) -> (i32, i32) {
    %c0_i32 = arith.constant 0 : i32
    return %arg0, %arg2 : i32, i32
  }
  func.func @transform_1(%arg0: i32, %arg1: i32, %arg2: i32) -> (i32, i32) {
    %c0_i32 = arith.constant 0 : i32
    return %arg2, %arg1 : i32, i32
  }
  func.func @transform_2(%arg0: i32, %arg1: i32, %arg2: i32) -> (i32, i32) {
    %c0_i32 = arith.constant 0 : i32
    %c0_i32_0 = arith.constant 0 : i32
    return %c0_i32, %arg1 : i32, i32
  }
  func.func @transform_3(%arg0: i32, %arg1: i32, %arg2: i32) -> (i32, i32) {
    %c0_i32 = arith.constant 0 : i32
    return %arg0, %arg1 : i32, i32
  }
}

module attributes {stable_mosaic.version = 11 : i64} {
  func.func @_linear_noact_kernel(%arg0: i32, %arg1: i32, %arg2: i32, %arg3: memref<16x256xf32, #tpu.memory_space<vmem>>, %arg4: memref<256x384xbf16, #tpu.memory_space<vmem>>, %arg5: memref<1x384xf32, #tpu.memory_space<vmem>>, %arg6: memref<16x384xf32, #tpu.memory_space<vmem>>) attributes {dimension_semantics = [#tpu.dimension_semantics<parallel>, #tpu.dimension_semantics<parallel>, #tpu.dimension_semantics<arbitrary>], iteration_bounds = array<i64: 1, 2, 1>, scalar_prefetch = 0 : i64, scratch_operands = 0 : i64, tpu.core_type = #tpu.core_type<tc>, window_params = [{transform_indices = @transform_0, window_bounds = array<i64: 16, 256>}, {transform_indices = @transform_1, window_bounds = array<i64: 256, 384>}, {transform_indices = @transform_2, window_bounds = array<i64: 1, 384>}, {transform_indices = @transform_3, window_bounds = array<i64: 16, 384>}]} {
    %c0_i32 = arith.constant 0 : i32
    %0 = arith.cmpi eq, %arg2, %c0_i32 : i32
    %1 = arith.extui %0 : i1 to i32
    %c0_i32_0 = arith.constant 0 : i32
    %2 = arith.cmpi ne, %1, %c0_i32_0 : i32
    scf.if %2 {
      %cst_8 = arith.constant 0.000000e+00 : f32
      %10 = vector.broadcast %cst_8 : f32 to vector<16x384xf32>
      %c0_9 = arith.constant 0 : index
      %c0_10 = arith.constant 0 : index
      %11 = vector.load %arg5[%c0_9, %c0_10] : memref<1x384xf32, #tpu.memory_space<vmem>>, vector<1x384xf32>
      %12 = vector.broadcast %11 : vector<1x384xf32> to vector<16x384xf32>
      %13 = arith.addf %10, %12 : vector<16x384xf32>
      %c0_11 = arith.constant 0 : index
      %c0_12 = arith.constant 0 : index
      %14 = vector.load %arg6[%c0_11, %c0_12] : memref<16x384xf32, #tpu.memory_space<vmem>>, vector<16x384xf32>
      tpu.vector_store %arg6[%c0_11, %c0_12], %13 {strides = array<i32>} : memref<16x384xf32, #tpu.memory_space<vmem>>, vector<16x384xf32>,
    } else {
    }
    %c0 = arith.constant 0 : index
    %c0_1 = arith.constant 0 : index
    %3 = vector.load %arg6[%c0, %c0_1] : memref<16x384xf32, #tpu.memory_space<vmem>>, vector<16x384xf32>
    %c0_2 = arith.constant 0 : index
    %c0_3 = arith.constant 0 : index
    %4 = vector.load %arg3[%c0_2, %c0_3] : memref<16x256xf32, #tpu.memory_space<vmem>>, vector<16x256xf32>
    %5 = arith.truncf %4 : vector<16x256xf32> to vector<16x256xbf16>
    %c0_4 = arith.constant 0 : index
    %c0_5 = arith.constant 0 : index
    %6 = vector.load %arg4[%c0_4, %c0_5] : memref<256x384xbf16, #tpu.memory_space<vmem>>, vector<256x384xbf16>
    %cst = arith.constant dense<0.000000e+00> : vector<16x384xf32>
    %7 = tpu.matmul %5, %6, %cst {dimension_numbers = #tpu.dot_dimension_numbers<[1], [0], [0], [1], [0, 0, 1, 1], [], []>} : vector<16x256xbf16>, vector<256x384xbf16>, vector<16x384xf32> -> vector<16x384xf32>
    %8 = arith.addf %3, %7 : vector<16x384xf32>
    %c0_6 = arith.constant 0 : index
    %c0_7 = arith.constant 0 : index
    %9 = vector.load %arg6[%c0_6, %c0_7] : memref<16x384xf32, #tpu.memory_space<vmem>>, vector<16x384xf32>
    tpu.vector_store %arg6[%c0_6, %c0_7], %8 {strides = array<i32>} : memref<16x384xf32, #tpu.memory_space<vmem>>, vector<16x384xf32>,
    return
  }
  func.func @transform_0(%arg0: i32, %arg1: i32, %arg2: i32) -> (i32, i32) {
    %c0_i32 = arith.constant 0 : i32
    return %arg0, %arg2 : i32, i32
  }
  func.func @transform_1(%arg0: i32, %arg1: i32, %arg2: i32) -> (i32, i32) {
    %c0_i32 = arith.constant 0 : i32
    return %arg2, %arg1 : i32, i32
  }
  func.func @transform_2(%arg0: i32, %arg1: i32, %arg2: i32) -> (i32, i32) {
    %c0_i32 = arith.constant 0 : i32
    %c0_i32_0 = arith.constant 0 : i32
    return %c0_i32, %arg1 : i32, i32
  }
  func.func @transform_3(%arg0: i32, %arg1: i32, %arg2: i32) -> (i32, i32) {
    %c0_i32 = arith.constant 0 : i32
    return %arg0, %arg1 : i32, i32
  }
}

module attributes {stable_mosaic.version = 11 : i64} {
  func.func @_linear_act_kernel(%arg0: i32, %arg1: i32, %arg2: i32, %arg3: memref<2x256xf32, #tpu.memory_space<vmem>>, %arg4: memref<256x256xbf16, #tpu.memory_space<vmem>>, %arg5: memref<1x256xf32, #tpu.memory_space<vmem>>, %arg6: memref<2x256xf32, #tpu.memory_space<vmem>>, %arg7: memref<2x256xf32, #tpu.memory_space<vmem>>) attributes {dimension_semantics = [#tpu.dimension_semantics<parallel>, #tpu.dimension_semantics<parallel>, #tpu.dimension_semantics<arbitrary>], iteration_bounds = array<i64: 1, 1, 1>, scalar_prefetch = 0 : i64, scratch_operands = 1 : i64, tpu.core_type = #tpu.core_type<tc>, window_params = [{transform_indices = @transform_0, window_bounds = array<i64: 2, 256>}, {transform_indices = @transform_1, window_bounds = array<i64: 256, 256>}, {transform_indices = @transform_2, window_bounds = array<i64: 1, 256>}, {transform_indices = @transform_3, window_bounds = array<i64: 2, 256>}]} {
    %c0_i32 = arith.constant 0 : i32
    %0 = arith.cmpi eq, %arg2, %c0_i32 : i32
    %1 = arith.extui %0 : i1 to i32
    %c0_i32_0 = arith.constant 0 : i32
    %2 = arith.cmpi ne, %1, %c0_i32_0 : i32
    scf.if %2 {
      %cst_10 = arith.constant 0.000000e+00 : f32
      %13 = vector.broadcast %cst_10 : f32 to vector<2x256xf32>
      %c0_11 = arith.constant 0 : index
      %c0_12 = arith.constant 0 : index
      %14 = vector.load %arg7[%c0_11, %c0_12] : memref<2x256xf32, #tpu.memory_space<vmem>>, vector<2x256xf32>
      tpu.vector_store %arg7[%c0_11, %c0_12], %13 {strides = array<i32>} : memref<2x256xf32, #tpu.memory_space<vmem>>, vector<2x256xf32>,
    } else {
    }
    %c0 = arith.constant 0 : index
    %c0_1 = arith.constant 0 : index
    %3 = vector.load %arg7[%c0, %c0_1] : memref<2x256xf32, #tpu.memory_space<vmem>>, vector<2x256xf32>
    %c0_2 = arith.constant 0 : index
    %c0_3 = arith.constant 0 : index
    %4 = vector.load %arg3[%c0_2, %c0_3] : memref<2x256xf32, #tpu.memory_space<vmem>>, vector<2x256xf32>
    %5 = arith.truncf %4 : vector<2x256xf32> to vector<2x256xbf16>
    %c0_4 = arith.constant 0 : index
    %c0_5 = arith.constant 0 : index
    %6 = vector.load %arg4[%c0_4, %c0_5] : memref<256x256xbf16, #tpu.memory_space<vmem>>, vector<256x256xbf16>
    %cst = arith.constant dense<0.000000e+00> : vector<2x256xf32>
    %7 = tpu.matmul %5, %6, %cst {dimension_numbers = #tpu.dot_dimension_numbers<[1], [0], [0], [1], [0, 0, 1, 1], [], []>} : vector<2x256xbf16>, vector<256x256xbf16>, vector<2x256xf32> -> vector<2x256xf32>
    %8 = arith.addf %3, %7 : vector<2x256xf32>
    %c0_6 = arith.constant 0 : index
    %c0_7 = arith.constant 0 : index
    %9 = vector.load %arg7[%c0_6, %c0_7] : memref<2x256xf32, #tpu.memory_space<vmem>>, vector<2x256xf32>
    tpu.vector_store %arg7[%c0_6, %c0_7], %8 {strides = array<i32>} : memref<2x256xf32, #tpu.memory_space<vmem>>, vector<2x256xf32>,
    %c0_i32_8 = arith.constant 0 : i32
    %10 = arith.cmpi eq, %arg2, %c0_i32_8 : i32
    %11 = arith.extui %10 : i1 to i32
    %c0_i32_9 = arith.constant 0 : i32
    %12 = arith.cmpi ne, %11, %c0_i32_9 : i32
    scf.if %12 {
      %c0_10 = arith.constant 0 : index
      %c0_11 = arith.constant 0 : index
      %13 = vector.load %arg7[%c0_10, %c0_11] : memref<2x256xf32, #tpu.memory_space<vmem>>, vector<2x256xf32>
      %c0_12 = arith.constant 0 : index
      %c0_13 = arith.constant 0 : index
      %14 = vector.load %arg5[%c0_12, %c0_13] : memref<1x256xf32, #tpu.memory_space<vmem>>, vector<1x256xf32>
      %15 = vector.broadcast %14 : vector<1x256xf32> to vector<2x256xf32>
      %16 = arith.addf %13, %15 : vector<2x256xf32>
      %17 = math.tanh %16 : vector<2x256xf32>
      %c0_14 = arith.constant 0 : index
      %c0_15 = arith.constant 0 : index
      %18 = vector.load %arg6[%c0_14, %c0_15] : memref<2x256xf32, #tpu.memory_space<vmem>>, vector<2x256xf32>
      tpu.vector_store %arg6[%c0_14, %c0_15], %17 {strides = array<i32>} : memref<2x256xf32, #tpu.memory_space<vmem>>, vector<2x256xf32>,
    } else {
    }
    return
  }
  func.func @transform_0(%arg0: i32, %arg1: i32, %arg2: i32) -> (i32, i32) {
    %c0_i32 = arith.constant 0 : i32
    return %arg0, %arg2 : i32, i32
  }
  func.func @transform_1(%arg0: i32, %arg1: i32, %arg2: i32) -> (i32, i32) {
    %c0_i32 = arith.constant 0 : i32
    return %arg2, %arg1 : i32, i32
  }
  func.func @transform_2(%arg0: i32, %arg1: i32, %arg2: i32) -> (i32, i32) {
    %c0_i32 = arith.constant 0 : i32
    %c0_i32_0 = arith.constant 0 : i32
    return %c0_i32, %arg1 : i32, i32
  }
  func.func @transform_3(%arg0: i32, %arg1: i32, %arg2: i32) -> (i32, i32) {
    %c0_i32 = arith.constant 0 : i32
    return %arg0, %arg1 : i32, i32
  }
}

</mosaic_0001>

<llo_original>
// kernel: transformer_block_forward.13
$region0: #{transformer_block_forward.13}
  #allocation0 [shape = 'u32[]', space=smem, size = 0x4, offset = 0x4, fixed_abs, tag = 'smem constant byte address 0x4 - core index']
  #allocation1 [shape = 'u32[72,128]{1,0:T(1,128)}', space=vmem, size = 0x9000, scoped, tag = 'internal scratch']
  #allocation2 [shape = 'f32[2,256]{1,0:T(2,128)}', space=vmem, size = 0x800, scoped, tag = 'scratch operand']
  %s0 = inlined_call_operand.vmem [shape: f32[2,256], index: 0, kind: input, shape index: {}]
  %s1 = inlined_call_operand.hbm [shape: bf16[256,256], index: 1, kind: input, shape index: {}]
  %s2 = inlined_call_operand.hbm [shape: f32[1,256], index: 2, kind: input, shape index: {}]
  %s3 = inlined_call_operand.vmem [shape: f32[2,256], index: 3, kind: output, shape index: {}]
  %s4 = sld [smem:[#allocation0]]
  $region38: #{transformer_block_forward.13} parent=0
    _
  %s6 = ssub.s32 1, %s4
  %s7 = scalar_select 0, %s6, %s4
  $region1: #{transformer_block_forward.13} parent=0
    #allocation3 [shape = 'u8[131072]{0}', space=vmem, size = 0x20000, scoped, tag = 'input window, operand 1, single buffered']
    #allocation4 [shape = 's32[1]{0}', space=sflag, size = 0x4, scoped, tag = 'scoped memory for transformer_block_forward.13']
    #allocation5 [shape = 'u8[1024]{0}', space=vmem, size = 0x400, scoped, tag = 'input window, operand 2, single buffered']
    #allocation6 [shape = 's32[1]{0}', space=sflag, size = 0x4, scoped, tag = 'scoped memory for transformer_block_forward.13']
    %8 = vsyncpa [#allocation4], 0
    %9 = vsyncpa [#allocation6], 0
    // Predicated region
    $region2: #{transformer_block_forward.13} parent=1 // pred_check
      _
    $region3: #{transformer_block_forward.13} parent=1 // pred_check_branch
      %11 = sbr.rel (0) target = $region5
    $region4: #{transformer_block_forward.13} parent=1 // pred_region
      _
    $region5: #{transformer_block_forward.13} parent=1 // pred_fallthru
      _
    // Predicated region
    $region6: #{transformer_block_forward.13} parent=1 // pred_check
      _
    $region7: #{transformer_block_forward.13} parent=1 // pred_check_branch
      %13 = sbr.rel (0) target = $region9
    $region8: #{transformer_block_forward.13} parent=1 // pred_region
      %15 = vsyncadd [#allocation4], 0
      %s16 = sshll.u32 %s1, 4
      %s17 = int_to_ptr.hbm [resolvable:$true] %s16
      %s18 = sshll.u32 [#allocation3], 4
      %s19 = int_to_ptr.vmem [resolvable:$true] %s18
      %24 = dma.hbm_to_vmem [thread:$0]  %s17, 4096, %s19, [#allocation4], 128, 128, 8
    $region9: #{transformer_block_forward.13} parent=1 // pred_fallthru
      _
    // Predicated region
    $region10: #{transformer_block_forward.13} parent=1 // pred_check
      _
    $region11: #{transformer_block_forward.13} parent=1 // pred_check_branch
      %26 = sbr.rel (0) target = $region13
    $region12: #{transformer_block_forward.13} parent=1 // pred_region
      %28 = vsyncadd [#allocation6], 0
      %s30 = sshll.u32 %s2, 4
      %s31 = int_to_ptr.hbm [resolvable:$true] %s30
      %s32 = sshll.u32 [#allocation5], 4
      %s33 = int_to_ptr.vmem [resolvable:$true] %s32
      %35 = dma.hbm_to_vmem [thread:$0]  %s31, 32, %s33, [#allocation6]
    $region13: #{transformer_block_forward.13} parent=1 // pred_fallthru
      _
    // Predicated region
    $region14: #{transformer_block_forward.13} parent=1 // pred_check
      _
    $region15: #{transformer_block_forward.13} parent=1 // pred_check_branch
      %37 = sbr.rel (0) target = $region17
    $region16: #{transformer_block_forward.13} parent=1 // pred_region
      %39 = dma.done [#allocation4], 4096
    $region17: #{transformer_block_forward.13} parent=1 // pred_fallthru
      _
    // Predicated region
    $region18: #{transformer_block_forward.13} parent=1 // pred_check
      _
    $region19: #{transformer_block_forward.13} parent=1 // pred_check_branch
      %41 = sbr.rel (0) target = $region21
    $region20: #{transformer_block_forward.13} parent=1 // pred_region
      %43 = dma.done [#allocation6], 32
    $region21: #{transformer_block_forward.13} parent=1 // pred_fallthru
      _
    %p44 = scmp.eq.s32.totalorder 0, 0
    // Predicated region
    $region22: #{transformer_block_forward.13} parent=1 // pred_check
      %p45 = pneg %p44
    $region23: #{transformer_block_forward.13} parent=1 // pred_check_branch
      %47 = sbr.rel (%p45) target = $region25
    $region24: #{transformer_block_forward.13} parent=1 // pred_region
      %48 = vst [vmem:[#allocation2] sm:$0xf] 0.0
    $region25: #{transformer_block_forward.13} parent=1 // pred_fallthru
      _
    %v49 = vld [vmem:[#allocation2] sm:$0xf]
    %v50 = vld [vmem:[%s0] sm:$0xf]
    %52 = vst [vmem:[#allocation1] ss:$4 sm:$0xff] %v50
    %v53 = vld.sshfl [vmem:[#allocation1] sm:$0xff pattern:$0x73625140]
    %v54 = vld.sshfl [vmem:[#allocation1 + $0x8] sm:$0xff pattern:$0x73625140]
    %v57 = vpack.c.bf16 %v53, %v53
    %v58 = vpack.c.bf16 %v54, %v54
    %v59 = vld [vmem:[#allocation3] sm:$0xff]
    %v60 = vld [vmem:[#allocation3 + $0x8] sm:$0xff]
    %v61 = vld [vmem:[#allocation3 + $0x10] sm:$0xff]
    %v62 = vld [vmem:[#allocation3 + $0x18] sm:$0xff]
    %v63 = vld [vmem:[#allocation3 + $0x20] sm:$0xff]
    %v64 = vld [vmem:[#allocation3 + $0x28] sm:$0xff]
    %v65 = vld [vmem:[#allocation3 + $0x30] sm:$0xff]
    %v66 = vld [vmem:[#allocation3 + $0x38] sm:$0xff]
    %v67 = vld [vmem:[#allocation3 + $0x40] sm:$0xff]
    %v68 = vld [vmem:[#allocation3 + $0x48] sm:$0xff]
    %v69 = vld [vmem:[#allocation3 + $0x50] sm:$0xff]
    %v70 = vld [vmem:[#allocation3 + $0x58] sm:$0xff]
    %v71 = vld [vmem:[#allocation3 + $0x60] sm:$0xff]
    %v72 = vld [vmem:[#allocation3 + $0x68] sm:$0xff]
    %v73 = vld [vmem:[#allocation3 + $0x70] sm:$0xff]
    %v74 = vld [vmem:[#allocation3 + $0x78] sm:$0xff]
    %v75 = vld [vmem:[#allocation3 + $0x80] sm:$0xff]
    %v76 = vld [vmem:[#allocation3 + $0x88] sm:$0xff]
    %v77 = vld [vmem:[#allocation3 + $0x90] sm:$0xff]
    %v78 = vld [vmem:[#allocation3 + $0x98] sm:$0xff]
    %v79 = vld [vmem:[#allocation3 + $0xa0] sm:$0xff]
    %v80 = vld [vmem:[#allocation3 + $0xa8] sm:$0xff]
    %v81 = vld [vmem:[#allocation3 + $0xb0] sm:$0xff]
    %v82 = vld [vmem:[#allocation3 + $0xb8] sm:$0xff]
    %v83 = vld [vmem:[#allocation3 + $0xc0] sm:$0xff]
    %v84 = vld [vmem:[#allocation3 + $0xc8] sm:$0xff]
    %v85 = vld [vmem:[#allocation3 + $0xd0] sm:$0xff]
    %v86 = vld [vmem:[#allocation3 + $0xd8] sm:$0xff]
    %v87 = vld [vmem:[#allocation3 + $0xe0] sm:$0xff]
    %v88 = vld [vmem:[#allocation3 + $0xe8] sm:$0xff]
    %v89 = vld [vmem:[#allocation3 + $0xf0] sm:$0xff]
    %v90 = vld [vmem:[#allocation3 + $0xf8] sm:$0xff]
    %v123 = vunpack.c.l.b16 %v59
    %v124 = vunpack.c.h.b16 %v59
    %v125 = vunpack.c.l.b16 %v60
    %v126 = vunpack.c.h.b16 %v60
    %v127 = vunpack.c.l.b16 %v61
    %v128 = vunpack.c.h.b16 %v61
    %v129 = vunpack.c.l.b16 %v62
    %v130 = vunpack.c.h.b16 %v62
    %v131 = vunpack.c.l.b16 %v63
    %v132 = vunpack.c.h.b16 %v63
    %v133 = vunpack.c.l.b16 %v64
    %v134 = vunpack.c.h.b16 %v64
    %v135 = vunpack.c.l.b16 %v65
    %v136 = vunpack.c.h.b16 %v65
    %v137 = vunpack.c.l.b16 %v66
    %v138 = vunpack.c.h.b16 %v66
    %v139 = vunpack.c.l.b16 %v67
    %v140 = vunpack.c.h.b16 %v67
    %v141 = vunpack.c.l.b16 %v68
    %v142 = vunpack.c.h.b16 %v68
    %v143 = vunpack.c.l.b16 %v69
    %v144 = vunpack.c.h.b16 %v69
    %v145 = vunpack.c.l.b16 %v70
    %v146 = vunpack.c.h.b16 %v70
    %v147 = vunpack.c.l.b16 %v71
    %v148 = vunpack.c.h.b16 %v71
    %v149 = vunpack.c.l.b16 %v72
    %v150 = vunpack.c.h.b16 %v72
    %v151 = vunpack.c.l.b16 %v73
    %v152 = vunpack.c.h.b16 %v73
    %v153 = vunpack.c.l.b16 %v74
    %v154 = vunpack.c.h.b16 %v74
    %v155 = vunpack.c.l.b16 %v75
    %v156 = vunpack.c.h.b16 %v75
    %v157 = vunpack.c.l.b16 %v76
    %v158 = vunpack.c.h.b16 %v76
    %v159 = vunpack.c.l.b16 %v77
    %v160 = vunpack.c.h.b16 %v77
    %v161 = vunpack.c.l.b16 %v78
    %v162 = vunpack.c.h.b16 %v78
    %v163 = vunpack.c.l.b16 %v79
    %v164 = vunpack.c.h.b16 %v79
    %v165 = vunpack.c.l.b16 %v80
    %v166 = vunpack.c.h.b16 %v80
    %v167 = vunpack.c.l.b16 %v81
    %v168 = vunpack.c.h.b16 %v81
    %v169 = vunpack.c.l.b16 %v82
    %v170 = vunpack.c.h.b16 %v82
    %v171 = vunpack.c.l.b16 %v83
    %v172 = vunpack.c.h.b16 %v83
    %v173 = vunpack.c.l.b16 %v84
    %v174 = vunpack.c.h.b16 %v84
    %v175 = vunpack.c.l.b16 %v85
    %v176 = vunpack.c.h.b16 %v85
    %v177 = vunpack.c.l.b16 %v86
    %v178 = vunpack.c.h.b16 %v86
    %v179 = vunpack.c.l.b16 %v87
    %v180 = vunpack.c.h.b16 %v87
    %v181 = vunpack.c.l.b16 %v88
    %v182 = vunpack.c.h.b16 %v88
    %v183 = vunpack.c.l.b16 %v89
    %v184 = vunpack.c.h.b16 %v89
    %v185 = vunpack.c.l.b16 %v90
    %v186 = vunpack.c.h.b16 %v90
    %v187 = vpack.c.b16 %v125, %v123
    %v188 = vpack.c.b16 %v126, %v124
    %v189 = vpack.c.b16 %v129, %v127
    %v190 = vpack.c.b16 %v130, %v128
    %v191 = vpack.c.b16 %v133, %v131
    %v192 = vpack.c.b16 %v134, %v132
    %v193 = vpack.c.b16 %v137, %v135
    %v194 = vpack.c.b16 %v138, %v136
    %v195 = vpack.c.b16 %v141, %v139
    %v196 = vpack.c.b16 %v142, %v140
    %v197 = vpack.c.b16 %v145, %v143
    %v198 = vpack.c.b16 %v146, %v144
    %v199 = vpack.c.b16 %v149, %v147
    %v200 = vpack.c.b16 %v150, %v148
    %v201 = vpack.c.b16 %v153, %v151
    %v202 = vpack.c.b16 %v154, %v152
    %v203 = vpack.c.b16 %v157, %v155
    %v204 = vpack.c.b16 %v158, %v156
    %v205 = vpack.c.b16 %v161, %v159
    %v206 = vpack.c.b16 %v162, %v160
    %v207 = vpack.c.b16 %v165, %v163
    %v208 = vpack.c.b16 %v166, %v164
    %v209 = vpack.c.b16 %v169, %v167
    %v210 = vpack.c.b16 %v170, %v168
    %v211 = vpack.c.b16 %v173, %v171
    %v212 = vpack.c.b16 %v174, %v172
    %v213 = vpack.c.b16 %v177, %v175
    %v214 = vpack.c.b16 %v178, %v176
    %v215 = vpack.c.b16 %v181, %v179
    %v216 = vpack.c.b16 %v182, %v180
    %v217 = vpack.c.b16 %v185, %v183
    %v218 = vpack.c.b16 %v186, %v184
    %251 = vmatpush.bf16.msra.mxu0 %v201
    %252 = vmatpush.bf16.msra.mxu0 %v199
    %253 = vmatpush.bf16.msra.mxu0 %v197
    %254 = vmatpush.bf16.msra.mxu0 %v195
    %255 = vmatpush.bf16.msra.mxu0 %v193
    %256 = vmatpush.bf16.msra.mxu0 %v191
    %257 = vmatpush.bf16.msra.mxu0 %v189
    %258 = vmatpush.bf16.msra.mxu0 %v187
    %259 = vmatmul.bf16.gmra.mxu0 %v57
    %v260 = vpop.f32.mrf.mxu0
    %v261 = vadd.f32 0.0, %v260
    %v262 = vpop.f32.mrf.mxu0
    %263 = vdwg.mxu0
    %264 = vmatpush.bf16.msra.mxu0 %v217
    %265 = vmatpush.bf16.msra.mxu0 %v215
    %266 = vmatpush.bf16.msra.mxu0 %v213
    %267 = vmatpush.bf16.msra.mxu0 %v211
    %268 = vmatpush.bf16.msra.mxu0 %v209
    %269 = vmatpush.bf16.msra.mxu0 %v207
    %270 = vmatpush.bf16.msra.mxu0 %v205
    %271 = vmatpush.bf16.msra.mxu0 %v203
    %272 = vmatmul.bf16.gmra.mxu0 %v58
    %v273 = vpop.f32.mrf.mxu0
    %v274 = vadd.f32 %v261, %v273
    %v275 = vpop.f32.mrf.mxu0
    %276 = vdwg.mxu0
    %277 = vmatpush.bf16.msra.mxu0 %v202
    %278 = vmatpush.bf16.msra.mxu0 %v200
    %279 = vmatpush.bf16.msra.mxu0 %v198
    %280 = vmatpush.bf16.msra.mxu0 %v196
    %281 = vmatpush.bf16.msra.mxu0 %v194
    %282 = vmatpush.bf16.msra.mxu0 %v192
    %283 = vmatpush.bf16.msra.mxu0 %v190
    %284 = vmatpush.bf16.msra.mxu0 %v188
    %285 = vmatmul.bf16.gmra.mxu0 %v57
    %v286 = vpop.f32.mrf.mxu0
    %v287 = vadd.f32 0.0, %v286
    %v288 = vpop.f32.mrf.mxu0
    %289 = vdwg.mxu0
    %290 = vmatpush.bf16.msra.mxu0 %v218
    %291 = vmatpush.bf16.msra.mxu0 %v216
    %292 = vmatpush.bf16.msra.mxu0 %v214
    %293 = vmatpush.bf16.msra.mxu0 %v212
    %294 = vmatpush.bf16.msra.mxu0 %v210
    %295 = vmatpush.bf16.msra.mxu0 %v208
    %296 = vmatpush.bf16.msra.mxu0 %v206
    %297 = vmatpush.bf16.msra.mxu0 %v204
    %298 = vmatmul.bf16.gmra.mxu0 %v58
    %v299 = vpop.f32.mrf.mxu0
    %v300 = vadd.f32 %v287, %v299
    %v301 = vpop.f32.mrf.mxu0
    %302 = vdwg.mxu0
    %v305 = vrot.slane %v300, 6
    %vm306 = vcmask 1041408
    %v307 = vsel %vm306, %v274, %v305
    %v309 = vadd.f32 %v49, %v307
    %310 = vst [vmem:[#allocation2] sm:$0xf] %v309
    // Predicated region
    $region26: #{transformer_block_forward.13} parent=1 // pred_check
      %p311 = pneg %p44
    $region27: #{transformer_block_forward.13} parent=1 // pred_check_branch
      %313 = sbr.rel (%p311) target = $region29
    $region28: #{transformer_block_forward.13} parent=1 // pred_region
      %v314 = vld [vmem:[#allocation2] sm:$0xf]
      %v315 = vld [vmem:[#allocation5] sm:$0x3]
      %v317 = vperm.slane %v315, 0
      %v318 = vperm.slane %v315, 1
      %v319 = vrot.slane %v318, 6
      %v320 = vsel %vm306, %v317, %v319
      %v322 = vadd.f32 %v314, %v320
      %vm323 = vcmp.ge.f32.partialorder %v322, 0.0
      %v324 = vmul.f32 %v322, 0.01
      %v325 = vsel %vm323, %v322, %v324
      %326 = vst [vmem:[%s3] sm:$0xf] %v325
    $region29: #{transformer_block_forward.13} parent=1 // pred_fallthru
      _
    // Predicated region
    $region30: #{transformer_block_forward.13} parent=1 // pred_check
      _
    $region31: #{transformer_block_forward.13} parent=1 // pred_check_branch
      %328 = sbr.rel (0) target = $region33
    $region32: #{transformer_block_forward.13} parent=1 // pred_region
      _
    $region33: #{transformer_block_forward.13} parent=1 // pred_fallthru
      _
    // Predicated region
    $region34: #{transformer_block_forward.13} parent=1 // pred_check
      _
    $region35: #{transformer_block_forward.13} parent=1 // pred_check_branch
      %330 = sbr.rel (0) target = $region37
    $region36: #{transformer_block_forward.13} parent=1 // pred_region
      _
    $region37: #{transformer_block_forward.13} parent=1 // pred_fallthru
      _
    %331 = vsyncpa [#allocation4], 1
    %332 = vsyncpa [#allocation6], 1

// kernel: transformer_block_forward.15
$region0: #{transformer_block_forward.15}
  #allocation0 [shape = 'u32[]', space=smem, size = 0x4, offset = 0x4, fixed_abs, tag = 'smem constant byte address 0x4 - core index']
  #allocation1 [shape = 'u32[72,128]{1,0:T(1,128)}', space=vmem, size = 0x9000, scoped, tag = 'internal scratch']
  %s0 = inlined_call_operand.vmem [shape: f32[16,256], index: 0, kind: input, shape index: {}]
  %s1 = inlined_call_operand.hbm [shape: bf16[256,768], index: 1, kind: input, shape index: {}]
  %s2 = inlined_call_operand.hbm [shape: f32[1,768], index: 2, kind: input, shape index: {}]
  %s3 = inlined_call_operand.vmem [shape: f32[16,768], index: 3, kind: output, shape index: {}]
  %s4 = sld [smem:[#allocation0]]
  $region76: #{transformer_block_forward.15} parent=0
    _
  %s6 = ssub.s32 1, %s4
  %s7 = scalar_select 0, %s6, %s4
  $region1: #{transformer_block_forward.15} parent=0
    #allocation2 [shape = 'u8[393216]{0}', space=vmem, size = 0x60000, scoped, tag = 'input window, operand 1']
    #allocation3 [shape = 's32[2]{0}', space=sflag, size = 0x8, scoped, tag = 'scoped memory for transformer_block_forward.15']
    #allocation4 [shape = 'u8[3072]{0}', space=vmem, size = 0xc00, scoped, tag = 'input window, operand 2']
    #allocation5 [shape = 's32[2]{0}', space=sflag, size = 0x8, scoped, tag = 'scoped memory for transformer_block_forward.15']
    #allocation6 [shape = 'u8[49152]{0}', space=vmem, size = 0xc000, scoped, tag = 'output window, operand 0']
    %8 = vsyncpa [#allocation3], 0
    %s9 = scalar_lea.sflag [#allocation3], 1
    %10 = vsyncpa %s9, 0
    %11 = vsyncpa [#allocation5], 0
    %s12 = scalar_lea.sflag [#allocation5], 1
    %13 = vsyncpa %s12, 0
    loop: start=0, step=1, limit=4
    $region2: #{transformer_block_forward.15} parent=1 // loop_pre_header
      _
    $region3: #{transformer_block_forward.15} parent=1 // loop_header
      %s15 = sphi 0, %s19
      %p16 = scmp.ge.s32.totalorder %s15, 4
      %s22 = sphi 0, %s41
      %s23 = sphi 0, %s37
      %s24 = sphi 0, %s33
      %s25 = sphi 0, %s22
      %s26 = sphi 0, %s23
      %s27 = sphi 0, %s24
      %s28 = sphi 0, %s25
      %s29 = sphi 0, %s26
      %s30 = sphi 0, %s27
      %s46 = sphi 0, %s48
      %s49 = sphi 0, %s46
      %s50 = sphi 0, %s49
      %s66 = sphi 0, %s50
      %s74 = sphi 0, %s76
      %s77 = sphi 0, %s74
      %s78 = sphi 0, %s77
      %s94 = sphi 0, %s78
      %s100 = sphi 0, %s102
      %s103 = sphi 0, %s100
      %s104 = sphi 0, %s103
      %s120 = sphi 0, %s104
      %s128 = sphi 0, %s130
      %s131 = sphi 0, %s128
      %s132 = sphi 0, %s131
      %s148 = sphi 0, %s132
    $region4: #{transformer_block_forward.15} parent=1 // loop_header_branch
      %18 = sbr.rel (%p16) target = $region8
    $region5: #{transformer_block_forward.15} parent=1 // loop_body
      %s20 = ssub.s32 %s15, 1
      %s21 = ssub.s32 %s15, 2
      %s31 = sadd.s32 1, %s24
      %p32 = scmp.ge.s32.totalorder %s31, 1
      %s33 = scalar_select %p32, 0, %s31
      %s34 = sadd.s32 1, %s23
      %s35 = scalar_select %p32, %s34, %s23
      %p36 = scmp.ge.s32.totalorder %s35, 2
      %s37 = scalar_select %p36, 0, %s35
      %s38 = sadd.s32 1, %s22
      %s39 = scalar_select %p36, %s38, %s22
      %p40 = scmp.ge.s32.totalorder %s39, 1
      %s41 = scalar_select %p40, 0, %s39
      %s42 = ssub.s32 %s22, %s41
      %s43 = ssub.s32 %s24, %s33
      %s44 = sor.u32 %s42, %s43
      %p45 = scmp.eq.s32.totalorder %s44, 0
      %s47 = sadd.s32 %s46, 1
      %s48 = scalar_select %p45, %s46, %s47
      %p51 = pneg %p45
      %p52 = scmp.eq.s32.totalorder %s15, 1
      %p53 = por %p51, %p52
      %p54 = scmp.ne.s32.totalorder %s46, %s49
      %p55 = scmp.eq.s32.totalorder %s15, 0
      %p56 = por %p54, %p55
      %p57 = scmp.ne.s32.totalorder %s46, %s49
      %p58 = scmp.eq.s32.totalorder %s20, 1
      %p59 = por %p57, %p58
      %p60 = scmp.ne.s32.totalorder %s49, %s50
      %p61 = scmp.eq.s32.totalorder %s20, 0
      %p62 = por %p60, %p61
      %p63 = scmp.ne.s32.totalorder %s49, %s50
      %p64 = scmp.eq.s32.totalorder %s21, 1
      %p65 = por %p63, %p64
      %p67 = scmp.ne.s32.totalorder %s50, %s66
      %p68 = scmp.eq.s32.totalorder %s21, 0
      %p69 = por %p67, %p68
      %s70 = ssub.s32 %s24, %s33
      %s71 = ssub.s32 %s23, %s37
      %s72 = sor.u32 %s70, %s71
      %p73 = scmp.eq.s32.totalorder %s72, 0
      %s75 = sadd.s32 %s74, 1
      %s76 = scalar_select %p73, %s74, %s75
      %p79 = pneg %p73
      %p80 = scmp.eq.s32.totalorder %s15, 1
      %p81 = por %p79, %p80
      %p82 = scmp.ne.s32.totalorder %s74, %s77
      %p83 = scmp.eq.s32.totalorder %s15, 0
      %p84 = por %p82, %p83
      %p85 = scmp.ne.s32.totalorder %s74, %s77
      %p86 = scmp.eq.s32.totalorder %s20, 1
      %p87 = por %p85, %p86
      %p88 = scmp.ne.s32.totalorder %s77, %s78
      %p89 = scmp.eq.s32.totalorder %s20, 0
      %p90 = por %p88, %p89
      %p91 = scmp.ne.s32.totalorder %s77, %s78
      %p92 = scmp.eq.s32.totalorder %s21, 1
      %p93 = por %p91, %p92
      %p95 = scmp.ne.s32.totalorder %s78, %s94
      %p96 = scmp.eq.s32.totalorder %s21, 0
      %p97 = por %p95, %p96
      %s98 = ssub.s32 %s23, %s37
      %p99 = scmp.eq.s32.totalorder %s98, 0
      %s101 = sadd.s32 %s100, 1
      %s102 = scalar_select %p99, %s100, %s101
      %p105 = pneg %p99
      %p106 = scmp.eq.s32.totalorder %s15, 1
      %p107 = por %p105, %p106
      %p108 = scmp.ne.s32.totalorder %s100, %s103
      %p109 = scmp.eq.s32.totalorder %s15, 0
      %p110 = por %p108, %p109
      %p111 = scmp.ne.s32.totalorder %s100, %s103
      %p112 = scmp.eq.s32.totalorder %s20, 1
      %p113 = por %p111, %p112
      %p114 = scmp.ne.s32.totalorder %s103, %s104
      %p115 = scmp.eq.s32.totalorder %s20, 0
      %p116 = por %p114, %p115
      %p117 = scmp.ne.s32.totalorder %s103, %s104
      %p118 = scmp.eq.s32.totalorder %s21, 1
      %p119 = por %p117, %p118
      %p121 = scmp.ne.s32.totalorder %s104, %s120
      %p122 = scmp.eq.s32.totalorder %s21, 0
      %p123 = por %p121, %p122
      %s124 = ssub.s32 %s22, %s41
      %s125 = ssub.s32 %s23, %s37
      %s126 = sor.u32 %s124, %s125
      %p127 = scmp.eq.s32.totalorder %s126, 0
      %s129 = sadd.s32 %s128, 1
      %s130 = scalar_select %p127, %s128, %s129
      %p133 = pneg %p127
      %p134 = scmp.eq.s32.totalorder %s15, 1
      %p135 = por %p133, %p134
      %p136 = scmp.ne.s32.totalorder %s128, %s131
      %p137 = scmp.eq.s32.totalorder %s15, 0
      %p138 = por %p136, %p137
      %p139 = scmp.ne.s32.totalorder %s128, %s131
      %p140 = scmp.eq.s32.totalorder %s20, 1
      %p141 = por %p139, %p140
      %p142 = scmp.ne.s32.totalorder %s131, %s132
      %p143 = scmp.eq.s32.totalorder %s20, 0
      %p144 = por %p142, %p143
      %p145 = scmp.ne.s32.totalorder %s131, %s132
      %p146 = scmp.eq.s32.totalorder %s21, 1
      %p147 = por %p145, %p146
      %p149 = scmp.ne.s32.totalorder %s132, %s148
      %p150 = scmp.eq.s32.totalorder %s21, 0
      %p151 = por %p149, %p150
      %p152 = scmp.le.s32.totalorder 1, %s15
      %p153 = scmp.lt.s32.totalorder %s15, 3
      %p154 = pnand %p152, %p153
      %p155 = pneg %p154
      // Predicated region
      $region9: #{transformer_block_forward.15} parent=5 // pred_check
        _
      $region10: #{transformer_block_forward.15} parent=5 // pred_check_branch
        %157 = sbr.rel (%p154) target = $region12
      $region11: #{transformer_block_forward.15} parent=5 // pred_region
        %s158 = ssub.s32 %s15, 1
        // Predicated region
        $region13: #{transformer_block_forward.15} parent=11 // pred_check
          %p159 = pneg %p62
        $region14: #{transformer_block_forward.15} parent=11 // pred_check_branch
          %161 = sbr.rel (%p159) target = $region16
        $region15: #{transformer_block_forward.15} parent=11 // pred_region
          %s162 = smul.u32 2, %s25
          %s163 = smul.u32 2, %s27
          %p164 = scmp.lt.s32.totalorder %s162, 1
          %s165 = scalar_select %p164, %s162, 1
          %p166 = scmp.lt.s32.totalorder %s163, 1
          %s167 = scalar_select %p166, %s163, 1
          %s168 = smul.addr %s165, 2
          %s169 = sadd.s32 %s167, %s168
          %s170 = smul.addr %s169, 8
          %s171 = scalar_lea.vmem %s0, %s170
          %s172 = smul.u32 2, %s25
          %s173 = smul.u32 2, %s27
        $region16: #{transformer_block_forward.15} parent=11 // pred_fallthru
          _
      $region12: #{transformer_block_forward.15} parent=5 // pred_fallthru
        _
      %p174 = scmp.lt.s32.totalorder %s15, 2
      // Predicated region
      $region17: #{transformer_block_forward.15} parent=5 // pred_check
        %p175 = pneg %p174
      $region18: #{transformer_block_forward.15} parent=5 // pred_check_branch
        %177 = sbr.rel (%p175) target = $region20
      $region19: #{transformer_block_forward.15} parent=5 // pred_region
        // Predicated region
        $region21: #{transformer_block_forward.15} parent=19 // pred_check
          %p178 = pneg %p84
        $region22: #{transformer_block_forward.15} parent=19 // pred_check_branch
          %180 = sbr.rel (%p178) target = $region24
        $region23: #{transformer_block_forward.15} parent=19 // pred_region
          %s181 = sand.u32 %s74, 1
          %s182 = scalar_lea.sflag [#allocation3], %s181
          %s183 = sand.u32 %s74, 1
          %s184 = smul.addr %s183, 384
          %s185 = scalar_lea.vmem [#allocation2], %s184
          %s186 = smul.u32 32, %s24
          %s187 = smul.u32 3, %s23
          %189 = vsyncadd %s182, 0
          %s190 = smul.addr %s186, 6
          %s191 = sadd.s32 %s187, %s190
          %s192 = smul.addr %s191, 4
          %s193 = scalar_lea.hbm %s1, %s192
          %s194 = sshll.u32 %s193, 4
          %s195 = int_to_ptr.hbm [resolvable:$true] %s194
          %s196 = sshll.u32 %s185, 4
          %s197 = int_to_ptr.vmem [resolvable:$true] %s196
          %202 = dma.hbm_to_vmem [thread:$0]  %s195, 6144, %s197, %s182, 384, 192, 12
        $region24: #{transformer_block_forward.15} parent=19 // pred_fallthru
          _
        // Predicated region
        $region25: #{transformer_block_forward.15} parent=19 // pred_check
          %p203 = pneg %p110
        $region26: #{transformer_block_forward.15} parent=19 // pred_check_branch
          %205 = sbr.rel (%p203) target = $region28
        $region27: #{transformer_block_forward.15} parent=19 // pred_region
          %s206 = sand.u32 %s100, 1
          %s207 = scalar_lea.sflag [#allocation5], %s206
          %s208 = sand.u32 %s100, 1
          %s209 = smul.addr %s208, 3
          %s210 = scalar_lea.vmem [#allocation4], %s209
          %s211 = smul.u32 3, %s23
          %213 = vsyncadd %s207, 0
          %s214 = scalar_lea.hbm %s2, %s211
          %s216 = sshll.u32 %s214, 4
          %s217 = int_to_ptr.hbm [resolvable:$true] %s216
          %s218 = sshll.u32 %s210, 4
          %s219 = int_to_ptr.vmem [resolvable:$true] %s218
          %221 = dma.hbm_to_vmem [thread:$0]  %s217, 48, %s219, %s207
        $region28: #{transformer_block_forward.15} parent=19 // pred_fallthru
          _
      $region20: #{transformer_block_forward.15} parent=5 // pred_fallthru
        _
      %p222 = scmp.le.s32.totalorder 1, %s15
      %p223 = scmp.lt.s32.totalorder %s15, 3
      %p224 = pnand %p222, %p223
      %p225 = pneg %p224
      // Predicated region
      $region29: #{transformer_block_forward.15} parent=5 // pred_check
        _
      $region30: #{transformer_block_forward.15} parent=5 // pred_check_branch
        %227 = sbr.rel (%p224) target = $region32
      $region31: #{transformer_block_forward.15} parent=5 // pred_region
        %s228 = ssub.s32 %s15, 1
        %s229 = sand.u32 %s77, 1
        %s230 = scalar_lea.sflag [#allocation3], %s229
        %s231 = sand.u32 %s77, 1
        %s232 = smul.addr %s231, 384
        %s233 = scalar_lea.vmem [#allocation2], %s232
        // Predicated region
        $region33: #{transformer_block_forward.15} parent=31 // pred_check
          %p234 = pneg %p90
        $region34: #{transformer_block_forward.15} parent=31 // pred_check_branch
          %236 = sbr.rel (%p234) target = $region36
        $region35: #{transformer_block_forward.15} parent=31 // pred_region
          %238 = dma.done %s230, 6144
        $region36: #{transformer_block_forward.15} parent=31 // pred_fallthru
          _
        %s239 = sand.u32 %s103, 1
        %s240 = scalar_lea.sflag [#allocation5], %s239
        %s241 = sand.u32 %s103, 1
        %s242 = smul.addr %s241, 3
        %s243 = scalar_lea.vmem [#allocation4], %s242
        // Predicated region
        $region37: #{transformer_block_forward.15} parent=31 // pred_check
          %p244 = pneg %p116
        $region38: #{transformer_block_forward.15} parent=31 // pred_check_branch
          %246 = sbr.rel (%p244) target = $region40
        $region39: #{transformer_block_forward.15} parent=31 // pred_region
          %248 = dma.done %s240, 48
        $region40: #{transformer_block_forward.15} parent=31 // pred_fallthru
          _
        %s249 = smul.u32 2, %s25
        %s250 = smul.u32 2, %s27
        %p251 = scmp.lt.s32.totalorder %s249, 1
        %s252 = scalar_select %p251, %s249, 1
        %p253 = scmp.lt.s32.totalorder %s250, 1
        %s254 = scalar_select %p253, %s250, 1
        %s255 = smul.addr %s252, 2
        %s256 = sadd.s32 %s254, %s255
        %s257 = smul.addr %s256, 8
        %s258 = scalar_lea.vmem %s0, %s257
        %p259 = pneg %p62
        %p260 = pneg %p59
        %s261 = sand.u32 %s77, 1
        %s262 = scalar_lea.sflag [#allocation3], %s261
        %s263 = sand.u32 %s77, 1
        %s264 = smul.addr %s263, 384
        %s265 = scalar_lea.vmem [#allocation2], %s264
        %p266 = pneg %p90
        %p267 = pneg %p87
        %s268 = sand.u32 %s103, 1
        %s269 = scalar_lea.sflag [#allocation5], %s268
        %s270 = sand.u32 %s103, 1
        %s271 = smul.addr %s270, 3
        %s272 = scalar_lea.vmem [#allocation4], %s271
        %p273 = pneg %p116
        %p274 = pneg %p113
        %p275 = pneg %p144
        %p276 = pneg %p141
        %s277 = sand.u32 %s131, 1
        %s278 = sand.u32 %s131, 1
        %s279 = smul.addr %s278, 48
        %s280 = scalar_lea.vmem [#allocation6], %s279
        %s281 = smul.u32 2, %s25
        %s282 = smul.u32 2, %s27
        %p283 = scmp.lt.s32.totalorder %s281, 1
        %s284 = scalar_select %p283, %s281, 1
        %p285 = scmp.lt.s32.totalorder %s282, 1
        %s286 = scalar_select %p285, %s282, 1
        %s287 = smul.addr %s284, 2
        %s288 = sadd.s32 %s286, %s287
        %s289 = smul.addr %s288, 8
        %s290 = scalar_lea.vmem %s0, %s289
        %s291 = smul.u32 2, %s25
        %s292 = smul.u32 2, %s27
        %s293 = smul.u32 32, %s27
        %s294 = smul.u32 3, %s26
        %s295 = smul.u32 3, %s26
        %s296 = smul.u32 2, %s25
        %s297 = smul.u32 3, %s26
        %p298 = scmp.eq.s32.totalorder %s27, 0
        // Predicated region
        $region41: #{transformer_block_forward.15} parent=31 // pred_check
          %p299 = pneg %p298
        $region42: #{transformer_block_forward.15} parent=31 // pred_check_branch
          %301 = sbr.rel (%p299) target = $region44
        $region43: #{transformer_block_forward.15} parent=31 // pred_region
          %v302 = vld [vmem:[%s243] sm:$0x7]
          %v304 = vperm.slane %v302, 0
          %v305 = vperm.slane %v302, 1
          %v306 = vperm.slane %v302, 2
          %v310 = vadd.f32 %v304, 0.0
          %v311 = vadd.f32 %v305, 0.0
          %v312 = vadd.f32 %v306, 0.0
          %313 = vst [vmem:[%s280] sm:$0xff] %v310
          %314 = vst [vmem:[%s280 + $0x8] sm:$0xff] %v311
          %315 = vst [vmem:[%s280 + $0x10] sm:$0xff] %v312
          %316 = vst [vmem:[%s280 + $0x18] sm:$0xff] %v310
          %317 = vst [vmem:[%s280 + $0x20] sm:$0xff] %v311
          %318 = vst [vmem:[%s280 + $0x28] sm:$0xff] %v312
        $region44: #{transformer_block_forward.15} parent=31 // pred_fallthru
          _
        %v319 = vld [vmem:[%s280] sm:$0xff]
        %v320 = vld [vmem:[%s280 + $0x8] sm:$0xff]
        %v321 = vld [vmem:[%s280 + $0x10] sm:$0xff]
        %v322 = vld [vmem:[%s280 + $0x18] sm:$0xff]
        %v323 = vld [vmem:[%s280 + $0x20] sm:$0xff]
        %v324 = vld [vmem:[%s280 + $0x28] sm:$0xff]
        %v325 = vld [vmem:[%s290] sm:$0xff]
        %v326 = vld [vmem:[%s290 + $0x8] sm:$0xff]
        %v327 = vld [vmem:[%s290 + $0x10] sm:$0xff]
        %v328 = vld [vmem:[%s290 + $0x18] sm:$0xff]
        %v329 = vpack.c.bf16 %v327, %v325
        %v330 = vpack.c.bf16 %v328, %v326
        %v331 = vld [vmem:[%s233] sm:$0xff]
        %v332 = vld [vmem:[%s233 + $0x8] sm:$0xf]
        %v333 = vld [vmem:[%s233 + $0xc] sm:$0xff]
        %v334 = vld [vmem:[%s233 + $0x14] sm:$0xf]
        %v335 = vld [vmem:[%s233 + $0x18] sm:$0xff]
        %v336 = vld [vmem:[%s233 + $0x20] sm:$0xf]
        %v337 = vld [vmem:[%s233 + $0x24] sm:$0xff]
        %v338 = vld [vmem:[%s233 + $0x2c] sm:$0xf]
        %v339 = vld [vmem:[%s233 + $0x30] sm:$0xff]
        %v340 = vld [vmem:[%s233 + $0x38] sm:$0xf]
        %v341 = vld [vmem:[%s233 + $0x3c] sm:$0xff]
        %v342 = vld [vmem:[%s233 + $0x44] sm:$0xf]
        %v343 = vld [vmem:[%s233 + $0x48] sm:$0xff]
        %v344 = vld [vmem:[%s233 + $0x50] sm:$0xf]
        %v345 = vld [vmem:[%s233 + $0x54] sm:$0xff]
        %v346 = vld [vmem:[%s233 + $0x5c] sm:$0xf]
        %v347 = vld [vmem:[%s233 + $0x60] sm:$0xff]
        %v348 = vld [vmem:[%s233 + $0x68] sm:$0xf]
        %v349 = vld [vmem:[%s233 + $0x6c] sm:$0xff]
        %v350 = vld [vmem:[%s233 + $0x74] sm:$0xf]
        %v351 = vld [vmem:[%s233 + $0x78] sm:$0xff]
        %v352 = vld [vmem:[%s233 + $0x80] sm:$0xf]
        %v353 = vld [vmem:[%s233 + $0x84] sm:$0xff]
        %v354 = vld [vmem:[%s233 + $0x8c] sm:$0xf]
        %v355 = vld [vmem:[%s233 + $0x90] sm:$0xff]
        %v356 = vld [vmem:[%s233 + $0x98] sm:$0xf]
        %v357 = vld [vmem:[%s233 + $0x9c] sm:$0xff]
        %v358 = vld [vmem:[%s233 + $0xa4] sm:$0xf]
        %v359 = vld [vmem:[%s233 + $0xa8] sm:$0xff]
        %v360 = vld [vmem:[%s233 + $0xb0] sm:$0xf]
        %v361 = vld [vmem:[%s233 + $0xb4] sm:$0xff]
        %v362 = vld [vmem:[%s233 + $0xbc] sm:$0xf]
        %v363 = vld [vmem:[%s233 + $0xc0] sm:$0xff]
        %v364 = vld [vmem:[%s233 + $0xc8] sm:$0xf]
        %v365 = vld [vmem:[%s233 + $0xcc] sm:$0xff]
        %v366 = vld [vmem:[%s233 + $0xd4] sm:$0xf]
        %v367 = vld [vmem:[%s233 + $0xd8] sm:$0xff]
        %v368 = vld [vmem:[%s233 + $0xe0] sm:$0xf]
        %v369 = vld [vmem:[%s233 + $0xe4] sm:$0xff]
        %v370 = vld [vmem:[%s233 + $0xec] sm:$0xf]
        %v371 = vld [vmem:[%s233 + $0xf0] sm:$0xff]
        %v372 = vld [vmem:[%s233 + $0xf8] sm:$0xf]
        %v373 = vld [vmem:[%s233 + $0xfc] sm:$0xff]
        %v374 = vld [vmem:[%s233 + $0x104] sm:$0xf]
        %v375 = vld [vmem:[%s233 + $0x108] sm:$0xff]
        %v376 = vld [vmem:[%s233 + $0x110] sm:$0xf]
        %v377 = vld [vmem:[%s233 + $0x114] sm:$0xff]
        %v378 = vld [vmem:[%s233 + $0x11c] sm:$0xf]
        %v379 = vld [vmem:[%s233 + $0x120] sm:$0xff]
        %v380 = vld [vmem:[%s233 + $0x128] sm:$0xf]
        %v381 = vld [vmem:[%s233 + $0x12c] sm:$0xff]
        %v382 = vld [vmem:[%s233 + $0x134] sm:$0xf]
        %v383 = vld [vmem:[%s233 + $0x138] sm:$0xff]
        %v384 = vld [vmem:[%s233 + $0x140] sm:$0xf]
        %v385 = vld [vmem:[%s233 + $0x144] sm:$0xff]
        %v386 = vld [vmem:[%s233 + $0x14c] sm:$0xf]
        %v387 = vld [vmem:[%s233 + $0x150] sm:$0xff]
        %v388 = vld [vmem:[%s233 + $0x158] sm:$0xf]
        %v389 = vld [vmem:[%s233 + $0x15c] sm:$0xff]
        %v390 = vld [vmem:[%s233 + $0x164] sm:$0xf]
        %v391 = vld [vmem:[%s233 + $0x168] sm:$0xff]
        %v392 = vld [vmem:[%s233 + $0x170] sm:$0xf]
        %v393 = vld [vmem:[%s233 + $0x174] sm:$0xff]
        %v394 = vld [vmem:[%s233 + $0x17c] sm:$0xf]
        %v459 = vunpack.c.l.b16 %v331
        %v460 = vunpack.c.h.b16 %v331
        %v461 = vunpack.c.l.b16 %v332
        %v462 = vunpack.c.l.b16 %v333
        %v463 = vunpack.c.h.b16 %v333
        %v464 = vunpack.c.l.b16 %v334
        %v465 = vunpack.c.l.b16 %v335
        %v466 = vunpack.c.h.b16 %v335
        %v467 = vunpack.c.l.b16 %v336
        %v468 = vunpack.c.l.b16 %v337
        %v469 = vunpack.c.h.b16 %v337
        %v470 = vunpack.c.l.b16 %v338
        %v471 = vunpack.c.l.b16 %v339
        %v472 = vunpack.c.h.b16 %v339
        %v473 = vunpack.c.l.b16 %v340
        %v474 = vunpack.c.l.b16 %v341
        %v475 = vunpack.c.h.b16 %v341
        %v476 = vunpack.c.l.b16 %v342
        %v477 = vunpack.c.l.b16 %v343
        %v478 = vunpack.c.h.b16 %v343
        %v479 = vunpack.c.l.b16 %v344
        %v480 = vunpack.c.l.b16 %v345
        %v481 = vunpack.c.h.b16 %v345
        %v482 = vunpack.c.l.b16 %v346
        %v483 = vunpack.c.l.b16 %v347
        %v484 = vunpack.c.h.b16 %v347
        %v485 = vunpack.c.l.b16 %v348
        %v486 = vunpack.c.l.b16 %v349
        %v487 = vunpack.c.h.b16 %v349
        %v488 = vunpack.c.l.b16 %v350
        %v489 = vunpack.c.l.b16 %v351
        %v490 = vunpack.c.h.b16 %v351
        %v491 = vunpack.c.l.b16 %v352
        %v492 = vunpack.c.l.b16 %v353
        %v493 = vunpack.c.h.b16 %v353
        %v494 = vunpack.c.l.b16 %v354
        %v495 = vunpack.c.l.b16 %v355
        %v496 = vunpack.c.h.b16 %v355
        %v497 = vunpack.c.l.b16 %v356
        %v498 = vunpack.c.l.b16 %v357
        %v499 = vunpack.c.h.b16 %v357
        %v500 = vunpack.c.l.b16 %v358
        %v501 = vunpack.c.l.b16 %v359
        %v502 = vunpack.c.h.b16 %v359
        %v503 = vunpack.c.l.b16 %v360
        %v504 = vunpack.c.l.b16 %v361
        %v505 = vunpack.c.h.b16 %v361
        %v506 = vunpack.c.l.b16 %v362
        %v507 = vunpack.c.l.b16 %v363
        %v508 = vunpack.c.h.b16 %v363
        %v509 = vunpack.c.l.b16 %v364
        %v510 = vunpack.c.l.b16 %v365
        %v511 = vunpack.c.h.b16 %v365
        %v512 = vunpack.c.l.b16 %v366
        %v513 = vunpack.c.l.b16 %v367
        %v514 = vunpack.c.h.b16 %v367
        %v515 = vunpack.c.l.b16 %v368
        %v516 = vunpack.c.l.b16 %v369
        %v517 = vunpack.c.h.b16 %v369
        %v518 = vunpack.c.l.b16 %v370
        %v519 = vunpack.c.l.b16 %v371
        %v520 = vunpack.c.h.b16 %v371
        %v521 = vunpack.c.l.b16 %v372
        %v522 = vunpack.c.l.b16 %v373
        %v523 = vunpack.c.h.b16 %v373
        %v524 = vunpack.c.l.b16 %v374
        %v525 = vunpack.c.l.b16 %v375
        %v526 = vunpack.c.h.b16 %v375
        %v527 = vunpack.c.l.b16 %v376
        %v528 = vunpack.c.l.b16 %v377
        %v529 = vunpack.c.h.b16 %v377
        %v530 = vunpack.c.l.b16 %v378
        %v531 = vunpack.c.l.b16 %v379
        %v532 = vunpack.c.h.b16 %v379
        %v533 = vunpack.c.l.b16 %v380
        %v534 = vunpack.c.l.b16 %v381
        %v535 = vunpack.c.h.b16 %v381
        %v536 = vunpack.c.l.b16 %v382
        %v537 = vunpack.c.l.b16 %v383
        %v538 = vunpack.c.h.b16 %v383
        %v539 = vunpack.c.l.b16 %v384
        %v540 = vunpack.c.l.b16 %v385
        %v541 = vunpack.c.h.b16 %v385
        %v542 = vunpack.c.l.b16 %v386
        %v543 = vunpack.c.l.b16 %v387
        %v544 = vunpack.c.h.b16 %v387
        %v545 = vunpack.c.l.b16 %v388
        %v546 = vunpack.c.l.b16 %v389
        %v547 = vunpack.c.h.b16 %v389
        %v548 = vunpack.c.l.b16 %v390
        %v549 = vunpack.c.l.b16 %v391
        %v550 = vunpack.c.h.b16 %v391
        %v551 = vunpack.c.l.b16 %v392
        %v552 = vunpack.c.l.b16 %v393
        %v553 = vunpack.c.h.b16 %v393
        %v554 = vunpack.c.l.b16 %v394
        %v555 = vpack.c.b16 %v462, %v459
        %v556 = vpack.c.b16 %v463, %v460
        %v557 = vpack.c.b16 %v464, %v461
        %v558 = vpack.c.b16 %v468, %v465
        %v559 = vpack.c.b16 %v469, %v466
        %v560 = vpack.c.b16 %v470, %v467
        %v561 = vpack.c.b16 %v474, %v471
        %v562 = vpack.c.b16 %v475, %v472
        %v563 = vpack.c.b16 %v476, %v473
        %v564 = vpack.c.b16 %v480, %v477
        %v565 = vpack.c.b16 %v481, %v478
        %v566 = vpack.c.b16 %v482, %v479
        %v567 = vpack.c.b16 %v486, %v483
        %v568 = vpack.c.b16 %v487, %v484
        %v569 = vpack.c.b16 %v488, %v485
        %v570 = vpack.c.b16 %v492, %v489
        %v571 = vpack.c.b16 %v493, %v490
        %v572 = vpack.c.b16 %v494, %v491
        %v573 = vpack.c.b16 %v498, %v495
        %v574 = vpack.c.b16 %v499, %v496
        %v575 = vpack.c.b16 %v500, %v497
        %v576 = vpack.c.b16 %v504, %v501
        %v577 = vpack.c.b16 %v505, %v502
        %v578 = vpack.c.b16 %v506, %v503
        %v579 = vpack.c.b16 %v510, %v507
        %v580 = vpack.c.b16 %v511, %v508
        %v581 = vpack.c.b16 %v512, %v509
        %v582 = vpack.c.b16 %v516, %v513
        %v583 = vpack.c.b16 %v517, %v514
        %v584 = vpack.c.b16 %v518, %v515
        %v585 = vpack.c.b16 %v522, %v519
        %v586 = vpack.c.b16 %v523, %v520
        %v587 = vpack.c.b16 %v524, %v521
        %v588 = vpack.c.b16 %v528, %v525
        %v589 = vpack.c.b16 %v529, %v526
        %v590 = vpack.c.b16 %v530, %v527
        %v591 = vpack.c.b16 %v534, %v531
        %v592 = vpack.c.b16 %v535, %v532
        %v593 = vpack.c.b16 %v536, %v533
        %v594 = vpack.c.b16 %v540, %v537
        %v595 = vpack.c.b16 %v541, %v538
        %v596 = vpack.c.b16 %v542, %v539
        %v597 = vpack.c.b16 %v546, %v543
        %v598 = vpack.c.b16 %v547, %v544
        %v599 = vpack.c.b16 %v548, %v545
        %v600 = vpack.c.b16 %v552, %v549
        %v601 = vpack.c.b16 %v553, %v550
        %v602 = vpack.c.b16 %v554, %v551
        %651 = vmatpush.bf16.msra.mxu0 %v576
        %652 = vmatpush.bf16.msra.mxu0 %v573
        %653 = vmatpush.bf16.msra.mxu0 %v570
        %654 = vmatpush.bf16.msra.mxu0 %v567
        %655 = vmatpush.bf16.msra.mxu0 %v564
        %656 = vmatpush.bf16.msra.mxu0 %v561
        %657 = vmatpush.bf16.msra.mxu0 %v558
        %658 = vmatpush.bf16.msra.mxu0 %v555
        %659 = vmatmul.bf16.gmra.mxu0 %v329
        %v660 = vpop.f32.mrf.mxu0
        %v661 = vadd.f32 0.0, %v660
        %v662 = vpop.f32.mrf.mxu0
        %v663 = vadd.f32 0.0, %v662
        %664 = vdwg.mxu0
        %665 = vmatpush.bf16.msra.mxu0 %v600
        %666 = vmatpush.bf16.msra.mxu0 %v597
        %667 = vmatpush.bf16.msra.mxu0 %v594
        %668 = vmatpush.bf16.msra.mxu0 %v591
        %669 = vmatpush.bf16.msra.mxu0 %v588
        %670 = vmatpush.bf16.msra.mxu0 %v585
        %671 = vmatpush.bf16.msra.mxu0 %v582
        %672 = vmatpush.bf16.msra.mxu0 %v579
        %673 = vmatmul.bf16.gmra.mxu0 %v330
        %v674 = vpop.f32.mrf.mxu0
        %v675 = vadd.f32 %v661, %v674
        %v676 = vpop.f32.mrf.mxu0
        %v677 = vadd.f32 %v663, %v676
        %678 = vdwg.mxu0
        %679 = vmatpush.bf16.msra.mxu0 %v577
        %680 = vmatpush.bf16.msra.mxu0 %v574
        %681 = vmatpush.bf16.msra.mxu0 %v571
        %682 = vmatpush.bf16.msra.mxu0 %v568
        %683 = vmatpush.bf16.msra.mxu0 %v565
        %684 = vmatpush.bf16.msra.mxu0 %v562
        %685 = vmatpush.bf16.msra.mxu0 %v559
        %686 = vmatpush.bf16.msra.mxu0 %v556
        %687 = vmatmul.bf16.gmra.mxu0 %v329
        %v688 = vpop.f32.mrf.mxu0
        %v689 = vadd.f32 0.0, %v688
        %v690 = vpop.f32.mrf.mxu0
        %v691 = vadd.f32 0.0, %v690
        %692 = vdwg.mxu0
        %693 = vmatpush.bf16.msra.mxu0 %v601
        %694 = vmatpush.bf16.msra.mxu0 %v598
        %695 = vmatpush.bf16.msra.mxu0 %v595
        %696 = vmatpush.bf16.msra.mxu0 %v592
        %697 = vmatpush.bf16.msra.mxu0 %v589
        %698 = vmatpush.bf16.msra.mxu0 %v586
        %699 = vmatpush.bf16.msra.mxu0 %v583
        %700 = vmatpush.bf16.msra.mxu0 %v580
        %701 = vmatmul.bf16.gmra.mxu0 %v330
        %v702 = vpop.f32.mrf.mxu0
        %v703 = vadd.f32 %v689, %v702
        %v704 = vpop.f32.mrf.mxu0
        %v705 = vadd.f32 %v691, %v704
        %706 = vdwg.mxu0
        %707 = vmatpush.bf16.msra.mxu0 %v578
        %708 = vmatpush.bf16.msra.mxu0 %v575
        %709 = vmatpush.bf16.msra.mxu0 %v572
        %710 = vmatpush.bf16.msra.mxu0 %v569
        %711 = vmatpush.bf16.msra.mxu0 %v566
        %712 = vmatpush.bf16.msra.mxu0 %v563
        %713 = vmatpush.bf16.msra.mxu0 %v560
        %714 = vmatpush.bf16.msra.mxu0 %v557
        %715 = vmatmul.bf16.gmra.mxu0 %v329
        %v716 = vpop.f32.mrf.mxu0
        %v717 = vadd.f32 0.0, %v716
        %v718 = vpop.f32.mrf.mxu0
        %v719 = vadd.f32 0.0, %v718
        %720 = vdwg.mxu0
        %721 = vmatpush.bf16.msra.mxu0 %v602
        %722 = vmatpush.bf16.msra.mxu0 %v599
        %723 = vmatpush.bf16.msra.mxu0 %v596
        %724 = vmatpush.bf16.msra.mxu0 %v593
        %725 = vmatpush.bf16.msra.mxu0 %v590
        %726 = vmatpush.bf16.msra.mxu0 %v587
        %727 = vmatpush.bf16.msra.mxu0 %v584
        %728 = vmatpush.bf16.msra.mxu0 %v581
        %729 = vmatmul.bf16.gmra.mxu0 %v330
        %v730 = vpop.f32.mrf.mxu0
        %v731 = vadd.f32 %v717, %v730
        %v732 = vpop.f32.mrf.mxu0
        %v733 = vadd.f32 %v719, %v732
        %734 = vdwg.mxu0
        %v735 = vadd.f32 %v319, %v675
        %v736 = vadd.f32 %v320, %v703
        %v737 = vadd.f32 %v321, %v731
        %v738 = vadd.f32 %v322, %v677
        %v739 = vadd.f32 %v323, %v705
        %v740 = vadd.f32 %v324, %v733
        %741 = vst [vmem:[%s280] sm:$0xff] %v735
        %742 = vst [vmem:[%s280 + $0x8] sm:$0xff] %v736
        %743 = vst [vmem:[%s280 + $0x10] sm:$0xff] %v737
        %744 = vst [vmem:[%s280 + $0x18] sm:$0xff] %v738
        %745 = vst [vmem:[%s280 + $0x20] sm:$0xff] %v739
        %746 = vst [vmem:[%s280 + $0x28] sm:$0xff] %v740
        %s747 = sand.u32 %s131, 1
        %s748 = sand.u32 %s131, 1
        %s749 = smul.addr %s748, 48
        %s750 = scalar_lea.vmem [#allocation6], %s749
        // Predicated region
        $region45: #{transformer_block_forward.15} parent=31 // pred_check
          %p751 = pneg %p141
        $region46: #{transformer_block_forward.15} parent=31 // pred_check_branch
          %753 = sbr.rel (%p751) target = $region48
        $region47: #{transformer_block_forward.15} parent=31 // pred_region
          %s754 = smul.u32 2, %s25
          %s755 = smul.u32 3, %s26
          %s756 = smul.addr %s754, 6
          %s757 = sadd.s32 %s755, %s756
          %s758 = smul.addr %s757, 8
          %s759 = scalar_lea.vmem %s3, %s758
          // Predicated region
          $region49: #{transformer_block_forward.15} parent=47 // pred_check
            _
          $region50: #{transformer_block_forward.15} parent=47 // pred_check_branch
            %761 = sbr.rel (0) target = $region52
          $region51: #{transformer_block_forward.15} parent=47 // pred_region
            // Predicated region
            $region53: #{transformer_block_forward.15} parent=51 // pred_check
              _
            $region54: #{transformer_block_forward.15} parent=51 // pred_check_branch
              %763 = sbr.rel (0) target = $region56
            $region55: #{transformer_block_forward.15} parent=51 // pred_region
              loop: start=0, step=1, limit=1
              $region57: #{transformer_block_forward.15} parent=55 // loop_pre_header
                _
              $region58: #{transformer_block_forward.15} parent=55 // loop_header
                %s765 = sphi 0, %s769
                %p766 = scmp.ge.s32.totalorder %s765, 1
                %s770 = sphi %s750, %s750
                %s771 = sphi %s759, %s759
              $region59: #{transformer_block_forward.15} parent=55 // loop_header_branch
                %768 = sbr.rel (%p766) target = $region63
              $region60: #{transformer_block_forward.15} parent=55 // loop_body
                %v772 = vld [vmem:[%s770] sm:$0xff]
                %773 = vst [vmem:[%s771] sm:$0xff] %v772
                %v774 = vld [vmem:[%s770 + $0x8] sm:$0xff]
                %775 = vst [vmem:[%s771 + $0x8] sm:$0xff] %v774
                %v776 = vld [vmem:[%s770 + $0x10] sm:$0xff]
                %777 = vst [vmem:[%s771 + $0x10] sm:$0xff] %v776
                %v778 = vld [vmem:[%s770 + $0x18] sm:$0xff]
                %779 = vst [vmem:[%s771 + $0x30] sm:$0xff] %v778
                %v780 = vld [vmem:[%s770 + $0x20] sm:$0xff]
                %781 = vst [vmem:[%s771 + $0x38] sm:$0xff] %v780
                %v782 = vld [vmem:[%s770 + $0x28] sm:$0xff]
                %783 = vst [vmem:[%s771 + $0x40] sm:$0xff] %v782
              $region61: #{transformer_block_forward.15} parent=55 // loop_footer
                %s769 = sadd.s32 1, %s765
              $region62: #{transformer_block_forward.15} parent=55 // loop_footer_branch
                %764 = sbr.rel target = $region58
              $region63: #{transformer_block_forward.15} parent=55 // loop_exit
                _
            $region56: #{transformer_block_forward.15} parent=51 // pred_fallthru
              _
            // Predicated region
            $region64: #{transformer_block_forward.15} parent=51 // pred_check
              _
            $region65: #{transformer_block_forward.15} parent=51 // pred_check_branch
              %785 = sbr.rel target = $region67
            $region66: #{transformer_block_forward.15} parent=51 // pred_region
              _
            $region67: #{transformer_block_forward.15} parent=51 // pred_fallthru
              _
          $region52: #{transformer_block_forward.15} parent=47 // pred_fallthru
            _
          %786 = vnop
        $region48: #{transformer_block_forward.15} parent=31 // pred_fallthru
          _
      $region32: #{transformer_block_forward.15} parent=5 // pred_fallthru
        _
      %p787 = scmp.le.s32.totalorder 2, %s15
      // Predicated region
      $region68: #{transformer_block_forward.15} parent=5 // pred_check
        %p788 = pneg %p787
      $region69: #{transformer_block_forward.15} parent=5 // pred_check_branch
        %790 = sbr.rel (%p788) target = $region71
      $region70: #{transformer_block_forward.15} parent=5 // pred_region
        %s791 = ssub.s32 %s15, 2
        // Predicated region
        $region72: #{transformer_block_forward.15} parent=70 // pred_check
          %p792 = pneg %p147
        $region73: #{transformer_block_forward.15} parent=70 // pred_check_branch
          %794 = sbr.rel (%p792) target = $region75
        $region74: #{transformer_block_forward.15} parent=70 // pred_region
          %s795 = sand.u32 %s132, 1
          %s796 = sand.u32 %s132, 1
          %s797 = smul.addr %s796, 48
          %s798 = scalar_lea.vmem [#allocation6], %s797
        $region75: #{transformer_block_forward.15} parent=70 // pred_fallthru
          _
      $region71: #{transformer_block_forward.15} parent=5 // pred_fallthru
        _
    $region6: #{transformer_block_forward.15} parent=1 // loop_footer
      %s19 = sadd.s32 1, %s15
    $region7: #{transformer_block_forward.15} parent=1 // loop_footer_branch
      %14 = sbr.rel target = $region3
    $region8: #{transformer_block_forward.15} parent=1 // loop_exit
      _
    %799 = vsyncpa [#allocation3], 1
    %s800 = scalar_lea.sflag [#allocation3], 1
    %801 = vsyncpa %s800, 1
    %802 = vsyncpa [#allocation5], 1
    %s803 = scalar_lea.sflag [#allocation5], 1
    %804 = vsyncpa %s803, 1

// kernel: transformer_block_forward.16
$region0: #{transformer_block_forward.16}
  #allocation0 [shape = 'u32[]', space=smem, size = 0x4, offset = 0x4, fixed_abs, tag = 'smem constant byte address 0x4 - core index']
  #allocation1 [shape = 'u32[72,128]{1,0:T(1,128)}', space=vmem, size = 0x9000, scoped, tag = 'internal scratch']
  %s0 = inlined_call_operand.vmem [shape: f32[2,8,768], index: 0, kind: input, shape index: {}]
  %s1 = inlined_call_operand.vmem [shape: f32[2,8,256], index: 1, kind: output, shape index: {}]
  %s2 = sld [smem:[#allocation0]]
  $region37: #{transformer_block_forward.16} parent=0
    _
  %s4 = ssub.s32 1, %s2
  %s5 = scalar_select 0, %s4, %s2
  loop: start=0, step=1, limit=4
  $region2: #{transformer_block_forward.16} parent=0 // loop_pre_header
    _
  $region3: #{transformer_block_forward.16} parent=0 // loop_header
    %s7 = sphi 0, %s11
    %p8 = scmp.ge.s32.totalorder %s7, 4
    %s17 = sphi 0, %s19
    %s20 = sphi 0, %s17
    %s21 = sphi 0, %s20
    %s37 = sphi 0, %s21
    %s43 = sphi 0, %s45
    %s46 = sphi 0, %s43
    %s47 = sphi 0, %s46
    %s63 = sphi 0, %s47
  $region4: #{transformer_block_forward.16} parent=0 // loop_header_branch
    %10 = sbr.rel (%p8) target = $region8
  $region5: #{transformer_block_forward.16} parent=0 // loop_body
    %s12 = ssub.s32 %s7, 1
    %s13 = ssub.s32 %s7, 2
    %s14 = sadd.s32 %s7, 1
    %s15 = ssub.s32 %s7, %s14
    %p16 = scmp.eq.s32.totalorder %s15, 0
    %s18 = sadd.s32 %s17, 1
    %s19 = scalar_select %p16, %s17, %s18
    %p22 = pneg %p16
    %p23 = scmp.eq.s32.totalorder %s7, 1
    %p24 = por %p22, %p23
    %p25 = scmp.ne.s32.totalorder %s17, %s20
    %p26 = scmp.eq.s32.totalorder %s7, 0
    %p27 = por %p25, %p26
    %p28 = scmp.ne.s32.totalorder %s17, %s20
    %p29 = scmp.eq.s32.totalorder %s12, 1
    %p30 = por %p28, %p29
    %p31 = scmp.ne.s32.totalorder %s20, %s21
    %p32 = scmp.eq.s32.totalorder %s12, 0
    %p33 = por %p31, %p32
    %p34 = scmp.ne.s32.totalorder %s20, %s21
    %p35 = scmp.eq.s32.totalorder %s13, 1
    %p36 = por %p34, %p35
    %p38 = scmp.ne.s32.totalorder %s21, %s37
    %p39 = scmp.eq.s32.totalorder %s13, 0
    %p40 = por %p38, %p39
    %s41 = ssub.s32 %s7, %s14
    %p42 = scmp.eq.s32.totalorder %s41, 0
    %s44 = sadd.s32 %s43, 1
    %s45 = scalar_select %p42, %s43, %s44
    %p48 = pneg %p42
    %p49 = scmp.eq.s32.totalorder %s7, 1
    %p50 = por %p48, %p49
    %p51 = scmp.ne.s32.totalorder %s43, %s46
    %p52 = scmp.eq.s32.totalorder %s7, 0
    %p53 = por %p51, %p52
    %p54 = scmp.ne.s32.totalorder %s43, %s46
    %p55 = scmp.eq.s32.totalorder %s12, 1
    %p56 = por %p54, %p55
    %p57 = scmp.ne.s32.totalorder %s46, %s47
    %p58 = scmp.eq.s32.totalorder %s12, 0
    %p59 = por %p57, %p58
    %p60 = scmp.ne.s32.totalorder %s46, %s47
    %p61 = scmp.eq.s32.totalorder %s13, 1
    %p62 = por %p60, %p61
    %p64 = scmp.ne.s32.totalorder %s47, %s63
    %p65 = scmp.eq.s32.totalorder %s13, 0
    %p66 = por %p64, %p65
    %p67 = scmp.le.s32.totalorder 1, %s7
    %p68 = scmp.lt.s32.totalorder %s7, 3
    %p69 = pnand %p67, %p68
    %p70 = pneg %p69
    // Predicated region
    $region9: #{transformer_block_forward.16} parent=5 // pred_check
      _
    $region10: #{transformer_block_forward.16} parent=5 // pred_check_branch
      %72 = sbr.rel (%p69) target = $region12
    $region11: #{transformer_block_forward.16} parent=5 // pred_region
      %s73 = ssub.s32 %s7, 1
    $region12: #{transformer_block_forward.16} parent=5 // pred_fallthru
      _
    %p74 = scmp.lt.s32.totalorder %s7, 2
    // Predicated region
    $region13: #{transformer_block_forward.16} parent=5 // pred_check
      %p75 = pneg %p74
    $region14: #{transformer_block_forward.16} parent=5 // pred_check_branch
      %77 = sbr.rel (%p75) target = $region16
    $region15: #{transformer_block_forward.16} parent=5 // pred_region
      // Predicated region
      $region17: #{transformer_block_forward.16} parent=15 // pred_check
        %p78 = pneg %p27
      $region18: #{transformer_block_forward.16} parent=15 // pred_check_branch
        %80 = sbr.rel (%p78) target = $region20
      $region19: #{transformer_block_forward.16} parent=15 // pred_region
        %p81 = scmp.lt.s32.totalorder %s7, 1
        %s82 = scalar_select %p81, %s7, 1
        %s83 = smul.addr %s82, 6
        %s84 = smul.addr %s83, 8
        %s85 = scalar_lea.vmem %s0, %s84
      $region20: #{transformer_block_forward.16} parent=15 // pred_fallthru
        _
    $region16: #{transformer_block_forward.16} parent=5 // pred_fallthru
      _
    %p86 = scmp.le.s32.totalorder 1, %s7
    %p87 = scmp.lt.s32.totalorder %s7, 3
    %p88 = pnand %p86, %p87
    %p89 = pneg %p88
    // Predicated region
    $region21: #{transformer_block_forward.16} parent=5 // pred_check
      _
    $region22: #{transformer_block_forward.16} parent=5 // pred_check_branch
      %91 = sbr.rel (%p88) target = $region24
    $region23: #{transformer_block_forward.16} parent=5 // pred_region
      %s92 = ssub.s32 %s7, 1
      %p93 = scmp.lt.s32.totalorder %s12, 1
      %s94 = scalar_select %p93, %s12, 1
      %s95 = smul.addr %s94, 6
      %s96 = smul.addr %s95, 8
      %s97 = scalar_lea.vmem %s0, %s96
      %p98 = pneg %p33
      %p99 = pneg %p30
      %p100 = pneg %p59
      %p101 = pneg %p56
      %p102 = scmp.lt.s32.totalorder %s12, 1
      %s103 = scalar_select %p102, %s12, 1
      %s104 = smul.addr %s103, 2
      %s105 = smul.addr %s104, 8
      %s106 = scalar_lea.vmem %s1, %s105
      %p107 = scmp.lt.s32.totalorder %s12, 1
      %s108 = scalar_select %p107, %s12, 1
      %s109 = smul.addr %s108, 6
      %s110 = smul.addr %s109, 8
      %s111 = scalar_lea.vmem %s0, %s110
      %p112 = scmp.lt.s32.totalorder %s12, 1
      %s113 = scalar_select %p112, %s12, 1
      %s114 = smul.addr %s113, 2
      %s115 = smul.addr %s114, 8
      %s116 = scalar_lea.vmem %s1, %s115
      %v118 = vld [vmem:[%s111] sm:$0xff]
      %v119 = vld [vmem:[%s111 + $0x8] sm:$0xff]
      %v120 = vld [vmem:[%s111 + $0x10] sm:$0xff]
      %v121 = vld [vmem:[%s111 + $0x18] sm:$0xff]
      %v122 = vld [vmem:[%s111 + $0x20] sm:$0xff]
      %v123 = vld [vmem:[%s111 + $0x28] sm:$0xff]
      %v124 = vpack.c.bf16 %v118, %v118
      %v125 = vpack.c.bf16 %v120, %v120
      %v126 = vpack.c.bf16 %v122, %v122
      %127 = vmatpush.bf16.xpose.msra.mxu0 0
      %128 = vmatpush.bf16.xpose.msra.mxu0 0
      %129 = vmatpush.bf16.xpose.msra.mxu0 0
      %130 = vmatpush.bf16.xpose.msra.mxu0 0
      %131 = vmatpush.bf16.xpose.msra.mxu0 0
      %132 = vmatpush.bf16.xpose.msra.mxu0 0
      %133 = vmatpush.bf16.xpose.msra.mxu0 0
      %134 = vmatpush.bf16.xpose.msra.mxu0 %v125
      %135 = vmatmul.bf16.gmra.mxu0 %v124
      %v136 = vpop.f32.mrf.mxu0
      %v137 = vadd.f32 0.0, %v136
      %v138 = vpop.f32.mrf.mxu0
      %139 = vdwg.mxu0
      %v140 = vmul.f32 %v137, 0.088388346
      %vm141 = vcmask 64512
      %v142 = vsel %vm141, %v140, -inf
      %143 = vmax.xlane.f32.xlu0 %v142
      %v144 = vpop.xlane.xlu0 %143
      %v145 = vsub.f32 %v140, %v144
      %v146 = vmul.f32 %v145, 1.442695
      %v147 = vpow.pop %v146
      %v148 = vsel %vm141, %v147, 0.0
      %149 = vadd.xlane.f32.xlu0 %v148
      %v150 = vpop.xlane.xlu0 %149
      %v151 = vrcp.pop %v150
      %v152 = vmul.f32 %v147, %v151
      %v153 = vpack.c.bf16 %v152, %v152
      %v155 = vsel %vm141, %v153, 0
      %vm157 = vcmask 1043456
      %v159 = vsel %vm157, %v126, 0
      %161 = vmatpush.bf16.msra.mxu0 0
      %162 = vmatpush.bf16.msra.mxu0 0
      %163 = vmatpush.bf16.msra.mxu0 0
      %164 = vmatpush.bf16.msra.mxu0 0
      %165 = vmatpush.bf16.msra.mxu0 0
      %166 = vmatpush.bf16.msra.mxu0 0
      %167 = vmatpush.bf16.msra.mxu0 0
      %168 = vmatpush.bf16.msra.mxu0 %v159
      %169 = vmatmul.bf16.gmra.mxu0 %v155
      %v170 = vpop.f32.mrf.mxu0
      %v171 = vadd.f32 0.0, %v170
      %v172 = vpop.f32.mrf.mxu0
      %173 = vdwg.mxu0
      %174 = vst [vmem:[%s116] sm:$0xff] %v171
      %v175 = vpack.c.bf16 %v119, %v119
      %v176 = vpack.c.bf16 %v121, %v121
      %v177 = vpack.c.bf16 %v123, %v123
      %178 = vmatpush.bf16.xpose.msra.mxu0 0
      %179 = vmatpush.bf16.xpose.msra.mxu0 0
      %180 = vmatpush.bf16.xpose.msra.mxu0 0
      %181 = vmatpush.bf16.xpose.msra.mxu0 0
      %182 = vmatpush.bf16.xpose.msra.mxu0 0
      %183 = vmatpush.bf16.xpose.msra.mxu0 0
      %184 = vmatpush.bf16.xpose.msra.mxu0 0
      %185 = vmatpush.bf16.xpose.msra.mxu0 %v176
      %186 = vmatmul.bf16.gmra.mxu0 %v175
      %v187 = vpop.f32.mrf.mxu0
      %v188 = vadd.f32 0.0, %v187
      %v189 = vpop.f32.mrf.mxu0
      %190 = vdwg.mxu0
      %v191 = vmul.f32 %v188, 0.088388346
      %v192 = vsel %vm141, %v191, -inf
      %193 = vmax.xlane.f32.xlu0 %v192
      %v194 = vpop.xlane.xlu0 %193
      %v195 = vsub.f32 %v191, %v194
      %v196 = vmul.f32 %v195, 1.442695
      %v197 = vpow.pop %v196
      %v198 = vsel %vm141, %v197, 0.0
      %199 = vadd.xlane.f32.xlu0 %v198
      %v200 = vpop.xlane.xlu0 %199
      %v201 = vrcp.pop %v200
      %v202 = vmul.f32 %v197, %v201
      %v203 = vpack.c.bf16 %v202, %v202
      %v205 = vsel %vm141, %v203, 0
      %v208 = vsel %vm157, %v177, 0
      %210 = vmatpush.bf16.msra.mxu0 0
      %211 = vmatpush.bf16.msra.mxu0 0
      %212 = vmatpush.bf16.msra.mxu0 0
      %213 = vmatpush.bf16.msra.mxu0 0
      %214 = vmatpush.bf16.msra.mxu0 0
      %215 = vmatpush.bf16.msra.mxu0 0
      %216 = vmatpush.bf16.msra.mxu0 0
      %217 = vmatpush.bf16.msra.mxu0 %v208
      %218 = vmatmul.bf16.gmra.mxu0 %v205
      %v219 = vpop.f32.mrf.mxu0
      %v220 = vadd.f32 0.0, %v219
      %v221 = vpop.f32.mrf.mxu0
      %222 = vdwg.mxu0
      %223 = vst [vmem:[%s116 + $0x8] sm:$0xff] %v220
      %p224 = scmp.lt.s32.totalorder %s12, 1
      %s225 = scalar_select %p224, %s12, 1
      %s226 = smul.addr %s225, 2
      %s227 = smul.addr %s226, 8
      %s228 = scalar_lea.vmem %s1, %s227
      // Predicated region
      $region25: #{transformer_block_forward.16} parent=23 // pred_check
        %p229 = pneg %p56
      $region26: #{transformer_block_forward.16} parent=23 // pred_check_branch
        %231 = sbr.rel (%p229) target = $region28
      $region27: #{transformer_block_forward.16} parent=23 // pred_region
        _
      $region28: #{transformer_block_forward.16} parent=23 // pred_fallthru
        _
    $region24: #{transformer_block_forward.16} parent=5 // pred_fallthru
      _
    %p232 = scmp.le.s32.totalorder 2, %s7
    // Predicated region
    $region29: #{transformer_block_forward.16} parent=5 // pred_check
      %p233 = pneg %p232
    $region30: #{transformer_block_forward.16} parent=5 // pred_check_branch
      %235 = sbr.rel (%p233) target = $region32
    $region31: #{transformer_block_forward.16} parent=5 // pred_region
      %s236 = ssub.s32 %s7, 2
      // Predicated region
      $region33: #{transformer_block_forward.16} parent=31 // pred_check
        %p237 = pneg %p62
      $region34: #{transformer_block_forward.16} parent=31 // pred_check_branch
        %239 = sbr.rel (%p237) target = $region36
      $region35: #{transformer_block_forward.16} parent=31 // pred_region
        %p240 = scmp.lt.s32.totalorder %s13, 1
        %s241 = scalar_select %p240, %s13, 1
        %s242 = smul.addr %s241, 2
        %s243 = smul.addr %s242, 8
        %s244 = scalar_lea.vmem %s1, %s243
      $region36: #{transformer_block_forward.16} parent=31 // pred_fallthru
        _
    $region32: #{transformer_block_forward.16} parent=5 // pred_fallthru
      _
  $region6: #{transformer_block_forward.16} parent=0 // loop_footer
    %s11 = sadd.s32 1, %s7
  $region7: #{transformer_block_forward.16} parent=0 // loop_footer_branch
    %6 = sbr.rel target = $region3
  $region8: #{transformer_block_forward.16} parent=0 // loop_exit
    _

// kernel: transformer_block_forward.14
$region0: #{transformer_block_forward.14}
  #allocation0 [shape = 'u32[]', space=smem, size = 0x4, offset = 0x4, fixed_abs, tag = 'smem constant byte address 0x4 - core index']
  #allocation1 [shape = 'u32[72,128]{1,0:T(1,128)}', space=vmem, size = 0x9000, scoped, tag = 'internal scratch']
  %s0 = inlined_call_operand.vmem [shape: f32[16,256], index: 0, kind: input, shape index: {}]
  %s1 = inlined_call_operand.vmem [shape: f32[16,256], index: 1, kind: input, shape index: {}]
  %s2 = inlined_call_operand.hbm [shape: f32[1,256], index: 2, kind: input, shape index: {}]
  %s3 = inlined_call_operand.hbm [shape: f32[1,256], index: 3, kind: input, shape index: {}]
  %s4 = inlined_call_operand.vmem [shape: f32[16,256], index: 4, kind: output, shape index: {}]
  %s5 = sld [smem:[#allocation0]]
  $region34: #{transformer_block_forward.14} parent=0
    _
  %s7 = ssub.s32 1, %s5
  %s8 = scalar_select 0, %s7, %s5
  $region1: #{transformer_block_forward.14} parent=0
    #allocation2 [shape = 'u8[1024]{0}', space=vmem, size = 0x400, scoped, tag = 'input window, operand 2, single buffered']
    #allocation3 [shape = 's32[1]{0}', space=sflag, size = 0x4, scoped, tag = 'scoped memory for transformer_block_forward.14']
    #allocation4 [shape = 'u8[1024]{0}', space=vmem, size = 0x400, scoped, tag = 'input window, operand 3, single buffered']
    #allocation5 [shape = 's32[1]{0}', space=sflag, size = 0x4, scoped, tag = 'scoped memory for transformer_block_forward.14']
    %9 = vsyncpa [#allocation3], 0
    %10 = vsyncpa [#allocation5], 0
    // Predicated region
    $region2: #{transformer_block_forward.14} parent=1 // pred_check
      _
    $region3: #{transformer_block_forward.14} parent=1 // pred_check_branch
      %12 = sbr.rel (0) target = $region5
    $region4: #{transformer_block_forward.14} parent=1 // pred_region
      _
    $region5: #{transformer_block_forward.14} parent=1 // pred_fallthru
      _
    // Predicated region
    $region6: #{transformer_block_forward.14} parent=1 // pred_check
      _
    $region7: #{transformer_block_forward.14} parent=1 // pred_check_branch
      %14 = sbr.rel (0) target = $region9
    $region8: #{transformer_block_forward.14} parent=1 // pred_region
      _
    $region9: #{transformer_block_forward.14} parent=1 // pred_fallthru
      _
    // Predicated region
    $region10: #{transformer_block_forward.14} parent=1 // pred_check
      _
    $region11: #{transformer_block_forward.14} parent=1 // pred_check_branch
      %16 = sbr.rel (0) target = $region13
    $region12: #{transformer_block_forward.14} parent=1 // pred_region
      %18 = vsyncadd [#allocation3], 0
      %s20 = sshll.u32 %s2, 4
      %s21 = int_to_ptr.hbm [resolvable:$true] %s20
      %s22 = sshll.u32 [#allocation2], 4
      %s23 = int_to_ptr.vmem [resolvable:$true] %s22
      %25 = dma.hbm_to_vmem [thread:$0]  %s21, 32, %s23, [#allocation3]
    $region13: #{transformer_block_forward.14} parent=1 // pred_fallthru
      _
    // Predicated region
    $region14: #{transformer_block_forward.14} parent=1 // pred_check
      _
    $region15: #{transformer_block_forward.14} parent=1 // pred_check_branch
      %27 = sbr.rel (0) target = $region17
    $region16: #{transformer_block_forward.14} parent=1 // pred_region
      %29 = vsyncadd [#allocation5], 0
      %s31 = sshll.u32 %s3, 4
      %s32 = int_to_ptr.hbm [resolvable:$true] %s31
      %s33 = sshll.u32 [#allocation4], 4
      %s34 = int_to_ptr.vmem [resolvable:$true] %s33
      %36 = dma.hbm_to_vmem [thread:$0]  %s32, 32, %s34, [#allocation5]
    $region17: #{transformer_block_forward.14} parent=1 // pred_fallthru
      _
    // Predicated region
    $region18: #{transformer_block_forward.14} parent=1 // pred_check
      _
    $region19: #{transformer_block_forward.14} parent=1 // pred_check_branch
      %38 = sbr.rel (0) target = $region21
    $region20: #{transformer_block_forward.14} parent=1 // pred_region
      %40 = dma.done [#allocation3], 32
    $region21: #{transformer_block_forward.14} parent=1 // pred_fallthru
      _
    // Predicated region
    $region22: #{transformer_block_forward.14} parent=1 // pred_check
      _
    $region23: #{transformer_block_forward.14} parent=1 // pred_check_branch
      %42 = sbr.rel (0) target = $region25
    $region24: #{transformer_block_forward.14} parent=1 // pred_region
      %44 = dma.done [#allocation5], 32
    $region25: #{transformer_block_forward.14} parent=1 // pred_fallthru
      _
    %v45 = vld [vmem:[%s0] sm:$0xff]
    %v46 = vld [vmem:[%s0 + $0x8] sm:$0xff]
    %v47 = vld [vmem:[%s0 + $0x10] sm:$0xff]
    %v48 = vld [vmem:[%s0 + $0x18] sm:$0xff]
    %v49 = vld [vmem:[%s1] sm:$0xff]
    %v50 = vld [vmem:[%s1 + $0x8] sm:$0xff]
    %v51 = vld [vmem:[%s1 + $0x10] sm:$0xff]
    %v52 = vld [vmem:[%s1 + $0x18] sm:$0xff]
    %v53 = vadd.f32 %v45, %v49
    %v54 = vadd.f32 %v46, %v50
    %v55 = vadd.f32 %v47, %v51
    %v56 = vadd.f32 %v48, %v52
    %v57 = vadd.f32 %v53, %v54
    %58 = vadd.xlane.f32.xlu0 %v57
    %v59 = vpop.xlane.xlu0 %58
    %v60 = vadd.f32 %v55, %v56
    %61 = vadd.xlane.f32.xlu0 %v60
    %v62 = vpop.xlane.xlu0 %61
    %v63 = vrcp.pop 256.0
    %v64 = vmul.f32 256.0, %v63
    %v65 = vsub.f32 1.0, %v64
    %v66 = vmul.f32 %v63, %v65
    %v67 = vadd.f32 %v63, %v66
    %vm68 = vweird.f32 %v63
    %v69 = vsel %vm68, %v63, %v67
    %v70 = vmul.f32 %v59, %v69
    %v71 = vmul.f32 %v62, %v69
    %v72 = vsub.f32 %v53, %v70
    %v73 = vsub.f32 %v54, %v70
    %v74 = vsub.f32 %v55, %v71
    %v75 = vsub.f32 %v56, %v71
    %v76 = vmul.f32 %v72, %v72
    %v77 = vmul.f32 %v73, %v73
    %v78 = vmul.f32 %v74, %v74
    %v79 = vmul.f32 %v75, %v75
    %v80 = vadd.f32 %v76, %v77
    %81 = vadd.xlane.f32.xlu0 %v80
    %v82 = vpop.xlane.xlu0 %81
    %v83 = vadd.f32 %v78, %v79
    %84 = vadd.xlane.f32.xlu0 %v83
    %v85 = vpop.xlane.xlu0 %84
    %v86 = vmul.f32 %v82, %v69
    %v87 = vmul.f32 %v85, %v69
    %v88 = vadd.f32 %v86, 1e-12
    %v89 = vadd.f32 %v87, 1e-12
    %v90 = vrsqrt.pop %v88
    %v91 = vmul.f32 %v90, %v88
    %v92 = vmul.f32 %v91, %v90
    %v93 = vmul.f32 0.5, %v92
    %v94 = vsub.f32 1.5, %v93
    %v95 = vmul.f32 %v90, %v94
    %vm96 = vweird.f32 %v88
    %vm97 = vweird.f32 %v90
    %vm98 = vmor %vm96, %vm97
    %v99 = vsel %vm98, %v90, %v95
    %v100 = vrsqrt.pop %v89
    %v101 = vmul.f32 %v100, %v89
    %v102 = vmul.f32 %v101, %v100
    %v103 = vmul.f32 0.5, %v102
    %v104 = vsub.f32 1.5, %v103
    %v105 = vmul.f32 %v100, %v104
    %vm106 = vweird.f32 %v89
    %vm107 = vweird.f32 %v100
    %vm108 = vmor %vm106, %vm107
    %v109 = vsel %vm108, %v100, %v105
    %v110 = vmul.f32 %v72, %v99
    %v111 = vmul.f32 %v73, %v99
    %v112 = vmul.f32 %v74, %v109
    %v113 = vmul.f32 %v75, %v109
    %v114 = vld [vmem:[#allocation2] sm:$0x3]
    %v116 = vperm.slane %v114, 0
    %v117 = vperm.slane %v114, 1
    %v120 = vmul.f32 %v110, %v116
    %v121 = vmul.f32 %v111, %v117
    %v122 = vmul.f32 %v112, %v116
    %v123 = vmul.f32 %v113, %v117
    %v124 = vld [vmem:[#allocation4] sm:$0x3]
    %v126 = vperm.slane %v124, 0
    %v127 = vperm.slane %v124, 1
    %v130 = vadd.f32 %v120, %v126
    %v131 = vadd.f32 %v121, %v127
    %v132 = vadd.f32 %v122, %v126
    %v133 = vadd.f32 %v123, %v127
    %134 = vst [vmem:[%s4] sm:$0xff] %v130
    %135 = vst [vmem:[%s4 + $0x8] sm:$0xff] %v131
    %136 = vst [vmem:[%s4 + $0x10] sm:$0xff] %v132
    %137 = vst [vmem:[%s4 + $0x18] sm:$0xff] %v133
    // Predicated region
    $region26: #{transformer_block_forward.14} parent=1 // pred_check
      _
    $region27: #{transformer_block_forward.14} parent=1 // pred_check_branch
      %139 = sbr.rel (0) target = $region29
    $region28: #{transformer_block_forward.14} parent=1 // pred_region
      _
    $region29: #{transformer_block_forward.14} parent=1 // pred_fallthru
      _
    // Predicated region
    $region30: #{transformer_block_forward.14} parent=1 // pred_check
      _
    $region31: #{transformer_block_forward.14} parent=1 // pred_check_branch
      %141 = sbr.rel (0) target = $region33
    $region32: #{transformer_block_forward.14} parent=1 // pred_region
      _
    $region33: #{transformer_block_forward.14} parent=1 // pred_fallthru
      _
    %142 = vsyncpa [#allocation3], 1
    %143 = vsyncpa [#allocation5], 1

// kernel: transformer_block_forward.17
$region0: #{transformer_block_forward.17}
  #allocation0 [shape = 'u32[]', space=smem, size = 0x4, offset = 0x4, fixed_abs, tag = 'smem constant byte address 0x4 - core index']
  #allocation1 [shape = 'u32[72,128]{1,0:T(1,128)}', space=vmem, size = 0x9000, scoped, tag = 'internal scratch']
  #allocation2 [shape = 'f32[16,256]{1,0:T(8,128)}', space=vmem, size = 0x4000, scoped, tag = 'scratch operand']
  %s0 = inlined_call_operand.vmem [shape: f32[16,256], index: 0, kind: input, shape index: {}]
  %s1 = inlined_call_operand.vmem [shape: bf16[256,256], index: 1, kind: input, shape index: {}]
  %s2 = inlined_call_operand.vmem [shape: f32[1,256], index: 2, kind: input, shape index: {}]
  %s3 = inlined_call_operand.vmem [shape: f32[16,256], index: 3, kind: input, shape index: {}]
  %s4 = inlined_call_operand.vmem [shape: f32[1,256], index: 4, kind: input, shape index: {}]
  %s5 = inlined_call_operand.vmem [shape: f32[1,256], index: 5, kind: input, shape index: {}]
  %s6 = inlined_call_operand.vmem [shape: f32[16,256], index: 6, kind: output, shape index: {}]
  %s7 = sld [smem:[#allocation0]]
  $region42: #{transformer_block_forward.17} parent=0
    _
  %s9 = ssub.s32 1, %s7
  %s10 = scalar_select 0, %s9, %s7
  // Predicated region
  $region2: #{transformer_block_forward.17} parent=0 // pred_check
    _
  $region3: #{transformer_block_forward.17} parent=0 // pred_check_branch
    %12 = sbr.rel (0) target = $region5
  $region4: #{transformer_block_forward.17} parent=0 // pred_region
    _
  $region5: #{transformer_block_forward.17} parent=0 // pred_fallthru
    _
  // Predicated region
  $region6: #{transformer_block_forward.17} parent=0 // pred_check
    _
  $region7: #{transformer_block_forward.17} parent=0 // pred_check_branch
    %14 = sbr.rel (0) target = $region9
  $region8: #{transformer_block_forward.17} parent=0 // pred_region
    _
  $region9: #{transformer_block_forward.17} parent=0 // pred_fallthru
    _
  // Predicated region
  $region10: #{transformer_block_forward.17} parent=0 // pred_check
    _
  $region11: #{transformer_block_forward.17} parent=0 // pred_check_branch
    %16 = sbr.rel (0) target = $region13
  $region12: #{transformer_block_forward.17} parent=0 // pred_region
    _
  $region13: #{transformer_block_forward.17} parent=0 // pred_fallthru
    _
  // Predicated region
  $region14: #{transformer_block_forward.17} parent=0 // pred_check
    _
  $region15: #{transformer_block_forward.17} parent=0 // pred_check_branch
    %18 = sbr.rel (0) target = $region17
  $region16: #{transformer_block_forward.17} parent=0 // pred_region
    _
  $region17: #{transformer_block_forward.17} parent=0 // pred_fallthru
    _
  // Predicated region
  $region18: #{transformer_block_forward.17} parent=0 // pred_check
    _
  $region19: #{transformer_block_forward.17} parent=0 // pred_check_branch
    %20 = sbr.rel (0) target = $region21
  $region20: #{transformer_block_forward.17} parent=0 // pred_region
    _
  $region21: #{transformer_block_forward.17} parent=0 // pred_fallthru
    _
  // Predicated region
  $region22: #{transformer_block_forward.17} parent=0 // pred_check
    _
  $region23: #{transformer_block_forward.17} parent=0 // pred_check_branch
    %22 = sbr.rel (0) target = $region25
  $region24: #{transformer_block_forward.17} parent=0 // pred_region
    _
  $region25: #{transformer_block_forward.17} parent=0 // pred_fallthru
    _
  %p23 = scmp.eq.s32.totalorder 0, 0
  // Predicated region
  $region26: #{transformer_block_forward.17} parent=0 // pred_check
    %p24 = pneg %p23
  $region27: #{transformer_block_forward.17} parent=0 // pred_check_branch
    %26 = sbr.rel (%p24) target = $region29
  $region28: #{transformer_block_forward.17} parent=0 // pred_region
    %27 = vst [vmem:[#allocation2] sm:$0xff] 0.0
    %28 = vst [vmem:[#allocation2 + $0x8] sm:$0xff] 0.0
    %29 = vst [vmem:[#allocation2 + $0x10] sm:$0xff] 0.0
    %30 = vst [vmem:[#allocation2 + $0x18] sm:$0xff] 0.0
  $region29: #{transformer_block_forward.17} parent=0 // pred_fallthru
    _
  %v31 = vld [vmem:[#allocation2] sm:$0xff]
  %v32 = vld [vmem:[#allocation2 + $0x8] sm:$0xff]
  %v33 = vld [vmem:[#allocation2 + $0x10] sm:$0xff]
  %v34 = vld [vmem:[#allocation2 + $0x18] sm:$0xff]
  %v35 = vld [vmem:[%s0] sm:$0xff]
  %v36 = vld [vmem:[%s0 + $0x8] sm:$0xff]
  %v37 = vld [vmem:[%s0 + $0x10] sm:$0xff]
  %v38 = vld [vmem:[%s0 + $0x18] sm:$0xff]
  %v39 = vpack.c.bf16 %v37, %v35
  %v40 = vpack.c.bf16 %v38, %v36
  %v41 = vld [vmem:[%s1] sm:$0xff]
  %v42 = vld [vmem:[%s1 + $0x8] sm:$0xff]
  %v43 = vld [vmem:[%s1 + $0x10] sm:$0xff]
  %v44 = vld [vmem:[%s1 + $0x18] sm:$0xff]
  %v45 = vld [vmem:[%s1 + $0x20] sm:$0xff]
  %v46 = vld [vmem:[%s1 + $0x28] sm:$0xff]
  %v47 = vld [vmem:[%s1 + $0x30] sm:$0xff]
  %v48 = vld [vmem:[%s1 + $0x38] sm:$0xff]
  %v49 = vld [vmem:[%s1 + $0x40] sm:$0xff]
  %v50 = vld [vmem:[%s1 + $0x48] sm:$0xff]
  %v51 = vld [vmem:[%s1 + $0x50] sm:$0xff]
  %v52 = vld [vmem:[%s1 + $0x58] sm:$0xff]
  %v53 = vld [vmem:[%s1 + $0x60] sm:$0xff]
  %v54 = vld [vmem:[%s1 + $0x68] sm:$0xff]
  %v55 = vld [vmem:[%s1 + $0x70] sm:$0xff]
  %v56 = vld [vmem:[%s1 + $0x78] sm:$0xff]
  %v57 = vld [vmem:[%s1 + $0x80] sm:$0xff]
  %v58 = vld [vmem:[%s1 + $0x88] sm:$0xff]
  %v59 = vld [vmem:[%s1 + $0x90] sm:$0xff]
  %v60 = vld [vmem:[%s1 + $0x98] sm:$0xff]
  %v61 = vld [vmem:[%s1 + $0xa0] sm:$0xff]
  %v62 = vld [vmem:[%s1 + $0xa8] sm:$0xff]
  %v63 = vld [vmem:[%s1 + $0xb0] sm:$0xff]
  %v64 = vld [vmem:[%s1 + $0xb8] sm:$0xff]
  %v65 = vld [vmem:[%s1 + $0xc0] sm:$0xff]
  %v66 = vld [vmem:[%s1 + $0xc8] sm:$0xff]
  %v67 = vld [vmem:[%s1 + $0xd0] sm:$0xff]
  %v68 = vld [vmem:[%s1 + $0xd8] sm:$0xff]
  %v69 = vld [vmem:[%s1 + $0xe0] sm:$0xff]
  %v70 = vld [vmem:[%s1 + $0xe8] sm:$0xff]
  %v71 = vld [vmem:[%s1 + $0xf0] sm:$0xff]
  %v72 = vld [vmem:[%s1 + $0xf8] sm:$0xff]
  %v105 = vunpack.c.l.b16 %v41
  %v106 = vunpack.c.h.b16 %v41
  %v107 = vunpack.c.l.b16 %v42
  %v108 = vunpack.c.h.b16 %v42
  %v109 = vunpack.c.l.b16 %v43
  %v110 = vunpack.c.h.b16 %v43
  %v111 = vunpack.c.l.b16 %v44
  %v112 = vunpack.c.h.b16 %v44
  %v113 = vunpack.c.l.b16 %v45
  %v114 = vunpack.c.h.b16 %v45
  %v115 = vunpack.c.l.b16 %v46
  %v116 = vunpack.c.h.b16 %v46
  %v117 = vunpack.c.l.b16 %v47
  %v118 = vunpack.c.h.b16 %v47
  %v119 = vunpack.c.l.b16 %v48
  %v120 = vunpack.c.h.b16 %v48
  %v121 = vunpack.c.l.b16 %v49
  %v122 = vunpack.c.h.b16 %v49
  %v123 = vunpack.c.l.b16 %v50
  %v124 = vunpack.c.h.b16 %v50
  %v125 = vunpack.c.l.b16 %v51
  %v126 = vunpack.c.h.b16 %v51
  %v127 = vunpack.c.l.b16 %v52
  %v128 = vunpack.c.h.b16 %v52
  %v129 = vunpack.c.l.b16 %v53
  %v130 = vunpack.c.h.b16 %v53
  %v131 = vunpack.c.l.b16 %v54
  %v132 = vunpack.c.h.b16 %v54
  %v133 = vunpack.c.l.b16 %v55
  %v134 = vunpack.c.h.b16 %v55
  %v135 = vunpack.c.l.b16 %v56
  %v136 = vunpack.c.h.b16 %v56
  %v137 = vunpack.c.l.b16 %v57
  %v138 = vunpack.c.h.b16 %v57
  %v139 = vunpack.c.l.b16 %v58
  %v140 = vunpack.c.h.b16 %v58
  %v141 = vunpack.c.l.b16 %v59
  %v142 = vunpack.c.h.b16 %v59
  %v143 = vunpack.c.l.b16 %v60
  %v144 = vunpack.c.h.b16 %v60
  %v145 = vunpack.c.l.b16 %v61
  %v146 = vunpack.c.h.b16 %v61
  %v147 = vunpack.c.l.b16 %v62
  %v148 = vunpack.c.h.b16 %v62
  %v149 = vunpack.c.l.b16 %v63
  %v150 = vunpack.c.h.b16 %v63
  %v151 = vunpack.c.l.b16 %v64
  %v152 = vunpack.c.h.b16 %v64
  %v153 = vunpack.c.l.b16 %v65
  %v154 = vunpack.c.h.b16 %v65
  %v155 = vunpack.c.l.b16 %v66
  %v156 = vunpack.c.h.b16 %v66
  %v157 = vunpack.c.l.b16 %v67
  %v158 = vunpack.c.h.b16 %v67
  %v159 = vunpack.c.l.b16 %v68
  %v160 = vunpack.c.h.b16 %v68
  %v161 = vunpack.c.l.b16 %v69
  %v162 = vunpack.c.h.b16 %v69
  %v163 = vunpack.c.l.b16 %v70
  %v164 = vunpack.c.h.b16 %v70
  %v165 = vunpack.c.l.b16 %v71
  %v166 = vunpack.c.h.b16 %v71
  %v167 = vunpack.c.l.b16 %v72
  %v168 = vunpack.c.h.b16 %v72
  %v169 = vpack.c.b16 %v107, %v105
  %v170 = vpack.c.b16 %v108, %v106
  %v171 = vpack.c.b16 %v111, %v109
  %v172 = vpack.c.b16 %v112, %v110
  %v173 = vpack.c.b16 %v115, %v113
  %v174 = vpack.c.b16 %v116, %v114
  %v175 = vpack.c.b16 %v119, %v117
  %v176 = vpack.c.b16 %v120, %v118
  %v177 = vpack.c.b16 %v123, %v121
  %v178 = vpack.c.b16 %v124, %v122
  %v179 = vpack.c.b16 %v127, %v125
  %v180 = vpack.c.b16 %v128, %v126
  %v181 = vpack.c.b16 %v131, %v129
  %v182 = vpack.c.b16 %v132, %v130
  %v183 = vpack.c.b16 %v135, %v133
  %v184 = vpack.c.b16 %v136, %v134
  %v185 = vpack.c.b16 %v139, %v137
  %v186 = vpack.c.b16 %v140, %v138
  %v187 = vpack.c.b16 %v143, %v141
  %v188 = vpack.c.b16 %v144, %v142
  %v189 = vpack.c.b16 %v147, %v145
  %v190 = vpack.c.b16 %v148, %v146
  %v191 = vpack.c.b16 %v151, %v149
  %v192 = vpack.c.b16 %v152, %v150
  %v193 = vpack.c.b16 %v155, %v153
  %v194 = vpack.c.b16 %v156, %v154
  %v195 = vpack.c.b16 %v159, %v157
  %v196 = vpack.c.b16 %v160, %v158
  %v197 = vpack.c.b16 %v163, %v161
  %v198 = vpack.c.b16 %v164, %v162
  %v199 = vpack.c.b16 %v167, %v165
  %v200 = vpack.c.b16 %v168, %v166
  %233 = vmatpush.bf16.msra.mxu0 %v183
  %234 = vmatpush.bf16.msra.mxu0 %v181
  %235 = vmatpush.bf16.msra.mxu0 %v179
  %236 = vmatpush.bf16.msra.mxu0 %v177
  %237 = vmatpush.bf16.msra.mxu0 %v175
  %238 = vmatpush.bf16.msra.mxu0 %v173
  %239 = vmatpush.bf16.msra.mxu0 %v171
  %240 = vmatpush.bf16.msra.mxu0 %v169
  %241 = vmatmul.bf16.gmra.mxu0 %v39
  %v242 = vpop.f32.mrf.mxu0
  %v243 = vadd.f32 0.0, %v242
  %v244 = vpop.f32.mrf.mxu0
  %v245 = vadd.f32 0.0, %v244
  %246 = vdwg.mxu0
  %247 = vmatpush.bf16.msra.mxu0 %v199
  %248 = vmatpush.bf16.msra.mxu0 %v197
  %249 = vmatpush.bf16.msra.mxu0 %v195
  %250 = vmatpush.bf16.msra.mxu0 %v193
  %251 = vmatpush.bf16.msra.mxu0 %v191
  %252 = vmatpush.bf16.msra.mxu0 %v189
  %253 = vmatpush.bf16.msra.mxu0 %v187
  %254 = vmatpush.bf16.msra.mxu0 %v185
  %255 = vmatmul.bf16.gmra.mxu0 %v40
  %v256 = vpop.f32.mrf.mxu0
  %v257 = vadd.f32 %v243, %v256
  %v258 = vpop.f32.mrf.mxu0
  %v259 = vadd.f32 %v245, %v258
  %260 = vdwg.mxu0
  %261 = vmatpush.bf16.msra.mxu0 %v184
  %262 = vmatpush.bf16.msra.mxu0 %v182
  %263 = vmatpush.bf16.msra.mxu0 %v180
  %264 = vmatpush.bf16.msra.mxu0 %v178
  %265 = vmatpush.bf16.msra.mxu0 %v176
  %266 = vmatpush.bf16.msra.mxu0 %v174
  %267 = vmatpush.bf16.msra.mxu0 %v172
  %268 = vmatpush.bf16.msra.mxu0 %v170
  %269 = vmatmul.bf16.gmra.mxu0 %v39
  %v270 = vpop.f32.mrf.mxu0
  %v271 = vadd.f32 0.0, %v270
  %v272 = vpop.f32.mrf.mxu0
  %v273 = vadd.f32 0.0, %v272
  %274 = vdwg.mxu0
  %275 = vmatpush.bf16.msra.mxu0 %v200
  %276 = vmatpush.bf16.msra.mxu0 %v198
  %277 = vmatpush.bf16.msra.mxu0 %v196
  %278 = vmatpush.bf16.msra.mxu0 %v194
  %279 = vmatpush.bf16.msra.mxu0 %v192
  %280 = vmatpush.bf16.msra.mxu0 %v190
  %281 = vmatpush.bf16.msra.mxu0 %v188
  %282 = vmatpush.bf16.msra.mxu0 %v186
  %283 = vmatmul.bf16.gmra.mxu0 %v40
  %v284 = vpop.f32.mrf.mxu0
  %v285 = vadd.f32 %v271, %v284
  %v286 = vpop.f32.mrf.mxu0
  %v287 = vadd.f32 %v273, %v286
  %288 = vdwg.mxu0
  %v289 = vadd.f32 %v31, %v257
  %v290 = vadd.f32 %v32, %v285
  %v291 = vadd.f32 %v33, %v259
  %v292 = vadd.f32 %v34, %v287
  %293 = vst [vmem:[#allocation2] sm:$0xff] %v289
  %294 = vst [vmem:[#allocation2 + $0x8] sm:$0xff] %v290
  %295 = vst [vmem:[#allocation2 + $0x10] sm:$0xff] %v291
  %296 = vst [vmem:[#allocation2 + $0x18] sm:$0xff] %v292
  // Predicated region
  $region30: #{transformer_block_forward.17} parent=0 // pred_check
    %p297 = pneg %p23
  $region31: #{transformer_block_forward.17} parent=0 // pred_check_branch
    %299 = sbr.rel (%p297) target = $region33
  $region32: #{transformer_block_forward.17} parent=0 // pred_region
    %v300 = vld [vmem:[#allocation2] sm:$0xff]
    %v301 = vld [vmem:[#allocation2 + $0x8] sm:$0xff]
    %v302 = vld [vmem:[#allocation2 + $0x10] sm:$0xff]
    %v303 = vld [vmem:[#allocation2 + $0x18] sm:$0xff]
    %v304 = vld [vmem:[%s2] sm:$0x3]
    %v306 = vperm.slane %v304, 0
    %v307 = vperm.slane %v304, 1
    %v310 = vadd.f32 %v300, %v306
    %v311 = vadd.f32 %v301, %v307
    %v312 = vadd.f32 %v302, %v306
    %v313 = vadd.f32 %v303, %v307
    %v314 = vld [vmem:[%s3] sm:$0xff]
    %v315 = vld [vmem:[%s3 + $0x8] sm:$0xff]
    %v316 = vld [vmem:[%s3 + $0x10] sm:$0xff]
    %v317 = vld [vmem:[%s3 + $0x18] sm:$0xff]
    %v318 = vadd.f32 %v310, %v314
    %v319 = vadd.f32 %v311, %v315
    %v320 = vadd.f32 %v312, %v316
    %v321 = vadd.f32 %v313, %v317
    %v322 = vadd.f32 %v318, %v319
    %323 = vadd.xlane.f32.xlu0 %v322
    %v324 = vpop.xlane.xlu0 %323
    %v325 = vadd.f32 %v320, %v321
    %326 = vadd.xlane.f32.xlu0 %v325
    %v327 = vpop.xlane.xlu0 %326
    %v328 = vrcp.pop 256.0
    %v329 = vmul.f32 256.0, %v328
    %v330 = vsub.f32 1.0, %v329
    %v331 = vmul.f32 %v328, %v330
    %v332 = vadd.f32 %v328, %v331
    %vm333 = vweird.f32 %v328
    %v334 = vsel %vm333, %v328, %v332
    %v335 = vmul.f32 %v324, %v334
    %v336 = vmul.f32 %v327, %v334
    %v337 = vsub.f32 %v318, %v335
    %v338 = vsub.f32 %v319, %v335
    %v339 = vsub.f32 %v320, %v336
    %v340 = vsub.f32 %v321, %v336
    %v341 = vmul.f32 %v337, %v337
    %v342 = vmul.f32 %v338, %v338
    %v343 = vmul.f32 %v339, %v339
    %v344 = vmul.f32 %v340, %v340
    %v345 = vadd.f32 %v341, %v342
    %346 = vadd.xlane.f32.xlu0 %v345
    %v347 = vpop.xlane.xlu0 %346
    %v348 = vadd.f32 %v343, %v344
    %349 = vadd.xlane.f32.xlu0 %v348
    %v350 = vpop.xlane.xlu0 %349
    %v351 = vmul.f32 %v347, %v334
    %v352 = vmul.f32 %v350, %v334
    %v353 = vadd.f32 %v351, 1e-12
    %v354 = vadd.f32 %v352, 1e-12
    %v355 = vrsqrt.pop %v353
    %v356 = vmul.f32 %v355, %v353
    %v357 = vmul.f32 %v356, %v355
    %v358 = vmul.f32 0.5, %v357
    %v359 = vsub.f32 1.5, %v358
    %v360 = vmul.f32 %v355, %v359
    %vm361 = vweird.f32 %v353
    %vm362 = vweird.f32 %v355
    %vm363 = vmor %vm361, %vm362
    %v364 = vsel %vm363, %v355, %v360
    %v365 = vrsqrt.pop %v354
    %v366 = vmul.f32 %v365, %v354
    %v367 = vmul.f32 %v366, %v365
    %v368 = vmul.f32 0.5, %v367
    %v369 = vsub.f32 1.5, %v368
    %v370 = vmul.f32 %v365, %v369
    %vm371 = vweird.f32 %v354
    %vm372 = vweird.f32 %v365
    %vm373 = vmor %vm371, %vm372
    %v374 = vsel %vm373, %v365, %v370
    %v375 = vmul.f32 %v337, %v364
    %v376 = vmul.f32 %v338, %v364
    %v377 = vmul.f32 %v339, %v374
    %v378 = vmul.f32 %v340, %v374
    %v379 = vld [vmem:[%s4] sm:$0x3]
    %v381 = vperm.slane %v379, 0
    %v382 = vperm.slane %v379, 1
    %v385 = vmul.f32 %v375, %v381
    %v386 = vmul.f32 %v376, %v382
    %v387 = vmul.f32 %v377, %v381
    %v388 = vmul.f32 %v378, %v382
    %v389 = vld [vmem:[%s5] sm:$0x3]
    %v391 = vperm.slane %v389, 0
    %v392 = vperm.slane %v389, 1
    %v395 = vadd.f32 %v385, %v391
    %v396 = vadd.f32 %v386, %v392
    %v397 = vadd.f32 %v387, %v391
    %v398 = vadd.f32 %v388, %v392
    %399 = vst [vmem:[%s6] sm:$0xff] %v395
    %400 = vst [vmem:[%s6 + $0x8] sm:$0xff] %v396
    %401 = vst [vmem:[%s6 + $0x10] sm:$0xff] %v397
    %402 = vst [vmem:[%s6 + $0x18] sm:$0xff] %v398
  $region33: #{transformer_block_forward.17} parent=0 // pred_fallthru
    _
  // Predicated region
  $region34: #{transformer_block_forward.17} parent=0 // pred_check
    _
  $region35: #{transformer_block_forward.17} parent=0 // pred_check_branch
    %404 = sbr.rel (0) target = $region37
  $region36: #{transformer_block_forward.17} parent=0 // pred_region
    _
  $region37: #{transformer_block_forward.17} parent=0 // pred_fallthru
    _
  // Predicated region
  $region38: #{transformer_block_forward.17} parent=0 // pred_check
    _
  $region39: #{transformer_block_forward.17} parent=0 // pred_check_branch
    %406 = sbr.rel (0) target = $region41
  $region40: #{transformer_block_forward.17} parent=0 // pred_region
    _
  $region41: #{transformer_block_forward.17} parent=0 // pred_fallthru
    _

// kernel: transformer_block_forward.19
$region0: #{transformer_block_forward.19}
  #allocation0 [shape = 'u32[]', space=smem, size = 0x4, offset = 0x4, fixed_abs, tag = 'smem constant byte address 0x4 - core index']
  #allocation1 [shape = 'u32[72,128]{1,0:T(1,128)}', space=vmem, size = 0x9000, scoped, tag = 'internal scratch']
  #allocation2 [shape = 'f32[16,256]{1,0:T(8,128)}', space=vmem, size = 0x4000, scoped, tag = 'scratch operand']
  %s0 = inlined_call_operand.vmem [shape: f32[16,1024], index: 0, kind: input, shape index: {}]
  %s1 = inlined_call_operand.vmem [shape: bf16[1024,256], index: 1, kind: input, shape index: {}]
  %s2 = inlined_call_operand.vmem [shape: f32[1,256], index: 2, kind: input, shape index: {}]
  %s3 = inlined_call_operand.vmem [shape: f32[16,256], index: 3, kind: input, shape index: {}]
  %s4 = inlined_call_operand.vmem [shape: f32[1,256], index: 4, kind: input, shape index: {}]
  %s5 = inlined_call_operand.vmem [shape: f32[1,256], index: 5, kind: input, shape index: {}]
  %s6 = inlined_call_operand.vmem [shape: f32[16,256], index: 6, kind: output, shape index: {}]
  %s7 = sld [smem:[#allocation0]]
  $region88: #{transformer_block_forward.19} parent=0
    _
  %s9 = ssub.s32 1, %s7
  %s10 = scalar_select 0, %s9, %s7
  $region1: #{transformer_block_forward.19} parent=0
    #allocation3 [shape = 'u8[65536]{0}', space=vmem, size = 0x10000, scoped, tag = 'input window, operand 0']
    loop: start=0, step=1, limit=4
    $region2: #{transformer_block_forward.19} parent=1 // loop_pre_header
      _
    $region3: #{transformer_block_forward.19} parent=1 // loop_header
      %s12 = sphi 0, %s16
      %p13 = scmp.ge.s32.totalorder %s12, 4
      %s19 = sphi 0, %s31
      %s20 = sphi 0, %s27
      %s21 = sphi 0, %s19
      %s22 = sphi 0, %s20
      %s23 = sphi 0, %s21
      %s24 = sphi 0, %s22
      %s36 = sphi 0, %s38
      %s39 = sphi 0, %s36
      %s40 = sphi 0, %s39
      %s56 = sphi 0, %s40
      %s62 = sphi 0, %s64
      %s65 = sphi 0, %s62
      %s66 = sphi 0, %s65
      %s82 = sphi 0, %s66
      %s86 = sphi 0, %s86
      %s88 = sphi 0, %s86
      %s89 = sphi 0, %s88
      %s103 = sphi 0, %s89
      %s109 = sphi 0, %s111
      %s112 = sphi 0, %s109
      %s113 = sphi 0, %s112
      %s129 = sphi 0, %s113
      %s133 = sphi 0, %s133
      %s135 = sphi 0, %s133
      %s136 = sphi 0, %s135
      %s150 = sphi 0, %s136
      %s154 = sphi 0, %s154
      %s156 = sphi 0, %s154
      %s157 = sphi 0, %s156
      %s171 = sphi 0, %s157
      %s177 = sphi 0, %s179
      %s180 = sphi 0, %s177
      %s181 = sphi 0, %s180
      %s197 = sphi 0, %s181
    $region4: #{transformer_block_forward.19} parent=1 // loop_header_branch
      %15 = sbr.rel (%p13) target = $region8
    $region5: #{transformer_block_forward.19} parent=1 // loop_body
      %s17 = ssub.s32 %s12, 1
      %s18 = ssub.s32 %s12, 2
      %s25 = sadd.s32 1, %s20
      %p26 = scmp.ge.s32.totalorder %s25, 2
      %s27 = scalar_select %p26, 0, %s25
      %s28 = sadd.s32 1, %s19
      %s29 = scalar_select %p26, %s28, %s19
      %p30 = scmp.ge.s32.totalorder %s29, 1
      %s31 = scalar_select %p30, 0, %s29
      %s32 = ssub.s32 %s19, %s31
      %s33 = ssub.s32 %s20, %s27
      %s34 = sor.u32 %s32, %s33
      %p35 = scmp.eq.s32.totalorder %s34, 0
      %s37 = sadd.s32 %s36, 1
      %s38 = scalar_select %p35, %s36, %s37
      %p41 = pneg %p35
      %p42 = scmp.eq.s32.totalorder %s12, 1
      %p43 = por %p41, %p42
      %p44 = scmp.ne.s32.totalorder %s36, %s39
      %p45 = scmp.eq.s32.totalorder %s12, 0
      %p46 = por %p44, %p45
      %p47 = scmp.ne.s32.totalorder %s36, %s39
      %p48 = scmp.eq.s32.totalorder %s17, 1
      %p49 = por %p47, %p48
      %p50 = scmp.ne.s32.totalorder %s39, %s40
      %p51 = scmp.eq.s32.totalorder %s17, 0
      %p52 = por %p50, %p51
      %p53 = scmp.ne.s32.totalorder %s39, %s40
      %p54 = scmp.eq.s32.totalorder %s18, 1
      %p55 = por %p53, %p54
      %p57 = scmp.ne.s32.totalorder %s40, %s56
      %p58 = scmp.eq.s32.totalorder %s18, 0
      %p59 = por %p57, %p58
      %s60 = ssub.s32 %s20, %s27
      %p61 = scmp.eq.s32.totalorder %s60, 0
      %s63 = sadd.s32 %s62, 1
      %s64 = scalar_select %p61, %s62, %s63
      %p67 = pneg %p61
      %p68 = scmp.eq.s32.totalorder %s12, 1
      %p69 = por %p67, %p68
      %p70 = scmp.ne.s32.totalorder %s62, %s65
      %p71 = scmp.eq.s32.totalorder %s12, 0
      %p72 = por %p70, %p71
      %p73 = scmp.ne.s32.totalorder %s62, %s65
      %p74 = scmp.eq.s32.totalorder %s17, 1
      %p75 = por %p73, %p74
      %p76 = scmp.ne.s32.totalorder %s65, %s66
      %p77 = scmp.eq.s32.totalorder %s17, 0
      %p78 = por %p76, %p77
      %p79 = scmp.ne.s32.totalorder %s65, %s66
      %p80 = scmp.eq.s32.totalorder %s18, 1
      %p81 = por %p79, %p80
      %p83 = scmp.ne.s32.totalorder %s66, %s82
      %p84 = scmp.eq.s32.totalorder %s18, 0
      %p85 = por %p83, %p84
      %s87 = sadd.s32 %s86, 1
      %p90 = scmp.eq.s32.totalorder %s12, 1
      %p91 = scmp.ne.s32.totalorder %s86, %s88
      %p92 = scmp.eq.s32.totalorder %s12, 0
      %p93 = por %p91, %p92
      %p94 = scmp.ne.s32.totalorder %s86, %s88
      %p95 = scmp.eq.s32.totalorder %s17, 1
      %p96 = por %p94, %p95
      %p97 = scmp.ne.s32.totalorder %s88, %s89
      %p98 = scmp.eq.s32.totalorder %s17, 0
      %p99 = por %p97, %p98
      %p100 = scmp.ne.s32.totalorder %s88, %s89
      %p101 = scmp.eq.s32.totalorder %s18, 1
      %p102 = por %p100, %p101
      %p104 = scmp.ne.s32.totalorder %s89, %s103
      %p105 = scmp.eq.s32.totalorder %s18, 0
      %p106 = por %p104, %p105
      %s107 = ssub.s32 %s19, %s31
      %p108 = scmp.eq.s32.totalorder %s107, 0
      %s110 = sadd.s32 %s109, 1
      %s111 = scalar_select %p108, %s109, %s110
      %p114 = pneg %p108
      %p115 = scmp.eq.s32.totalorder %s12, 1
      %p116 = por %p114, %p115
      %p117 = scmp.ne.s32.totalorder %s109, %s112
      %p118 = scmp.eq.s32.totalorder %s12, 0
      %p119 = por %p117, %p118
      %p120 = scmp.ne.s32.totalorder %s109, %s112
      %p121 = scmp.eq.s32.totalorder %s17, 1
      %p122 = por %p120, %p121
      %p123 = scmp.ne.s32.totalorder %s112, %s113
      %p124 = scmp.eq.s32.totalorder %s17, 0
      %p125 = por %p123, %p124
      %p126 = scmp.ne.s32.totalorder %s112, %s113
      %p127 = scmp.eq.s32.totalorder %s18, 1
      %p128 = por %p126, %p127
      %p130 = scmp.ne.s32.totalorder %s113, %s129
      %p131 = scmp.eq.s32.totalorder %s18, 0
      %p132 = por %p130, %p131
      %s134 = sadd.s32 %s133, 1
      %p137 = scmp.eq.s32.totalorder %s12, 1
      %p138 = scmp.ne.s32.totalorder %s133, %s135
      %p139 = scmp.eq.s32.totalorder %s12, 0
      %p140 = por %p138, %p139
      %p141 = scmp.ne.s32.totalorder %s133, %s135
      %p142 = scmp.eq.s32.totalorder %s17, 1
      %p143 = por %p141, %p142
      %p144 = scmp.ne.s32.totalorder %s135, %s136
      %p145 = scmp.eq.s32.totalorder %s17, 0
      %p146 = por %p144, %p145
      %p147 = scmp.ne.s32.totalorder %s135, %s136
      %p148 = scmp.eq.s32.totalorder %s18, 1
      %p149 = por %p147, %p148
      %p151 = scmp.ne.s32.totalorder %s136, %s150
      %p152 = scmp.eq.s32.totalorder %s18, 0
      %p153 = por %p151, %p152
      %s155 = sadd.s32 %s154, 1
      %p158 = scmp.eq.s32.totalorder %s12, 1
      %p159 = scmp.ne.s32.totalorder %s154, %s156
      %p160 = scmp.eq.s32.totalorder %s12, 0
      %p161 = por %p159, %p160
      %p162 = scmp.ne.s32.totalorder %s154, %s156
      %p163 = scmp.eq.s32.totalorder %s17, 1
      %p164 = por %p162, %p163
      %p165 = scmp.ne.s32.totalorder %s156, %s157
      %p166 = scmp.eq.s32.totalorder %s17, 0
      %p167 = por %p165, %p166
      %p168 = scmp.ne.s32.totalorder %s156, %s157
      %p169 = scmp.eq.s32.totalorder %s18, 1
      %p170 = por %p168, %p169
      %p172 = scmp.ne.s32.totalorder %s157, %s171
      %p173 = scmp.eq.s32.totalorder %s18, 0
      %p174 = por %p172, %p173
      %s175 = ssub.s32 %s19, %s31
      %p176 = scmp.eq.s32.totalorder %s175, 0
      %s178 = sadd.s32 %s177, 1
      %s179 = scalar_select %p176, %s177, %s178
      %p182 = pneg %p176
      %p183 = scmp.eq.s32.totalorder %s12, 1
      %p184 = por %p182, %p183
      %p185 = scmp.ne.s32.totalorder %s177, %s180
      %p186 = scmp.eq.s32.totalorder %s12, 0
      %p187 = por %p185, %p186
      %p188 = scmp.ne.s32.totalorder %s177, %s180
      %p189 = scmp.eq.s32.totalorder %s17, 1
      %p190 = por %p188, %p189
      %p191 = scmp.ne.s32.totalorder %s180, %s181
      %p192 = scmp.eq.s32.totalorder %s17, 0
      %p193 = por %p191, %p192
      %p194 = scmp.ne.s32.totalorder %s180, %s181
      %p195 = scmp.eq.s32.totalorder %s18, 1
      %p196 = por %p194, %p195
      %p198 = scmp.ne.s32.totalorder %s181, %s197
      %p199 = scmp.eq.s32.totalorder %s18, 0
      %p200 = por %p198, %p199
      %p201 = scmp.le.s32.totalorder 1, %s12
      %p202 = scmp.lt.s32.totalorder %s12, 3
      %p203 = pnand %p201, %p202
      %p204 = pneg %p203
      // Predicated region
      $region9: #{transformer_block_forward.19} parent=5 // pred_check
        _
      $region10: #{transformer_block_forward.19} parent=5 // pred_check_branch
        %206 = sbr.rel (%p203) target = $region12
      $region11: #{transformer_block_forward.19} parent=5 // pred_region
        %s207 = ssub.s32 %s12, 1
        // Predicated region
        $region13: #{transformer_block_forward.19} parent=11 // pred_check
          %p208 = pneg %p99
        $region14: #{transformer_block_forward.19} parent=11 // pred_check_branch
          %210 = sbr.rel (%p208) target = $region16
        $region15: #{transformer_block_forward.19} parent=11 // pred_region
          _
        $region16: #{transformer_block_forward.19} parent=11 // pred_fallthru
          _
        // Predicated region
        $region17: #{transformer_block_forward.19} parent=11 // pred_check
          %p211 = pneg %p125
        $region18: #{transformer_block_forward.19} parent=11 // pred_check_branch
          %213 = sbr.rel (%p211) target = $region20
        $region19: #{transformer_block_forward.19} parent=11 // pred_region
          %s214 = smul.u32 2, %s21
          %p215 = scmp.lt.s32.totalorder %s214, 1
          %s216 = scalar_select %p215, %s214, 1
          %s217 = smul.addr %s216, 2
          %s218 = smul.addr %s217, 8
          %s219 = scalar_lea.vmem %s3, %s218
          %s220 = smul.u32 2, %s21
        $region20: #{transformer_block_forward.19} parent=11 // pred_fallthru
          _
        // Predicated region
        $region21: #{transformer_block_forward.19} parent=11 // pred_check
          %p221 = pneg %p146
        $region22: #{transformer_block_forward.19} parent=11 // pred_check_branch
          %223 = sbr.rel (%p221) target = $region24
        $region23: #{transformer_block_forward.19} parent=11 // pred_region
          _
        $region24: #{transformer_block_forward.19} parent=11 // pred_fallthru
          _
        // Predicated region
        $region25: #{transformer_block_forward.19} parent=11 // pred_check
          %p224 = pneg %p167
        $region26: #{transformer_block_forward.19} parent=11 // pred_check_branch
          %226 = sbr.rel (%p224) target = $region28
        $region27: #{transformer_block_forward.19} parent=11 // pred_region
          _
        $region28: #{transformer_block_forward.19} parent=11 // pred_fallthru
          _
      $region12: #{transformer_block_forward.19} parent=5 // pred_fallthru
        _
      %p227 = scmp.lt.s32.totalorder %s12, 2
      // Predicated region
      $region29: #{transformer_block_forward.19} parent=5 // pred_check
        %p228 = pneg %p227
      $region30: #{transformer_block_forward.19} parent=5 // pred_check_branch
        %230 = sbr.rel (%p228) target = $region32
      $region31: #{transformer_block_forward.19} parent=5 // pred_region
        // Predicated region
        $region33: #{transformer_block_forward.19} parent=31 // pred_check
          %p231 = pneg %p46
        $region34: #{transformer_block_forward.19} parent=31 // pred_check_branch
          %233 = sbr.rel (%p231) target = $region36
        $region35: #{transformer_block_forward.19} parent=31 // pred_region
          %s234 = sand.u32 %s36, 1
          %s235 = sand.u32 %s36, 1
          %s236 = smul.addr %s235, 64
          %s237 = scalar_lea.vmem [#allocation3], %s236
          %s238 = smul.u32 2, %s19
          %s239 = smul.u32 4, %s20
          %s240 = smul.addr %s238, 8
          %s241 = sadd.s32 %s239, %s240
          %s242 = smul.addr %s241, 8
          %s243 = scalar_lea.vmem %s0, %s242
          // Predicated region
          $region37: #{transformer_block_forward.19} parent=35 // pred_check
            _
          $region38: #{transformer_block_forward.19} parent=35 // pred_check_branch
            %245 = sbr.rel (0) target = $region40
          $region39: #{transformer_block_forward.19} parent=35 // pred_region
            // Predicated region
            $region41: #{transformer_block_forward.19} parent=39 // pred_check
              _
            $region42: #{transformer_block_forward.19} parent=39 // pred_check_branch
              %247 = sbr.rel (0) target = $region44
            $region43: #{transformer_block_forward.19} parent=39 // pred_region
              loop: start=0, step=1, limit=1
              $region45: #{transformer_block_forward.19} parent=43 // loop_pre_header
                _
              $region46: #{transformer_block_forward.19} parent=43 // loop_header
                %s249 = sphi 0, %s253
                %p250 = scmp.ge.s32.totalorder %s249, 1
                %s254 = sphi %s243, %s243
                %s255 = sphi %s237, %s237
              $region47: #{transformer_block_forward.19} parent=43 // loop_header_branch
                %252 = sbr.rel (%p250) target = $region51
              $region48: #{transformer_block_forward.19} parent=43 // loop_body
                %v256 = vld [vmem:[%s254] sm:$0xff]
                %257 = vst [vmem:[%s255] sm:$0xff] %v256
                %v258 = vld [vmem:[%s254 + $0x8] sm:$0xff]
                %259 = vst [vmem:[%s255 + $0x8] sm:$0xff] %v258
                %v260 = vld [vmem:[%s254 + $0x10] sm:$0xff]
                %261 = vst [vmem:[%s255 + $0x10] sm:$0xff] %v260
                %v262 = vld [vmem:[%s254 + $0x18] sm:$0xff]
                %263 = vst [vmem:[%s255 + $0x18] sm:$0xff] %v262
                %v264 = vld [vmem:[%s254 + $0x40] sm:$0xff]
                %265 = vst [vmem:[%s255 + $0x20] sm:$0xff] %v264
                %v266 = vld [vmem:[%s254 + $0x48] sm:$0xff]
                %267 = vst [vmem:[%s255 + $0x28] sm:$0xff] %v266
                %v268 = vld [vmem:[%s254 + $0x50] sm:$0xff]
                %269 = vst [vmem:[%s255 + $0x30] sm:$0xff] %v268
                %v270 = vld [vmem:[%s254 + $0x58] sm:$0xff]
                %271 = vst [vmem:[%s255 + $0x38] sm:$0xff] %v270
              $region49: #{transformer_block_forward.19} parent=43 // loop_footer
                %s253 = sadd.s32 1, %s249
              $region50: #{transformer_block_forward.19} parent=43 // loop_footer_branch
                %248 = sbr.rel target = $region46
              $region51: #{transformer_block_forward.19} parent=43 // loop_exit
                _
            $region44: #{transformer_block_forward.19} parent=39 // pred_fallthru
              _
            // Predicated region
            $region52: #{transformer_block_forward.19} parent=39 // pred_check
              _
            $region53: #{transformer_block_forward.19} parent=39 // pred_check_branch
              %273 = sbr.rel target = $region55
            $region54: #{transformer_block_forward.19} parent=39 // pred_region
              _
            $region55: #{transformer_block_forward.19} parent=39 // pred_fallthru
              _
          $region40: #{transformer_block_forward.19} parent=35 // pred_fallthru
            _
          %274 = vnop
        $region36: #{transformer_block_forward.19} parent=31 // pred_fallthru
          _
        // Predicated region
        $region56: #{transformer_block_forward.19} parent=31 // pred_check
          %p275 = pneg %p72
        $region57: #{transformer_block_forward.19} parent=31 // pred_check_branch
          %277 = sbr.rel (%p275) target = $region59
        $region58: #{transformer_block_forward.19} parent=31 // pred_region
          %s278 = smul.u32 64, %s20
          %p279 = scmp.lt.s32.totalorder %s278, 127
          %s280 = scalar_select %p279, %s278, 127
          %s281 = smul.addr %s280, 2
          %s282 = smul.addr %s281, 4
          %s283 = scalar_lea.vmem %s1, %s282
          %s284 = smul.u32 64, %s20
        $region59: #{transformer_block_forward.19} parent=31 // pred_fallthru
          _
      $region32: #{transformer_block_forward.19} parent=5 // pred_fallthru
        _
      %p285 = scmp.le.s32.totalorder 1, %s12
      %p286 = scmp.lt.s32.totalorder %s12, 3
      %p287 = pnand %p285, %p286
      %p288 = pneg %p287
      // Predicated region
      $region60: #{transformer_block_forward.19} parent=5 // pred_check
        _
      $region61: #{transformer_block_forward.19} parent=5 // pred_check_branch
        %290 = sbr.rel (%p287) target = $region63
      $region62: #{transformer_block_forward.19} parent=5 // pred_region
        %s291 = ssub.s32 %s12, 1
        %s292 = sand.u32 %s39, 1
        %s293 = sand.u32 %s39, 1
        %s294 = smul.addr %s293, 64
        %s295 = scalar_lea.vmem [#allocation3], %s294
        // Predicated region
        $region64: #{transformer_block_forward.19} parent=62 // pred_check
          %p296 = pneg %p52
        $region65: #{transformer_block_forward.19} parent=62 // pred_check_branch
          %298 = sbr.rel (%p296) target = $region67
        $region66: #{transformer_block_forward.19} parent=62 // pred_region
          _
        $region67: #{transformer_block_forward.19} parent=62 // pred_fallthru
          _
        %s299 = sand.u32 %s39, 1
        %s300 = sand.u32 %s39, 1
        %s301 = smul.addr %s300, 64
        %s302 = scalar_lea.vmem [#allocation3], %s301
        %p303 = pneg %p52
        %p304 = pneg %p49
        %s305 = smul.u32 64, %s22
        %p306 = scmp.lt.s32.totalorder %s305, 127
        %s307 = scalar_select %p306, %s305, 127
        %s308 = smul.addr %s307, 2
        %s309 = smul.addr %s308, 4
        %s310 = scalar_lea.vmem %s1, %s309
        %p311 = pneg %p78
        %p312 = pneg %p75
        %p313 = pneg %p99
        %p314 = pneg %p96
        %s315 = smul.u32 2, %s21
        %p316 = scmp.lt.s32.totalorder %s315, 1
        %s317 = scalar_select %p316, %s315, 1
        %s318 = smul.addr %s317, 2
        %s319 = smul.addr %s318, 8
        %s320 = scalar_lea.vmem %s3, %s319
        %p321 = pneg %p125
        %p322 = pneg %p122
        %p323 = pneg %p146
        %p324 = pneg %p143
        %p325 = pneg %p167
        %p326 = pneg %p164
        %p327 = pneg %p193
        %p328 = pneg %p190
        %s329 = smul.u32 2, %s21
        %p330 = scmp.lt.s32.totalorder %s329, 1
        %s331 = scalar_select %p330, %s329, 1
        %s332 = smul.addr %s331, 2
        %s333 = smul.addr %s332, 8
        %s334 = scalar_lea.vmem %s6, %s333
        %s335 = smul.u32 2, %s21
        %s336 = smul.u32 4, %s22
        %s337 = smul.u32 64, %s22
        %p338 = scmp.lt.s32.totalorder %s337, 127
        %s339 = scalar_select %p338, %s337, 127
        %s340 = smul.addr %s339, 2
        %s341 = smul.addr %s340, 4
        %s342 = scalar_lea.vmem %s1, %s341
        %s343 = smul.u32 64, %s22
        %s344 = smul.u32 2, %s21
        %p345 = scmp.lt.s32.totalorder %s344, 1
        %s346 = scalar_select %p345, %s344, 1
        %s347 = smul.addr %s346, 2
        %s348 = smul.addr %s347, 8
        %s349 = scalar_lea.vmem %s3, %s348
        %s350 = smul.u32 2, %s21
        %s351 = smul.u32 2, %s21
        %p352 = scmp.lt.s32.totalorder %s351, 1
        %s353 = scalar_select %p352, %s351, 1
        %s354 = smul.addr %s353, 2
        %s355 = smul.addr %s354, 8
        %s356 = scalar_lea.vmem %s6, %s355
        %s357 = smul.u32 2, %s21
        %p358 = scmp.eq.s32.totalorder %s22, 0
        // Predicated region
        $region68: #{transformer_block_forward.19} parent=62 // pred_check
          %p359 = pneg %p358
        $region69: #{transformer_block_forward.19} parent=62 // pred_check_branch
          %361 = sbr.rel (%p359) target = $region71
        $region70: #{transformer_block_forward.19} parent=62 // pred_region
          %362 = vst [vmem:[#allocation2] sm:$0xff] 0.0
          %363 = vst [vmem:[#allocation2 + $0x8] sm:$0xff] 0.0
          %364 = vst [vmem:[#allocation2 + $0x10] sm:$0xff] 0.0
          %365 = vst [vmem:[#allocation2 + $0x18] sm:$0xff] 0.0
        $region71: #{transformer_block_forward.19} parent=62 // pred_fallthru
          _
        %v366 = vld [vmem:[#allocation2] sm:$0xff]
        %v367 = vld [vmem:[#allocation2 + $0x8] sm:$0xff]
        %v368 = vld [vmem:[#allocation2 + $0x10] sm:$0xff]
        %v369 = vld [vmem:[#allocation2 + $0x18] sm:$0xff]
        %v370 = vld [vmem:[%s295] sm:$0xff]
        %v371 = vld [vmem:[%s295 + $0x8] sm:$0xff]
        %v372 = vld [vmem:[%s295 + $0x10] sm:$0xff]
        %v373 = vld [vmem:[%s295 + $0x18] sm:$0xff]
        %v374 = vld [vmem:[%s295 + $0x20] sm:$0xff]
        %v375 = vld [vmem:[%s295 + $0x28] sm:$0xff]
        %v376 = vld [vmem:[%s295 + $0x30] sm:$0xff]
        %v377 = vld [vmem:[%s295 + $0x38] sm:$0xff]
        %v378 = vpack.c.bf16 %v374, %v370
        %v379 = vpack.c.bf16 %v375, %v371
        %v380 = vpack.c.bf16 %v376, %v372
        %v381 = vpack.c.bf16 %v377, %v373
        %v382 = vld [vmem:[%s342] sm:$0xff]
        %v383 = vld [vmem:[%s342 + $0x8] sm:$0xff]
        %v384 = vld [vmem:[%s342 + $0x10] sm:$0xff]
        %v385 = vld [vmem:[%s342 + $0x18] sm:$0xff]
        %v386 = vld [vmem:[%s342 + $0x20] sm:$0xff]
        %v387 = vld [vmem:[%s342 + $0x28] sm:$0xff]
        %v388 = vld [vmem:[%s342 + $0x30] sm:$0xff]
        %v389 = vld [vmem:[%s342 + $0x38] sm:$0xff]
        %v390 = vld [vmem:[%s342 + $0x40] sm:$0xff]
        %v391 = vld [vmem:[%s342 + $0x48] sm:$0xff]
        %v392 = vld [vmem:[%s342 + $0x50] sm:$0xff]
        %v393 = vld [vmem:[%s342 + $0x58] sm:$0xff]
        %v394 = vld [vmem:[%s342 + $0x60] sm:$0xff]
        %v395 = vld [vmem:[%s342 + $0x68] sm:$0xff]
        %v396 = vld [vmem:[%s342 + $0x70] sm:$0xff]
        %v397 = vld [vmem:[%s342 + $0x78] sm:$0xff]
        %v398 = vld [vmem:[%s342 + $0x80] sm:$0xff]
        %v399 = vld [vmem:[%s342 + $0x88] sm:$0xff]
        %v400 = vld [vmem:[%s342 + $0x90] sm:$0xff]
        %v401 = vld [vmem:[%s342 + $0x98] sm:$0xff]
        %v402 = vld [vmem:[%s342 + $0xa0] sm:$0xff]
        %v403 = vld [vmem:[%s342 + $0xa8] sm:$0xff]
        %v404 = vld [vmem:[%s342 + $0xb0] sm:$0xff]
        %v405 = vld [vmem:[%s342 + $0xb8] sm:$0xff]
        %v406 = vld [vmem:[%s342 + $0xc0] sm:$0xff]
        %v407 = vld [vmem:[%s342 + $0xc8] sm:$0xff]
        %v408 = vld [vmem:[%s342 + $0xd0] sm:$0xff]
        %v409 = vld [vmem:[%s342 + $0xd8] sm:$0xff]
        %v410 = vld [vmem:[%s342 + $0xe0] sm:$0xff]
        %v411 = vld [vmem:[%s342 + $0xe8] sm:$0xff]
        %v412 = vld [vmem:[%s342 + $0xf0] sm:$0xff]
        %v413 = vld [vmem:[%s342 + $0xf8] sm:$0xff]
        %v414 = vld [vmem:[%s342 + $0x100] sm:$0xff]
        %v415 = vld [vmem:[%s342 + $0x108] sm:$0xff]
        %v416 = vld [vmem:[%s342 + $0x110] sm:$0xff]
        %v417 = vld [vmem:[%s342 + $0x118] sm:$0xff]
        %v418 = vld [vmem:[%s342 + $0x120] sm:$0xff]
        %v419 = vld [vmem:[%s342 + $0x128] sm:$0xff]
        %v420 = vld [vmem:[%s342 + $0x130] sm:$0xff]
        %v421 = vld [vmem:[%s342 + $0x138] sm:$0xff]
        %v422 = vld [vmem:[%s342 + $0x140] sm:$0xff]
        %v423 = vld [vmem:[%s342 + $0x148] sm:$0xff]
        %v424 = vld [vmem:[%s342 + $0x150] sm:$0xff]
        %v425 = vld [vmem:[%s342 + $0x158] sm:$0xff]
        %v426 = vld [vmem:[%s342 + $0x160] sm:$0xff]
        %v427 = vld [vmem:[%s342 + $0x168] sm:$0xff]
        %v428 = vld [vmem:[%s342 + $0x170] sm:$0xff]
        %v429 = vld [vmem:[%s342 + $0x178] sm:$0xff]
        %v430 = vld [vmem:[%s342 + $0x180] sm:$0xff]
        %v431 = vld [vmem:[%s342 + $0x188] sm:$0xff]
        %v432 = vld [vmem:[%s342 + $0x190] sm:$0xff]
        %v433 = vld [vmem:[%s342 + $0x198] sm:$0xff]
        %v434 = vld [vmem:[%s342 + $0x1a0] sm:$0xff]
        %v435 = vld [vmem:[%s342 + $0x1a8] sm:$0xff]
        %v436 = vld [vmem:[%s342 + $0x1b0] sm:$0xff]
        %v437 = vld [vmem:[%s342 + $0x1b8] sm:$0xff]
        %v438 = vld [vmem:[%s342 + $0x1c0] sm:$0xff]
        %v439 = vld [vmem:[%s342 + $0x1c8] sm:$0xff]
        %v440 = vld [vmem:[%s342 + $0x1d0] sm:$0xff]
        %v441 = vld [vmem:[%s342 + $0x1d8] sm:$0xff]
        %v442 = vld [vmem:[%s342 + $0x1e0] sm:$0xff]
        %v443 = vld [vmem:[%s342 + $0x1e8] sm:$0xff]
        %v444 = vld [vmem:[%s342 + $0x1f0] sm:$0xff]
        %v445 = vld [vmem:[%s342 + $0x1f8] sm:$0xff]
        %v510 = vunpack.c.l.b16 %v382
        %v511 = vunpack.c.h.b16 %v382
        %v512 = vunpack.c.l.b16 %v383
        %v513 = vunpack.c.h.b16 %v383
        %v514 = vunpack.c.l.b16 %v384
        %v515 = vunpack.c.h.b16 %v384
        %v516 = vunpack.c.l.b16 %v385
        %v517 = vunpack.c.h.b16 %v385
        %v518 = vunpack.c.l.b16 %v386
        %v519 = vunpack.c.h.b16 %v386
        %v520 = vunpack.c.l.b16 %v387
        %v521 = vunpack.c.h.b16 %v387
        %v522 = vunpack.c.l.b16 %v388
        %v523 = vunpack.c.h.b16 %v388
        %v524 = vunpack.c.l.b16 %v389
        %v525 = vunpack.c.h.b16 %v389
        %v526 = vunpack.c.l.b16 %v390
        %v527 = vunpack.c.h.b16 %v390
        %v528 = vunpack.c.l.b16 %v391
        %v529 = vunpack.c.h.b16 %v391
        %v530 = vunpack.c.l.b16 %v392
        %v531 = vunpack.c.h.b16 %v392
        %v532 = vunpack.c.l.b16 %v393
        %v533 = vunpack.c.h.b16 %v393
        %v534 = vunpack.c.l.b16 %v394
        %v535 = vunpack.c.h.b16 %v394
        %v536 = vunpack.c.l.b16 %v395
        %v537 = vunpack.c.h.b16 %v395
        %v538 = vunpack.c.l.b16 %v396
        %v539 = vunpack.c.h.b16 %v396
        %v540 = vunpack.c.l.b16 %v397
        %v541 = vunpack.c.h.b16 %v397
        %v542 = vunpack.c.l.b16 %v398
        %v543 = vunpack.c.h.b16 %v398
        %v544 = vunpack.c.l.b16 %v399
        %v545 = vunpack.c.h.b16 %v399
        %v546 = vunpack.c.l.b16 %v400
        %v547 = vunpack.c.h.b16 %v400
        %v548 = vunpack.c.l.b16 %v401
        %v549 = vunpack.c.h.b16 %v401
        %v550 = vunpack.c.l.b16 %v402
        %v551 = vunpack.c.h.b16 %v402
        %v552 = vunpack.c.l.b16 %v403
        %v553 = vunpack.c.h.b16 %v403
        %v554 = vunpack.c.l.b16 %v404
        %v555 = vunpack.c.h.b16 %v404
        %v556 = vunpack.c.l.b16 %v405
        %v557 = vunpack.c.h.b16 %v405
        %v558 = vunpack.c.l.b16 %v406
        %v559 = vunpack.c.h.b16 %v406
        %v560 = vunpack.c.l.b16 %v407
        %v561 = vunpack.c.h.b16 %v407
        %v562 = vunpack.c.l.b16 %v408
        %v563 = vunpack.c.h.b16 %v408
        %v564 = vunpack.c.l.b16 %v409
        %v565 = vunpack.c.h.b16 %v409
        %v566 = vunpack.c.l.b16 %v410
        %v567 = vunpack.c.h.b16 %v410
        %v568 = vunpack.c.l.b16 %v411
        %v569 = vunpack.c.h.b16 %v411
        %v570 = vunpack.c.l.b16 %v412
        %v571 = vunpack.c.h.b16 %v412
        %v572 = vunpack.c.l.b16 %v413
        %v573 = vunpack.c.h.b16 %v413
        %v574 = vunpack.c.l.b16 %v414
        %v575 = vunpack.c.h.b16 %v414
        %v576 = vunpack.c.l.b16 %v415
        %v577 = vunpack.c.h.b16 %v415
        %v578 = vunpack.c.l.b16 %v416
        %v579 = vunpack.c.h.b16 %v416
        %v580 = vunpack.c.l.b16 %v417
        %v581 = vunpack.c.h.b16 %v417
        %v582 = vunpack.c.l.b16 %v418
        %v583 = vunpack.c.h.b16 %v418
        %v584 = vunpack.c.l.b16 %v419
        %v585 = vunpack.c.h.b16 %v419
        %v586 = vunpack.c.l.b16 %v420
        %v587 = vunpack.c.h.b16 %v420
        %v588 = vunpack.c.l.b16 %v421
        %v589 = vunpack.c.h.b16 %v421
        %v590 = vunpack.c.l.b16 %v422
        %v591 = vunpack.c.h.b16 %v422
        %v592 = vunpack.c.l.b16 %v423
        %v593 = vunpack.c.h.b16 %v423
        %v594 = vunpack.c.l.b16 %v424
        %v595 = vunpack.c.h.b16 %v424
        %v596 = vunpack.c.l.b16 %v425
        %v597 = vunpack.c.h.b16 %v425
        %v598 = vunpack.c.l.b16 %v426
        %v599 = vunpack.c.h.b16 %v426
        %v600 = vunpack.c.l.b16 %v427
        %v601 = vunpack.c.h.b16 %v427
        %v602 = vunpack.c.l.b16 %v428
        %v603 = vunpack.c.h.b16 %v428
        %v604 = vunpack.c.l.b16 %v429
        %v605 = vunpack.c.h.b16 %v429
        %v606 = vunpack.c.l.b16 %v430
        %v607 = vunpack.c.h.b16 %v430
        %v608 = vunpack.c.l.b16 %v431
        %v609 = vunpack.c.h.b16 %v431
        %v610 = vunpack.c.l.b16 %v432
        %v611 = vunpack.c.h.b16 %v432
        %v612 = vunpack.c.l.b16 %v433
        %v613 = vunpack.c.h.b16 %v433
        %v614 = vunpack.c.l.b16 %v434
        %v615 = vunpack.c.h.b16 %v434
        %v616 = vunpack.c.l.b16 %v435
        %v617 = vunpack.c.h.b16 %v435
        %v618 = vunpack.c.l.b16 %v436
        %v619 = vunpack.c.h.b16 %v436
        %v620 = vunpack.c.l.b16 %v437
        %v621 = vunpack.c.h.b16 %v437
        %v622 = vunpack.c.l.b16 %v438
        %v623 = vunpack.c.h.b16 %v438
        %v624 = vunpack.c.l.b16 %v439
        %v625 = vunpack.c.h.b16 %v439
        %v626 = vunpack.c.l.b16 %v440
        %v627 = vunpack.c.h.b16 %v440
        %v628 = vunpack.c.l.b16 %v441
        %v629 = vunpack.c.h.b16 %v441
        %v630 = vunpack.c.l.b16 %v442
        %v631 = vunpack.c.h.b16 %v442
        %v632 = vunpack.c.l.b16 %v443
        %v633 = vunpack.c.h.b16 %v443
        %v634 = vunpack.c.l.b16 %v444
        %v635 = vunpack.c.h.b16 %v444
        %v636 = vunpack.c.l.b16 %v445
        %v637 = vunpack.c.h.b16 %v445
        %v638 = vpack.c.b16 %v512, %v510
        %v639 = vpack.c.b16 %v513, %v511
        %v640 = vpack.c.b16 %v516, %v514
        %v641 = vpack.c.b16 %v517, %v515
        %v642 = vpack.c.b16 %v520, %v518
        %v643 = vpack.c.b16 %v521, %v519
        %v644 = vpack.c.b16 %v524, %v522
        %v645 = vpack.c.b16 %v525, %v523
        %v646 = vpack.c.b16 %v528, %v526
        %v647 = vpack.c.b16 %v529, %v527
        %v648 = vpack.c.b16 %v532, %v530
        %v649 = vpack.c.b16 %v533, %v531
        %v650 = vpack.c.b16 %v536, %v534
        %v651 = vpack.c.b16 %v537, %v535
        %v652 = vpack.c.b16 %v540, %v538
        %v653 = vpack.c.b16 %v541, %v539
        %v654 = vpack.c.b16 %v544, %v542
        %v655 = vpack.c.b16 %v545, %v543
        %v656 = vpack.c.b16 %v548, %v546
        %v657 = vpack.c.b16 %v549, %v547
        %v658 = vpack.c.b16 %v552, %v550
        %v659 = vpack.c.b16 %v553, %v551
        %v660 = vpack.c.b16 %v556, %v554
        %v661 = vpack.c.b16 %v557, %v555
        %v662 = vpack.c.b16 %v560, %v558
        %v663 = vpack.c.b16 %v561, %v559
        %v664 = vpack.c.b16 %v564, %v562
        %v665 = vpack.c.b16 %v565, %v563
        %v666 = vpack.c.b16 %v568, %v566
        %v667 = vpack.c.b16 %v569, %v567
        %v668 = vpack.c.b16 %v572, %v570
        %v669 = vpack.c.b16 %v573, %v571
        %v670 = vpack.c.b16 %v576, %v574
        %v671 = vpack.c.b16 %v577, %v575
        %v672 = vpack.c.b16 %v580, %v578
        %v673 = vpack.c.b16 %v581, %v579
        %v674 = vpack.c.b16 %v584, %v582
        %v675 = vpack.c.b16 %v585, %v583
        %v676 = vpack.c.b16 %v588, %v586
        %v677 = vpack.c.b16 %v589, %v587
        %v678 = vpack.c.b16 %v592, %v590
        %v679 = vpack.c.b16 %v593, %v591
        %v680 = vpack.c.b16 %v596, %v594
        %v681 = vpack.c.b16 %v597, %v595
        %v682 = vpack.c.b16 %v600, %v598
        %v683 = vpack.c.b16 %v601, %v599
        %v684 = vpack.c.b16 %v604, %v602
        %v685 = vpack.c.b16 %v605, %v603
        %v686 = vpack.c.b16 %v608, %v606
        %v687 = vpack.c.b16 %v609, %v607
        %v688 = vpack.c.b16 %v612, %v610
        %v689 = vpack.c.b16 %v613, %v611
        %v690 = vpack.c.b16 %v616, %v614
        %v691 = vpack.c.b16 %v617, %v615
        %v692 = vpack.c.b16 %v620, %v618
        %v693 = vpack.c.b16 %v621, %v619
        %v694 = vpack.c.b16 %v624, %v622
        %v695 = vpack.c.b16 %v625, %v623
        %v696 = vpack.c.b16 %v628, %v626
        %v697 = vpack.c.b16 %v629, %v627
        %v698 = vpack.c.b16 %v632, %v630
        %v699 = vpack.c.b16 %v633, %v631
        %v700 = vpack.c.b16 %v636, %v634
        %v701 = vpack.c.b16 %v637, %v635
        %766 = vmatpush.bf16.msra.mxu0 %v652
        %767 = vmatpush.bf16.msra.mxu0 %v650
        %768 = vmatpush.bf16.msra.mxu0 %v648
        %769 = vmatpush.bf16.msra.mxu0 %v646
        %770 = vmatpush.bf16.msra.mxu0 %v644
        %771 = vmatpush.bf16.msra.mxu0 %v642
        %772 = vmatpush.bf16.msra.mxu0 %v640
        %773 = vmatpush.bf16.msra.mxu0 %v638
        %774 = vmatmul.bf16.gmra.mxu0 %v378
        %v775 = vpop.f32.mrf.mxu0
        %v776 = vadd.f32 0.0, %v775
        %v777 = vpop.f32.mrf.mxu0
        %v778 = vadd.f32 0.0, %v777
        %779 = vdwg.mxu0
        %780 = vmatpush.bf16.msra.mxu0 %v668
        %781 = vmatpush.bf16.msra.mxu0 %v666
        %782 = vmatpush.bf16.msra.mxu0 %v664
        %783 = vmatpush.bf16.msra.mxu0 %v662
        %784 = vmatpush.bf16.msra.mxu0 %v660
        %785 = vmatpush.bf16.msra.mxu0 %v658
        %786 = vmatpush.bf16.msra.mxu0 %v656
        %787 = vmatpush.bf16.msra.mxu0 %v654
        %788 = vmatmul.bf16.gmra.mxu0 %v379
        %v789 = vpop.f32.mrf.mxu0
        %v790 = vadd.f32 %v776, %v789
        %v791 = vpop.f32.mrf.mxu0
        %v792 = vadd.f32 %v778, %v791
        %793 = vdwg.mxu0
        %794 = vmatpush.bf16.msra.mxu0 %v684
        %795 = vmatpush.bf16.msra.mxu0 %v682
        %796 = vmatpush.bf16.msra.mxu0 %v680
        %797 = vmatpush.bf16.msra.mxu0 %v678
        %798 = vmatpush.bf16.msra.mxu0 %v676
        %799 = vmatpush.bf16.msra.mxu0 %v674
        %800 = vmatpush.bf16.msra.mxu0 %v672
        %801 = vmatpush.bf16.msra.mxu0 %v670
        %802 = vmatmul.bf16.gmra.mxu0 %v380
        %v803 = vpop.f32.mrf.mxu0
        %v804 = vadd.f32 %v790, %v803
        %v805 = vpop.f32.mrf.mxu0
        %v806 = vadd.f32 %v792, %v805
        %807 = vdwg.mxu0
        %808 = vmatpush.bf16.msra.mxu0 %v700
        %809 = vmatpush.bf16.msra.mxu0 %v698
        %810 = vmatpush.bf16.msra.mxu0 %v696
        %811 = vmatpush.bf16.msra.mxu0 %v694
        %812 = vmatpush.bf16.msra.mxu0 %v692
        %813 = vmatpush.bf16.msra.mxu0 %v690
        %814 = vmatpush.bf16.msra.mxu0 %v688
        %815 = vmatpush.bf16.msra.mxu0 %v686
        %816 = vmatmul.bf16.gmra.mxu0 %v381
        %v817 = vpop.f32.mrf.mxu0
        %v818 = vadd.f32 %v804, %v817
        %v819 = vpop.f32.mrf.mxu0
        %v820 = vadd.f32 %v806, %v819
        %821 = vdwg.mxu0
        %822 = vmatpush.bf16.msra.mxu0 %v653
        %823 = vmatpush.bf16.msra.mxu0 %v651
        %824 = vmatpush.bf16.msra.mxu0 %v649
        %825 = vmatpush.bf16.msra.mxu0 %v647
        %826 = vmatpush.bf16.msra.mxu0 %v645
        %827 = vmatpush.bf16.msra.mxu0 %v643
        %828 = vmatpush.bf16.msra.mxu0 %v641
        %829 = vmatpush.bf16.msra.mxu0 %v639
        %830 = vmatmul.bf16.gmra.mxu0 %v378
        %v831 = vpop.f32.mrf.mxu0
        %v832 = vadd.f32 0.0, %v831
        %v833 = vpop.f32.mrf.mxu0
        %v834 = vadd.f32 0.0, %v833
        %835 = vdwg.mxu0
        %836 = vmatpush.bf16.msra.mxu0 %v669
        %837 = vmatpush.bf16.msra.mxu0 %v667
        %838 = vmatpush.bf16.msra.mxu0 %v665
        %839 = vmatpush.bf16.msra.mxu0 %v663
        %840 = vmatpush.bf16.msra.mxu0 %v661
        %841 = vmatpush.bf16.msra.mxu0 %v659
        %842 = vmatpush.bf16.msra.mxu0 %v657
        %843 = vmatpush.bf16.msra.mxu0 %v655
        %844 = vmatmul.bf16.gmra.mxu0 %v379
        %v845 = vpop.f32.mrf.mxu0
        %v846 = vadd.f32 %v832, %v845
        %v847 = vpop.f32.mrf.mxu0
        %v848 = vadd.f32 %v834, %v847
        %849 = vdwg.mxu0
        %850 = vmatpush.bf16.msra.mxu0 %v685
        %851 = vmatpush.bf16.msra.mxu0 %v683
        %852 = vmatpush.bf16.msra.mxu0 %v681
        %853 = vmatpush.bf16.msra.mxu0 %v679
        %854 = vmatpush.bf16.msra.mxu0 %v677
        %855 = vmatpush.bf16.msra.mxu0 %v675
        %856 = vmatpush.bf16.msra.mxu0 %v673
        %857 = vmatpush.bf16.msra.mxu0 %v671
        %858 = vmatmul.bf16.gmra.mxu0 %v380
        %v859 = vpop.f32.mrf.mxu0
        %v860 = vadd.f32 %v846, %v859
        %v861 = vpop.f32.mrf.mxu0
        %v862 = vadd.f32 %v848, %v861
        %863 = vdwg.mxu0
        %864 = vmatpush.bf16.msra.mxu0 %v701
        %865 = vmatpush.bf16.msra.mxu0 %v699
        %866 = vmatpush.bf16.msra.mxu0 %v697
        %867 = vmatpush.bf16.msra.mxu0 %v695
        %868 = vmatpush.bf16.msra.mxu0 %v693
        %869 = vmatpush.bf16.msra.mxu0 %v691
        %870 = vmatpush.bf16.msra.mxu0 %v689
        %871 = vmatpush.bf16.msra.mxu0 %v687
        %872 = vmatmul.bf16.gmra.mxu0 %v381
        %v873 = vpop.f32.mrf.mxu0
        %v874 = vadd.f32 %v860, %v873
        %v875 = vpop.f32.mrf.mxu0
        %v876 = vadd.f32 %v862, %v875
        %877 = vdwg.mxu0
        %v878 = vadd.f32 %v366, %v818
        %v879 = vadd.f32 %v367, %v874
        %v880 = vadd.f32 %v368, %v820
        %v881 = vadd.f32 %v369, %v876
        %882 = vst [vmem:[#allocation2] sm:$0xff] %v878
        %883 = vst [vmem:[#allocation2 + $0x8] sm:$0xff] %v879
        %884 = vst [vmem:[#allocation2 + $0x10] sm:$0xff] %v880
        %885 = vst [vmem:[#allocation2 + $0x18] sm:$0xff] %v881
        %p886 = scmp.eq.s32.totalorder %s22, 1
        // Predicated region
        $region72: #{transformer_block_forward.19} parent=62 // pred_check
          %p887 = pneg %p886
        $region73: #{transformer_block_forward.19} parent=62 // pred_check_branch
          %889 = sbr.rel (%p887) target = $region75
        $region74: #{transformer_block_forward.19} parent=62 // pred_region
          %v890 = vld [vmem:[#allocation2] sm:$0xff]
          %v891 = vld [vmem:[#allocation2 + $0x8] sm:$0xff]
          %v892 = vld [vmem:[#allocation2 + $0x10] sm:$0xff]
          %v893 = vld [vmem:[#allocation2 + $0x18] sm:$0xff]
          %v894 = vld [vmem:[%s2] sm:$0x3]
          %v896 = vperm.slane %v894, 0
          %v897 = vperm.slane %v894, 1
          %v900 = vadd.f32 %v890, %v896
          %v901 = vadd.f32 %v891, %v897
          %v902 = vadd.f32 %v892, %v896
          %v903 = vadd.f32 %v893, %v897
          %v904 = vld [vmem:[%s349] sm:$0xff]
          %v905 = vld [vmem:[%s349 + $0x8] sm:$0xff]
          %v906 = vld [vmem:[%s349 + $0x10] sm:$0xff]
          %v907 = vld [vmem:[%s349 + $0x18] sm:$0xff]
          %v908 = vadd.f32 %v900, %v904
          %v909 = vadd.f32 %v901, %v905
          %v910 = vadd.f32 %v902, %v906
          %v911 = vadd.f32 %v903, %v907
          %v912 = vadd.f32 %v908, %v909
          %913 = vadd.xlane.f32.xlu0 %v912
          %v914 = vpop.xlane.xlu0 %913
          %v915 = vadd.f32 %v910, %v911
          %916 = vadd.xlane.f32.xlu0 %v915
          %v917 = vpop.xlane.xlu0 %916
          %v918 = vrcp.pop 256.0
          %v919 = vmul.f32 256.0, %v918
          %v920 = vsub.f32 1.0, %v919
          %v921 = vmul.f32 %v918, %v920
          %v922 = vadd.f32 %v918, %v921
          %vm923 = vweird.f32 %v918
          %v924 = vsel %vm923, %v918, %v922
          %v925 = vmul.f32 %v914, %v924
          %v926 = vmul.f32 %v917, %v924
          %v927 = vsub.f32 %v908, %v925
          %v928 = vsub.f32 %v909, %v925
          %v929 = vsub.f32 %v910, %v926
          %v930 = vsub.f32 %v911, %v926
          %v931 = vmul.f32 %v927, %v927
          %v932 = vmul.f32 %v928, %v928
          %v933 = vmul.f32 %v929, %v929
          %v934 = vmul.f32 %v930, %v930
          %v935 = vadd.f32 %v931, %v932
          %936 = vadd.xlane.f32.xlu0 %v935
          %v937 = vpop.xlane.xlu0 %936
          %v938 = vadd.f32 %v933, %v934
          %939 = vadd.xlane.f32.xlu0 %v938
          %v940 = vpop.xlane.xlu0 %939
          %v941 = vmul.f32 %v937, %v924
          %v942 = vmul.f32 %v940, %v924
          %v943 = vadd.f32 %v941, 1e-12
          %v944 = vadd.f32 %v942, 1e-12
          %v945 = vrsqrt.pop %v943
          %v946 = vmul.f32 %v945, %v943
          %v947 = vmul.f32 %v946, %v945
          %v948 = vmul.f32 0.5, %v947
          %v949 = vsub.f32 1.5, %v948
          %v950 = vmul.f32 %v945, %v949
          %vm951 = vweird.f32 %v943
          %vm952 = vweird.f32 %v945
          %vm953 = vmor %vm951, %vm952
          %v954 = vsel %vm953, %v945, %v950
          %v955 = vrsqrt.pop %v944
          %v956 = vmul.f32 %v955, %v944
          %v957 = vmul.f32 %v956, %v955
          %v958 = vmul.f32 0.5, %v957
          %v959 = vsub.f32 1.5, %v958
          %v960 = vmul.f32 %v955, %v959
          %vm961 = vweird.f32 %v944
          %vm962 = vweird.f32 %v955
          %vm963 = vmor %vm961, %vm962
          %v964 = vsel %vm963, %v955, %v960
          %v965 = vmul.f32 %v927, %v954
          %v966 = vmul.f32 %v928, %v954
          %v967 = vmul.f32 %v929, %v964
          %v968 = vmul.f32 %v930, %v964
          %v969 = vld [vmem:[%s4] sm:$0x3]
          %v971 = vperm.slane %v969, 0
          %v972 = vperm.slane %v969, 1
          %v975 = vmul.f32 %v965, %v971
          %v976 = vmul.f32 %v966, %v972
          %v977 = vmul.f32 %v967, %v971
          %v978 = vmul.f32 %v968, %v972
          %v979 = vld [vmem:[%s5] sm:$0x3]
          %v981 = vperm.slane %v979, 0
          %v982 = vperm.slane %v979, 1
          %v985 = vadd.f32 %v975, %v981
          %v986 = vadd.f32 %v976, %v982
          %v987 = vadd.f32 %v977, %v981
          %v988 = vadd.f32 %v978, %v982
          %989 = vst [vmem:[%s356] sm:$0xff] %v985
          %990 = vst [vmem:[%s356 + $0x8] sm:$0xff] %v986
          %991 = vst [vmem:[%s356 + $0x10] sm:$0xff] %v987
          %992 = vst [vmem:[%s356 + $0x18] sm:$0xff] %v988
        $region75: #{transformer_block_forward.19} parent=62 // pred_fallthru
          _
        %s993 = smul.u32 2, %s21
        %p994 = scmp.lt.s32.totalorder %s993, 1
        %s995 = scalar_select %p994, %s993, 1
        %s996 = smul.addr %s995, 2
        %s997 = smul.addr %s996, 8
        %s998 = scalar_lea.vmem %s6, %s997
        // Predicated region
        $region76: #{transformer_block_forward.19} parent=62 // pred_check
          %p999 = pneg %p190
        $region77: #{transformer_block_forward.19} parent=62 // pred_check_branch
          %1001 = sbr.rel (%p999) target = $region79
        $region78: #{transformer_block_forward.19} parent=62 // pred_region
          %s1002 = smul.u32 2, %s21
        $region79: #{transformer_block_forward.19} parent=62 // pred_fallthru
          _
        // Predicated region
        $region80: #{transformer_block_forward.19} parent=62 // pred_check
          %p1003 = pneg %p190
        $region81: #{transformer_block_forward.19} parent=62 // pred_check_branch
          %1005 = sbr.rel (%p1003) target = $region83
        $region82: #{transformer_block_forward.19} parent=62 // pred_region
          %s1006 = smul.u32 2, %s21
          %p1007 = scmp.lt.s32.totalorder %s1006, 1
          %s1008 = scalar_select %p1007, %s1006, 1
          %s1009 = smul.addr %s1008, 2
          %s1010 = smul.addr %s1009, 8
          %s1011 = scalar_lea.vmem %s6, %s1010
        $region83: #{transformer_block_forward.19} parent=62 // pred_fallthru
          _
      $region63: #{transformer_block_forward.19} parent=5 // pred_fallthru
        _
      %p1012 = scmp.le.s32.totalorder 2, %s12
      // Predicated region
      $region84: #{transformer_block_forward.19} parent=5 // pred_check
        %p1013 = pneg %p1012
      $region85: #{transformer_block_forward.19} parent=5 // pred_check_branch
        %1015 = sbr.rel (%p1013) target = $region87
      $region86: #{transformer_block_forward.19} parent=5 // pred_region
        %s1016 = ssub.s32 %s12, 2
      $region87: #{transformer_block_forward.19} parent=5 // pred_fallthru
        _
    $region6: #{transformer_block_forward.19} parent=1 // loop_footer
      %s16 = sadd.s32 1, %s12
    $region7: #{transformer_block_forward.19} parent=1 // loop_footer_branch
      %11 = sbr.rel target = $region3
    $region8: #{transformer_block_forward.19} parent=1 // loop_exit
      _

// kernel: transformer_block_forward.20
$region0: #{transformer_block_forward.20}
  #allocation0 [shape = 'u32[]', space=smem, size = 0x4, offset = 0x4, fixed_abs, tag = 'smem constant byte address 0x4 - core index']
  #allocation1 [shape = 'u32[72,128]{1,0:T(1,128)}', space=vmem, size = 0x9000, scoped, tag = 'internal scratch']
  %s0 = inlined_call_operand.vmem [shape: f32[16,256], index: 0, kind: input, shape index: {}]
  %s1 = inlined_call_operand.vmem [shape: bf16[256,768], index: 1, kind: input, shape index: {}]
  %s2 = inlined_call_operand.vmem [shape: f32[1,768], index: 2, kind: input, shape index: {}]
  %s3 = inlined_call_operand.vmem [shape: f32[16,768], index: 3, kind: output, shape index: {}]
  %s4 = sld [smem:[#allocation0]]
  $region94: #{transformer_block_forward.20} parent=0
    _
  %s6 = ssub.s32 1, %s4
  %s7 = scalar_select 0, %s6, %s4
  $region1: #{transformer_block_forward.20} parent=0
    #allocation2 [shape = 'u8[393216]{0}', space=vmem, size = 0x60000, scoped, tag = 'input window, operand 1']
    #allocation3 [shape = 'u8[49152]{0}', space=vmem, size = 0xc000, scoped, tag = 'output window, operand 0']
    loop: start=0, step=1, limit=4
    $region2: #{transformer_block_forward.20} parent=1 // loop_pre_header
      _
    $region3: #{transformer_block_forward.20} parent=1 // loop_header
      %s9 = sphi 0, %s13
      %p10 = scmp.ge.s32.totalorder %s9, 4
      %s16 = sphi 0, %s35
      %s17 = sphi 0, %s31
      %s18 = sphi 0, %s27
      %s19 = sphi 0, %s16
      %s20 = sphi 0, %s17
      %s21 = sphi 0, %s18
      %s22 = sphi 0, %s19
      %s23 = sphi 0, %s20
      %s24 = sphi 0, %s21
      %s40 = sphi 0, %s42
      %s43 = sphi 0, %s40
      %s44 = sphi 0, %s43
      %s60 = sphi 0, %s44
      %s68 = sphi 0, %s70
      %s71 = sphi 0, %s68
      %s72 = sphi 0, %s71
      %s88 = sphi 0, %s72
      %s94 = sphi 0, %s96
      %s97 = sphi 0, %s94
      %s98 = sphi 0, %s97
      %s114 = sphi 0, %s98
      %s122 = sphi 0, %s124
      %s125 = sphi 0, %s122
      %s126 = sphi 0, %s125
      %s142 = sphi 0, %s126
    $region4: #{transformer_block_forward.20} parent=1 // loop_header_branch
      %12 = sbr.rel (%p10) target = $region8
    $region5: #{transformer_block_forward.20} parent=1 // loop_body
      %s14 = ssub.s32 %s9, 1
      %s15 = ssub.s32 %s9, 2
      %s25 = sadd.s32 1, %s18
      %p26 = scmp.ge.s32.totalorder %s25, 1
      %s27 = scalar_select %p26, 0, %s25
      %s28 = sadd.s32 1, %s17
      %s29 = scalar_select %p26, %s28, %s17
      %p30 = scmp.ge.s32.totalorder %s29, 2
      %s31 = scalar_select %p30, 0, %s29
      %s32 = sadd.s32 1, %s16
      %s33 = scalar_select %p30, %s32, %s16
      %p34 = scmp.ge.s32.totalorder %s33, 1
      %s35 = scalar_select %p34, 0, %s33
      %s36 = ssub.s32 %s16, %s35
      %s37 = ssub.s32 %s18, %s27
      %s38 = sor.u32 %s36, %s37
      %p39 = scmp.eq.s32.totalorder %s38, 0
      %s41 = sadd.s32 %s40, 1
      %s42 = scalar_select %p39, %s40, %s41
      %p45 = pneg %p39
      %p46 = scmp.eq.s32.totalorder %s9, 1
      %p47 = por %p45, %p46
      %p48 = scmp.ne.s32.totalorder %s40, %s43
      %p49 = scmp.eq.s32.totalorder %s9, 0
      %p50 = por %p48, %p49
      %p51 = scmp.ne.s32.totalorder %s40, %s43
      %p52 = scmp.eq.s32.totalorder %s14, 1
      %p53 = por %p51, %p52
      %p54 = scmp.ne.s32.totalorder %s43, %s44
      %p55 = scmp.eq.s32.totalorder %s14, 0
      %p56 = por %p54, %p55
      %p57 = scmp.ne.s32.totalorder %s43, %s44
      %p58 = scmp.eq.s32.totalorder %s15, 1
      %p59 = por %p57, %p58
      %p61 = scmp.ne.s32.totalorder %s44, %s60
      %p62 = scmp.eq.s32.totalorder %s15, 0
      %p63 = por %p61, %p62
      %s64 = ssub.s32 %s18, %s27
      %s65 = ssub.s32 %s17, %s31
      %s66 = sor.u32 %s64, %s65
      %p67 = scmp.eq.s32.totalorder %s66, 0
      %s69 = sadd.s32 %s68, 1
      %s70 = scalar_select %p67, %s68, %s69
      %p73 = pneg %p67
      %p74 = scmp.eq.s32.totalorder %s9, 1
      %p75 = por %p73, %p74
      %p76 = scmp.ne.s32.totalorder %s68, %s71
      %p77 = scmp.eq.s32.totalorder %s9, 0
      %p78 = por %p76, %p77
      %p79 = scmp.ne.s32.totalorder %s68, %s71
      %p80 = scmp.eq.s32.totalorder %s14, 1
      %p81 = por %p79, %p80
      %p82 = scmp.ne.s32.totalorder %s71, %s72
      %p83 = scmp.eq.s32.totalorder %s14, 0
      %p84 = por %p82, %p83
      %p85 = scmp.ne.s32.totalorder %s71, %s72
      %p86 = scmp.eq.s32.totalorder %s15, 1
      %p87 = por %p85, %p86
      %p89 = scmp.ne.s32.totalorder %s72, %s88
      %p90 = scmp.eq.s32.totalorder %s15, 0
      %p91 = por %p89, %p90
      %s92 = ssub.s32 %s17, %s31
      %p93 = scmp.eq.s32.totalorder %s92, 0
      %s95 = sadd.s32 %s94, 1
      %s96 = scalar_select %p93, %s94, %s95
      %p99 = pneg %p93
      %p100 = scmp.eq.s32.totalorder %s9, 1
      %p101 = por %p99, %p100
      %p102 = scmp.ne.s32.totalorder %s94, %s97
      %p103 = scmp.eq.s32.totalorder %s9, 0
      %p104 = por %p102, %p103
      %p105 = scmp.ne.s32.totalorder %s94, %s97
      %p106 = scmp.eq.s32.totalorder %s14, 1
      %p107 = por %p105, %p106
      %p108 = scmp.ne.s32.totalorder %s97, %s98
      %p109 = scmp.eq.s32.totalorder %s14, 0
      %p110 = por %p108, %p109
      %p111 = scmp.ne.s32.totalorder %s97, %s98
      %p112 = scmp.eq.s32.totalorder %s15, 1
      %p113 = por %p111, %p112
      %p115 = scmp.ne.s32.totalorder %s98, %s114
      %p116 = scmp.eq.s32.totalorder %s15, 0
      %p117 = por %p115, %p116
      %s118 = ssub.s32 %s16, %s35
      %s119 = ssub.s32 %s17, %s31
      %s120 = sor.u32 %s118, %s119
      %p121 = scmp.eq.s32.totalorder %s120, 0
      %s123 = sadd.s32 %s122, 1
      %s124 = scalar_select %p121, %s122, %s123
      %p127 = pneg %p121
      %p128 = scmp.eq.s32.totalorder %s9, 1
      %p129 = por %p127, %p128
      %p130 = scmp.ne.s32.totalorder %s122, %s125
      %p131 = scmp.eq.s32.totalorder %s9, 0
      %p132 = por %p130, %p131
      %p133 = scmp.ne.s32.totalorder %s122, %s125
      %p134 = scmp.eq.s32.totalorder %s14, 1
      %p135 = por %p133, %p134
      %p136 = scmp.ne.s32.totalorder %s125, %s126
      %p137 = scmp.eq.s32.totalorder %s14, 0
      %p138 = por %p136, %p137
      %p139 = scmp.ne.s32.totalorder %s125, %s126
      %p140 = scmp.eq.s32.totalorder %s15, 1
      %p141 = por %p139, %p140
      %p143 = scmp.ne.s32.totalorder %s126, %s142
      %p144 = scmp.eq.s32.totalorder %s15, 0
      %p145 = por %p143, %p144
      %p146 = scmp.le.s32.totalorder 1, %s9
      %p147 = scmp.lt.s32.totalorder %s9, 3
      %p148 = pnand %p146, %p147
      %p149 = pneg %p148
      // Predicated region
      $region9: #{transformer_block_forward.20} parent=5 // pred_check
        _
      $region10: #{transformer_block_forward.20} parent=5 // pred_check_branch
        %151 = sbr.rel (%p148) target = $region12
      $region11: #{transformer_block_forward.20} parent=5 // pred_region
        %s152 = ssub.s32 %s9, 1
        // Predicated region
        $region13: #{transformer_block_forward.20} parent=11 // pred_check
          %p153 = pneg %p56
        $region14: #{transformer_block_forward.20} parent=11 // pred_check_branch
          %155 = sbr.rel (%p153) target = $region16
        $region15: #{transformer_block_forward.20} parent=11 // pred_region
          %s156 = smul.u32 2, %s19
          %s157 = smul.u32 2, %s21
          %p158 = scmp.lt.s32.totalorder %s156, 1
          %s159 = scalar_select %p158, %s156, 1
          %p160 = scmp.lt.s32.totalorder %s157, 1
          %s161 = scalar_select %p160, %s157, 1
          %s162 = smul.addr %s159, 2
          %s163 = sadd.s32 %s161, %s162
          %s164 = smul.addr %s163, 8
          %s165 = scalar_lea.vmem %s0, %s164
          %s166 = smul.u32 2, %s19
          %s167 = smul.u32 2, %s21
        $region16: #{transformer_block_forward.20} parent=11 // pred_fallthru
          _
      $region12: #{transformer_block_forward.20} parent=5 // pred_fallthru
        _
      %p168 = scmp.lt.s32.totalorder %s9, 2
      // Predicated region
      $region17: #{transformer_block_forward.20} parent=5 // pred_check
        %p169 = pneg %p168
      $region18: #{transformer_block_forward.20} parent=5 // pred_check_branch
        %171 = sbr.rel (%p169) target = $region20
      $region19: #{transformer_block_forward.20} parent=5 // pred_region
        // Predicated region
        $region21: #{transformer_block_forward.20} parent=19 // pred_check
          %p172 = pneg %p78
        $region22: #{transformer_block_forward.20} parent=19 // pred_check_branch
          %174 = sbr.rel (%p172) target = $region24
        $region23: #{transformer_block_forward.20} parent=19 // pred_region
          %s175 = sand.u32 %s68, 1
          %s176 = sand.u32 %s68, 1
          %s177 = smul.addr %s176, 384
          %s178 = scalar_lea.vmem [#allocation2], %s177
          %s179 = smul.u32 32, %s18
          %s180 = smul.u32 3, %s17
          %s181 = smul.addr %s179, 6
          %s182 = sadd.s32 %s180, %s181
          %s183 = smul.addr %s182, 4
          %s184 = scalar_lea.vmem %s1, %s183
          // Predicated region
          $region25: #{transformer_block_forward.20} parent=23 // pred_check
            _
          $region26: #{transformer_block_forward.20} parent=23 // pred_check_branch
            %186 = sbr.rel (0) target = $region28
          $region27: #{transformer_block_forward.20} parent=23 // pred_region
            // Predicated region
            $region29: #{transformer_block_forward.20} parent=27 // pred_check
              _
            $region30: #{transformer_block_forward.20} parent=27 // pred_check_branch
              %188 = sbr.rel (0) target = $region32
            $region31: #{transformer_block_forward.20} parent=27 // pred_region
              %s189 = scalar_lea.vmem %s184, 8
              %s190 = scalar_lea.vmem %s178, 8 [#allocation2]
              loop: start=0, step=1, limit=1
              $region33: #{transformer_block_forward.20} parent=31 // loop_pre_header
                _
              $region34: #{transformer_block_forward.20} parent=31 // loop_header
                %s192 = sphi 0, %s196
                %p193 = scmp.ge.s32.totalorder %s192, 1
                %s197 = sphi %s184, %s184
                %s198 = sphi %s178, %s178
              $region35: #{transformer_block_forward.20} parent=31 // loop_header_branch
                %195 = sbr.rel (%p193) target = $region39
              $region36: #{transformer_block_forward.20} parent=31 // loop_body
                %v199 = vld [vmem:[%s197] sm:$0xff]
                %200 = vst [vmem:[%s198] sm:$0xff] %v199
                %v201 = vld [vmem:[%s197 + $0x18] sm:$0xff]
                %202 = vst [vmem:[%s198 + $0xc] sm:$0xff] %v201
                %v203 = vld [vmem:[%s197 + $0x30] sm:$0xff]
                %204 = vst [vmem:[%s198 + $0x18] sm:$0xff] %v203
                %v205 = vld [vmem:[%s197 + $0x48] sm:$0xff]
                %206 = vst [vmem:[%s198 + $0x24] sm:$0xff] %v205
                %v207 = vld [vmem:[%s197 + $0x60] sm:$0xff]
                %208 = vst [vmem:[%s198 + $0x30] sm:$0xff] %v207
                %v209 = vld [vmem:[%s197 + $0x78] sm:$0xff]
                %210 = vst [vmem:[%s198 + $0x3c] sm:$0xff] %v209
                %v211 = vld [vmem:[%s197 + $0x90] sm:$0xff]
                %212 = vst [vmem:[%s198 + $0x48] sm:$0xff] %v211
                %v213 = vld [vmem:[%s197 + $0xa8] sm:$0xff]
                %214 = vst [vmem:[%s198 + $0x54] sm:$0xff] %v213
                %v215 = vld [vmem:[%s197 + $0xc0] sm:$0xff]
                %216 = vst [vmem:[%s198 + $0x60] sm:$0xff] %v215
                %v217 = vld [vmem:[%s197 + $0xd8] sm:$0xff]
                %218 = vst [vmem:[%s198 + $0x6c] sm:$0xff] %v217
                %v219 = vld [vmem:[%s197 + $0xf0] sm:$0xff]
                %220 = vst [vmem:[%s198 + $0x78] sm:$0xff] %v219
                %v221 = vld [vmem:[%s197 + $0x108] sm:$0xff]
                %222 = vst [vmem:[%s198 + $0x84] sm:$0xff] %v221
                %v223 = vld [vmem:[%s197 + $0x120] sm:$0xff]
                %224 = vst [vmem:[%s198 + $0x90] sm:$0xff] %v223
                %v225 = vld [vmem:[%s197 + $0x138] sm:$0xff]
                %226 = vst [vmem:[%s198 + $0x9c] sm:$0xff] %v225
                %v227 = vld [vmem:[%s197 + $0x150] sm:$0xff]
                %228 = vst [vmem:[%s198 + $0xa8] sm:$0xff] %v227
                %v229 = vld [vmem:[%s197 + $0x168] sm:$0xff]
                %230 = vst [vmem:[%s198 + $0xb4] sm:$0xff] %v229
                %v231 = vld [vmem:[%s197 + $0x180] sm:$0xff]
                %232 = vst [vmem:[%s198 + $0xc0] sm:$0xff] %v231
                %v233 = vld [vmem:[%s197 + $0x198] sm:$0xff]
                %234 = vst [vmem:[%s198 + $0xcc] sm:$0xff] %v233
                %v235 = vld [vmem:[%s197 + $0x1b0] sm:$0xff]
                %236 = vst [vmem:[%s198 + $0xd8] sm:$0xff] %v235
                %v237 = vld [vmem:[%s197 + $0x1c8] sm:$0xff]
                %238 = vst [vmem:[%s198 + $0xe4] sm:$0xff] %v237
                %v239 = vld [vmem:[%s197 + $0x1e0] sm:$0xff]
                %240 = vst [vmem:[%s198 + $0xf0] sm:$0xff] %v239
                %v241 = vld [vmem:[%s197 + $0x1f8] sm:$0xff]
                %242 = vst [vmem:[%s198 + $0xfc] sm:$0xff] %v241
                %v243 = vld [vmem:[%s197 + $0x210] sm:$0xff]
                %244 = vst [vmem:[%s198 + $0x108] sm:$0xff] %v243
                %v245 = vld [vmem:[%s197 + $0x228] sm:$0xff]
                %246 = vst [vmem:[%s198 + $0x114] sm:$0xff] %v245
                %v247 = vld [vmem:[%s197 + $0x240] sm:$0xff]
                %248 = vst [vmem:[%s198 + $0x120] sm:$0xff] %v247
                %v249 = vld [vmem:[%s197 + $0x258] sm:$0xff]
                %250 = vst [vmem:[%s198 + $0x12c] sm:$0xff] %v249
                %v251 = vld [vmem:[%s197 + $0x270] sm:$0xff]
                %252 = vst [vmem:[%s198 + $0x138] sm:$0xff] %v251
                %v253 = vld [vmem:[%s197 + $0x288] sm:$0xff]
                %254 = vst [vmem:[%s198 + $0x144] sm:$0xff] %v253
                %v255 = vld [vmem:[%s197 + $0x2a0] sm:$0xff]
                %256 = vst [vmem:[%s198 + $0x150] sm:$0xff] %v255
                %v257 = vld [vmem:[%s197 + $0x2b8] sm:$0xff]
                %258 = vst [vmem:[%s198 + $0x15c] sm:$0xff] %v257
                %v259 = vld [vmem:[%s197 + $0x2d0] sm:$0xff]
                %260 = vst [vmem:[%s198 + $0x168] sm:$0xff] %v259
                %v261 = vld [vmem:[%s197 + $0x2e8] sm:$0xff]
                %262 = vst [vmem:[%s198 + $0x174] sm:$0xff] %v261
              $region37: #{transformer_block_forward.20} parent=31 // loop_footer
                %s196 = sadd.s32 1, %s192
              $region38: #{transformer_block_forward.20} parent=31 // loop_footer_branch
                %191 = sbr.rel target = $region34
              $region39: #{transformer_block_forward.20} parent=31 // loop_exit
                _
              %s264 = ssub.s32 16, 1
              loop: start=0, step=1, limit=1
              $region40: #{transformer_block_forward.20} parent=31 // loop_pre_header
                _
              $region41: #{transformer_block_forward.20} parent=31 // loop_header
                %s266 = sphi 0, %s270
                %p267 = scmp.ge.s32.totalorder %s266, 1
                %s271 = sphi %s189, %s189
                %s272 = sphi %s190, %s190
              $region42: #{transformer_block_forward.20} parent=31 // loop_header_branch
                %269 = sbr.rel (%p267) target = $region46
              $region43: #{transformer_block_forward.20} parent=31 // loop_body
                %v273 = vld [vmem:[%s271] sm:%s264]
                %274 = vst [vmem:[%s272] sm:%s264] %v273
                %v275 = vld [vmem:[%s271 + $0x18] sm:%s264]
                %276 = vst [vmem:[%s272 + $0xc] sm:%s264] %v275
                %v277 = vld [vmem:[%s271 + $0x30] sm:%s264]
                %278 = vst [vmem:[%s272 + $0x18] sm:%s264] %v277
                %v279 = vld [vmem:[%s271 + $0x48] sm:%s264]
                %280 = vst [vmem:[%s272 + $0x24] sm:%s264] %v279
                %v281 = vld [vmem:[%s271 + $0x60] sm:%s264]
                %282 = vst [vmem:[%s272 + $0x30] sm:%s264] %v281
                %v283 = vld [vmem:[%s271 + $0x78] sm:%s264]
                %284 = vst [vmem:[%s272 + $0x3c] sm:%s264] %v283
                %v285 = vld [vmem:[%s271 + $0x90] sm:%s264]
                %286 = vst [vmem:[%s272 + $0x48] sm:%s264] %v285
                %v287 = vld [vmem:[%s271 + $0xa8] sm:%s264]
                %288 = vst [vmem:[%s272 + $0x54] sm:%s264] %v287
                %v289 = vld [vmem:[%s271 + $0xc0] sm:%s264]
                %290 = vst [vmem:[%s272 + $0x60] sm:%s264] %v289
                %v291 = vld [vmem:[%s271 + $0xd8] sm:%s264]
                %292 = vst [vmem:[%s272 + $0x6c] sm:%s264] %v291
                %v293 = vld [vmem:[%s271 + $0xf0] sm:%s264]
                %294 = vst [vmem:[%s272 + $0x78] sm:%s264] %v293
                %v295 = vld [vmem:[%s271 + $0x108] sm:%s264]
                %296 = vst [vmem:[%s272 + $0x84] sm:%s264] %v295
                %v297 = vld [vmem:[%s271 + $0x120] sm:%s264]
                %298 = vst [vmem:[%s272 + $0x90] sm:%s264] %v297
                %v299 = vld [vmem:[%s271 + $0x138] sm:%s264]
                %300 = vst [vmem:[%s272 + $0x9c] sm:%s264] %v299
                %v301 = vld [vmem:[%s271 + $0x150] sm:%s264]
                %302 = vst [vmem:[%s272 + $0xa8] sm:%s264] %v301
                %v303 = vld [vmem:[%s271 + $0x168] sm:%s264]
                %304 = vst [vmem:[%s272 + $0xb4] sm:%s264] %v303
                %v305 = vld [vmem:[%s271 + $0x180] sm:%s264]
                %306 = vst [vmem:[%s272 + $0xc0] sm:%s264] %v305
                %v307 = vld [vmem:[%s271 + $0x198] sm:%s264]
                %308 = vst [vmem:[%s272 + $0xcc] sm:%s264] %v307
                %v309 = vld [vmem:[%s271 + $0x1b0] sm:%s264]
                %310 = vst [vmem:[%s272 + $0xd8] sm:%s264] %v309
                %v311 = vld [vmem:[%s271 + $0x1c8] sm:%s264]
                %312 = vst [vmem:[%s272 + $0xe4] sm:%s264] %v311
                %v313 = vld [vmem:[%s271 + $0x1e0] sm:%s264]
                %314 = vst [vmem:[%s272 + $0xf0] sm:%s264] %v313
                %v315 = vld [vmem:[%s271 + $0x1f8] sm:%s264]
                %316 = vst [vmem:[%s272 + $0xfc] sm:%s264] %v315
                %v317 = vld [vmem:[%s271 + $0x210] sm:%s264]
                %318 = vst [vmem:[%s272 + $0x108] sm:%s264] %v317
                %v319 = vld [vmem:[%s271 + $0x228] sm:%s264]
                %320 = vst [vmem:[%s272 + $0x114] sm:%s264] %v319
                %v321 = vld [vmem:[%s271 + $0x240] sm:%s264]
                %322 = vst [vmem:[%s272 + $0x120] sm:%s264] %v321
                %v323 = vld [vmem:[%s271 + $0x258] sm:%s264]
                %324 = vst [vmem:[%s272 + $0x12c] sm:%s264] %v323
                %v325 = vld [vmem:[%s271 + $0x270] sm:%s264]
                %326 = vst [vmem:[%s272 + $0x138] sm:%s264] %v325
                %v327 = vld [vmem:[%s271 + $0x288] sm:%s264]
                %328 = vst [vmem:[%s272 + $0x144] sm:%s264] %v327
                %v329 = vld [vmem:[%s271 + $0x2a0] sm:%s264]
                %330 = vst [vmem:[%s272 + $0x150] sm:%s264] %v329
                %v331 = vld [vmem:[%s271 + $0x2b8] sm:%s264]
                %332 = vst [vmem:[%s272 + $0x15c] sm:%s264] %v331
                %v333 = vld [vmem:[%s271 + $0x2d0] sm:%s264]
                %334 = vst [vmem:[%s272 + $0x168] sm:%s264] %v333
                %v335 = vld [vmem:[%s271 + $0x2e8] sm:%s264]
                %336 = vst [vmem:[%s272 + $0x174] sm:%s264] %v335
              $region44: #{transformer_block_forward.20} parent=31 // loop_footer
                %s270 = sadd.s32 1, %s266
              $region45: #{transformer_block_forward.20} parent=31 // loop_footer_branch
                %265 = sbr.rel target = $region41
              $region46: #{transformer_block_forward.20} parent=31 // loop_exit
                _
            $region32: #{transformer_block_forward.20} parent=27 // pred_fallthru
              _
          $region28: #{transformer_block_forward.20} parent=23 // pred_fallthru
            _
          %337 = vnop
        $region24: #{transformer_block_forward.20} parent=19 // pred_fallthru
          _
        // Predicated region
        $region47: #{transformer_block_forward.20} parent=19 // pred_check
          %p338 = pneg %p104
        $region48: #{transformer_block_forward.20} parent=19 // pred_check_branch
          %340 = sbr.rel (%p338) target = $region50
        $region49: #{transformer_block_forward.20} parent=19 // pred_region
          %s341 = smul.u32 3, %s17
          %p342 = scmp.lt.s32.totalorder %s341, 5
          %s343 = scalar_select %p342, %s341, 5
          %s344 = scalar_lea.vmem %s2, %s343
          %s345 = smul.u32 3, %s17
        $region50: #{transformer_block_forward.20} parent=19 // pred_fallthru
          _
      $region20: #{transformer_block_forward.20} parent=5 // pred_fallthru
        _
      %p346 = scmp.le.s32.totalorder 1, %s9
      %p347 = scmp.lt.s32.totalorder %s9, 3
      %p348 = pnand %p346, %p347
      %p349 = pneg %p348
      // Predicated region
      $region51: #{transformer_block_forward.20} parent=5 // pred_check
        _
      $region52: #{transformer_block_forward.20} parent=5 // pred_check_branch
        %351 = sbr.rel (%p348) target = $region54
      $region53: #{transformer_block_forward.20} parent=5 // pred_region
        %s352 = ssub.s32 %s9, 1
        %s353 = sand.u32 %s71, 1
        %s354 = sand.u32 %s71, 1
        %s355 = smul.addr %s354, 384
        %s356 = scalar_lea.vmem [#allocation2], %s355
        // Predicated region
        $region55: #{transformer_block_forward.20} parent=53 // pred_check
          %p357 = pneg %p84
        $region56: #{transformer_block_forward.20} parent=53 // pred_check_branch
          %359 = sbr.rel (%p357) target = $region58
        $region57: #{transformer_block_forward.20} parent=53 // pred_region
          _
        $region58: #{transformer_block_forward.20} parent=53 // pred_fallthru
          _
        %s360 = smul.u32 2, %s19
        %s361 = smul.u32 2, %s21
        %p362 = scmp.lt.s32.totalorder %s360, 1
        %s363 = scalar_select %p362, %s360, 1
        %p364 = scmp.lt.s32.totalorder %s361, 1
        %s365 = scalar_select %p364, %s361, 1
        %s366 = smul.addr %s363, 2
        %s367 = sadd.s32 %s365, %s366
        %s368 = smul.addr %s367, 8
        %s369 = scalar_lea.vmem %s0, %s368
        %p370 = pneg %p56
        %p371 = pneg %p53
        %s372 = sand.u32 %s71, 1
        %s373 = sand.u32 %s71, 1
        %s374 = smul.addr %s373, 384
        %s375 = scalar_lea.vmem [#allocation2], %s374
        %p376 = pneg %p84
        %p377 = pneg %p81
        %s378 = smul.u32 3, %s20
        %p379 = scmp.lt.s32.totalorder %s378, 5
        %s380 = scalar_select %p379, %s378, 5
        %s381 = scalar_lea.vmem %s2, %s380
        %p382 = pneg %p110
        %p383 = pneg %p107
        %p384 = pneg %p138
        %p385 = pneg %p135
        %s386 = sand.u32 %s125, 1
        %s387 = sand.u32 %s125, 1
        %s388 = smul.addr %s387, 48
        %s389 = scalar_lea.vmem [#allocation3], %s388
        %s390 = smul.u32 2, %s19
        %s391 = smul.u32 2, %s21
        %p392 = scmp.lt.s32.totalorder %s390, 1
        %s393 = scalar_select %p392, %s390, 1
        %p394 = scmp.lt.s32.totalorder %s391, 1
        %s395 = scalar_select %p394, %s391, 1
        %s396 = smul.addr %s393, 2
        %s397 = sadd.s32 %s395, %s396
        %s398 = smul.addr %s397, 8
        %s399 = scalar_lea.vmem %s0, %s398
        %s400 = smul.u32 2, %s19
        %s401 = smul.u32 2, %s21
        %s402 = smul.u32 32, %s21
        %s403 = smul.u32 3, %s20
        %s404 = smul.u32 3, %s20
        %p405 = scmp.lt.s32.totalorder %s404, 5
        %s406 = scalar_select %p405, %s404, 5
        %s407 = scalar_lea.vmem %s2, %s406
        %s408 = smul.u32 3, %s20
        %s409 = smul.u32 2, %s19
        %s410 = smul.u32 3, %s20
        %p411 = scmp.eq.s32.totalorder %s21, 0
        // Predicated region
        $region59: #{transformer_block_forward.20} parent=53 // pred_check
          %p412 = pneg %p411
        $region60: #{transformer_block_forward.20} parent=53 // pred_check_branch
          %414 = sbr.rel (%p412) target = $region62
        $region61: #{transformer_block_forward.20} parent=53 // pred_region
          %v415 = vld [vmem:[%s407] sm:$0x7]
          %v417 = vperm.slane %v415, 0
          %v418 = vperm.slane %v415, 1
          %v419 = vperm.slane %v415, 2
          %v423 = vadd.f32 %v417, 0.0
          %v424 = vadd.f32 %v418, 0.0
          %v425 = vadd.f32 %v419, 0.0
          %426 = vst [vmem:[%s389] sm:$0xff] %v423
          %427 = vst [vmem:[%s389 + $0x8] sm:$0xff] %v424
          %428 = vst [vmem:[%s389 + $0x10] sm:$0xff] %v425
          %429 = vst [vmem:[%s389 + $0x18] sm:$0xff] %v423
          %430 = vst [vmem:[%s389 + $0x20] sm:$0xff] %v424
          %431 = vst [vmem:[%s389 + $0x28] sm:$0xff] %v425
        $region62: #{transformer_block_forward.20} parent=53 // pred_fallthru
          _
        %v432 = vld [vmem:[%s389] sm:$0xff]
        %v433 = vld [vmem:[%s389 + $0x8] sm:$0xff]
        %v434 = vld [vmem:[%s389 + $0x10] sm:$0xff]
        %v435 = vld [vmem:[%s389 + $0x18] sm:$0xff]
        %v436 = vld [vmem:[%s389 + $0x20] sm:$0xff]
        %v437 = vld [vmem:[%s389 + $0x28] sm:$0xff]
        %v438 = vld [vmem:[%s399] sm:$0xff]
        %v439 = vld [vmem:[%s399 + $0x8] sm:$0xff]
        %v440 = vld [vmem:[%s399 + $0x10] sm:$0xff]
        %v441 = vld [vmem:[%s399 + $0x18] sm:$0xff]
        %v442 = vpack.c.bf16 %v440, %v438
        %v443 = vpack.c.bf16 %v441, %v439
        %v444 = vld [vmem:[%s356] sm:$0xff]
        %v445 = vld [vmem:[%s356 + $0x8] sm:$0xf]
        %v446 = vld [vmem:[%s356 + $0xc] sm:$0xff]
        %v447 = vld [vmem:[%s356 + $0x14] sm:$0xf]
        %v448 = vld [vmem:[%s356 + $0x18] sm:$0xff]
        %v449 = vld [vmem:[%s356 + $0x20] sm:$0xf]
        %v450 = vld [vmem:[%s356 + $0x24] sm:$0xff]
        %v451 = vld [vmem:[%s356 + $0x2c] sm:$0xf]
        %v452 = vld [vmem:[%s356 + $0x30] sm:$0xff]
        %v453 = vld [vmem:[%s356 + $0x38] sm:$0xf]
        %v454 = vld [vmem:[%s356 + $0x3c] sm:$0xff]
        %v455 = vld [vmem:[%s356 + $0x44] sm:$0xf]
        %v456 = vld [vmem:[%s356 + $0x48] sm:$0xff]
        %v457 = vld [vmem:[%s356 + $0x50] sm:$0xf]
        %v458 = vld [vmem:[%s356 + $0x54] sm:$0xff]
        %v459 = vld [vmem:[%s356 + $0x5c] sm:$0xf]
        %v460 = vld [vmem:[%s356 + $0x60] sm:$0xff]
        %v461 = vld [vmem:[%s356 + $0x68] sm:$0xf]
        %v462 = vld [vmem:[%s356 + $0x6c] sm:$0xff]
        %v463 = vld [vmem:[%s356 + $0x74] sm:$0xf]
        %v464 = vld [vmem:[%s356 + $0x78] sm:$0xff]
        %v465 = vld [vmem:[%s356 + $0x80] sm:$0xf]
        %v466 = vld [vmem:[%s356 + $0x84] sm:$0xff]
        %v467 = vld [vmem:[%s356 + $0x8c] sm:$0xf]
        %v468 = vld [vmem:[%s356 + $0x90] sm:$0xff]
        %v469 = vld [vmem:[%s356 + $0x98] sm:$0xf]
        %v470 = vld [vmem:[%s356 + $0x9c] sm:$0xff]
        %v471 = vld [vmem:[%s356 + $0xa4] sm:$0xf]
        %v472 = vld [vmem:[%s356 + $0xa8] sm:$0xff]
        %v473 = vld [vmem:[%s356 + $0xb0] sm:$0xf]
        %v474 = vld [vmem:[%s356 + $0xb4] sm:$0xff]
        %v475 = vld [vmem:[%s356 + $0xbc] sm:$0xf]
        %v476 = vld [vmem:[%s356 + $0xc0] sm:$0xff]
        %v477 = vld [vmem:[%s356 + $0xc8] sm:$0xf]
        %v478 = vld [vmem:[%s356 + $0xcc] sm:$0xff]
        %v479 = vld [vmem:[%s356 + $0xd4] sm:$0xf]
        %v480 = vld [vmem:[%s356 + $0xd8] sm:$0xff]
        %v481 = vld [vmem:[%s356 + $0xe0] sm:$0xf]
        %v482 = vld [vmem:[%s356 + $0xe4] sm:$0xff]
        %v483 = vld [vmem:[%s356 + $0xec] sm:$0xf]
        %v484 = vld [vmem:[%s356 + $0xf0] sm:$0xff]
        %v485 = vld [vmem:[%s356 + $0xf8] sm:$0xf]
        %v486 = vld [vmem:[%s356 + $0xfc] sm:$0xff]
        %v487 = vld [vmem:[%s356 + $0x104] sm:$0xf]
        %v488 = vld [vmem:[%s356 + $0x108] sm:$0xff]
        %v489 = vld [vmem:[%s356 + $0x110] sm:$0xf]
        %v490 = vld [vmem:[%s356 + $0x114] sm:$0xff]
        %v491 = vld [vmem:[%s356 + $0x11c] sm:$0xf]
        %v492 = vld [vmem:[%s356 + $0x120] sm:$0xff]
        %v493 = vld [vmem:[%s356 + $0x128] sm:$0xf]
        %v494 = vld [vmem:[%s356 + $0x12c] sm:$0xff]
        %v495 = vld [vmem:[%s356 + $0x134] sm:$0xf]
        %v496 = vld [vmem:[%s356 + $0x138] sm:$0xff]
        %v497 = vld [vmem:[%s356 + $0x140] sm:$0xf]
        %v498 = vld [vmem:[%s356 + $0x144] sm:$0xff]
        %v499 = vld [vmem:[%s356 + $0x14c] sm:$0xf]
        %v500 = vld [vmem:[%s356 + $0x150] sm:$0xff]
        %v501 = vld [vmem:[%s356 + $0x158] sm:$0xf]
        %v502 = vld [vmem:[%s356 + $0x15c] sm:$0xff]
        %v503 = vld [vmem:[%s356 + $0x164] sm:$0xf]
        %v504 = vld [vmem:[%s356 + $0x168] sm:$0xff]
        %v505 = vld [vmem:[%s356 + $0x170] sm:$0xf]
        %v506 = vld [vmem:[%s356 + $0x174] sm:$0xff]
        %v507 = vld [vmem:[%s356 + $0x17c] sm:$0xf]
        %v572 = vunpack.c.l.b16 %v444
        %v573 = vunpack.c.h.b16 %v444
        %v574 = vunpack.c.l.b16 %v445
        %v575 = vunpack.c.l.b16 %v446
        %v576 = vunpack.c.h.b16 %v446
        %v577 = vunpack.c.l.b16 %v447
        %v578 = vunpack.c.l.b16 %v448
        %v579 = vunpack.c.h.b16 %v448
        %v580 = vunpack.c.l.b16 %v449
        %v581 = vunpack.c.l.b16 %v450
        %v582 = vunpack.c.h.b16 %v450
        %v583 = vunpack.c.l.b16 %v451
        %v584 = vunpack.c.l.b16 %v452
        %v585 = vunpack.c.h.b16 %v452
        %v586 = vunpack.c.l.b16 %v453
        %v587 = vunpack.c.l.b16 %v454
        %v588 = vunpack.c.h.b16 %v454
        %v589 = vunpack.c.l.b16 %v455
        %v590 = vunpack.c.l.b16 %v456
        %v591 = vunpack.c.h.b16 %v456
        %v592 = vunpack.c.l.b16 %v457
        %v593 = vunpack.c.l.b16 %v458
        %v594 = vunpack.c.h.b16 %v458
        %v595 = vunpack.c.l.b16 %v459
        %v596 = vunpack.c.l.b16 %v460
        %v597 = vunpack.c.h.b16 %v460
        %v598 = vunpack.c.l.b16 %v461
        %v599 = vunpack.c.l.b16 %v462
        %v600 = vunpack.c.h.b16 %v462
        %v601 = vunpack.c.l.b16 %v463
        %v602 = vunpack.c.l.b16 %v464
        %v603 = vunpack.c.h.b16 %v464
        %v604 = vunpack.c.l.b16 %v465
        %v605 = vunpack.c.l.b16 %v466
        %v606 = vunpack.c.h.b16 %v466
        %v607 = vunpack.c.l.b16 %v467
        %v608 = vunpack.c.l.b16 %v468
        %v609 = vunpack.c.h.b16 %v468
        %v610 = vunpack.c.l.b16 %v469
        %v611 = vunpack.c.l.b16 %v470
        %v612 = vunpack.c.h.b16 %v470
        %v613 = vunpack.c.l.b16 %v471
        %v614 = vunpack.c.l.b16 %v472
        %v615 = vunpack.c.h.b16 %v472
        %v616 = vunpack.c.l.b16 %v473
        %v617 = vunpack.c.l.b16 %v474
        %v618 = vunpack.c.h.b16 %v474
        %v619 = vunpack.c.l.b16 %v475
        %v620 = vunpack.c.l.b16 %v476
        %v621 = vunpack.c.h.b16 %v476
        %v622 = vunpack.c.l.b16 %v477
        %v623 = vunpack.c.l.b16 %v478
        %v624 = vunpack.c.h.b16 %v478
        %v625 = vunpack.c.l.b16 %v479
        %v626 = vunpack.c.l.b16 %v480
        %v627 = vunpack.c.h.b16 %v480
        %v628 = vunpack.c.l.b16 %v481
        %v629 = vunpack.c.l.b16 %v482
        %v630 = vunpack.c.h.b16 %v482
        %v631 = vunpack.c.l.b16 %v483
        %v632 = vunpack.c.l.b16 %v484
        %v633 = vunpack.c.h.b16 %v484
        %v634 = vunpack.c.l.b16 %v485
        %v635 = vunpack.c.l.b16 %v486
        %v636 = vunpack.c.h.b16 %v486
        %v637 = vunpack.c.l.b16 %v487
        %v638 = vunpack.c.l.b16 %v488
        %v639 = vunpack.c.h.b16 %v488
        %v640 = vunpack.c.l.b16 %v489
        %v641 = vunpack.c.l.b16 %v490
        %v642 = vunpack.c.h.b16 %v490
        %v643 = vunpack.c.l.b16 %v491
        %v644 = vunpack.c.l.b16 %v492
        %v645 = vunpack.c.h.b16 %v492
        %v646 = vunpack.c.l.b16 %v493
        %v647 = vunpack.c.l.b16 %v494
        %v648 = vunpack.c.h.b16 %v494
        %v649 = vunpack.c.l.b16 %v495
        %v650 = vunpack.c.l.b16 %v496
        %v651 = vunpack.c.h.b16 %v496
        %v652 = vunpack.c.l.b16 %v497
        %v653 = vunpack.c.l.b16 %v498
        %v654 = vunpack.c.h.b16 %v498
        %v655 = vunpack.c.l.b16 %v499
        %v656 = vunpack.c.l.b16 %v500
        %v657 = vunpack.c.h.b16 %v500
        %v658 = vunpack.c.l.b16 %v501
        %v659 = vunpack.c.l.b16 %v502
        %v660 = vunpack.c.h.b16 %v502
        %v661 = vunpack.c.l.b16 %v503
        %v662 = vunpack.c.l.b16 %v504
        %v663 = vunpack.c.h.b16 %v504
        %v664 = vunpack.c.l.b16 %v505
        %v665 = vunpack.c.l.b16 %v506
        %v666 = vunpack.c.h.b16 %v506
        %v667 = vunpack.c.l.b16 %v507
        %v668 = vpack.c.b16 %v575, %v572
        %v669 = vpack.c.b16 %v576, %v573
        %v670 = vpack.c.b16 %v577, %v574
        %v671 = vpack.c.b16 %v581, %v578
        %v672 = vpack.c.b16 %v582, %v579
        %v673 = vpack.c.b16 %v583, %v580
        %v674 = vpack.c.b16 %v587, %v584
        %v675 = vpack.c.b16 %v588, %v585
        %v676 = vpack.c.b16 %v589, %v586
        %v677 = vpack.c.b16 %v593, %v590
        %v678 = vpack.c.b16 %v594, %v591
        %v679 = vpack.c.b16 %v595, %v592
        %v680 = vpack.c.b16 %v599, %v596
        %v681 = vpack.c.b16 %v600, %v597
        %v682 = vpack.c.b16 %v601, %v598
        %v683 = vpack.c.b16 %v605, %v602
        %v684 = vpack.c.b16 %v606, %v603
        %v685 = vpack.c.b16 %v607, %v604
        %v686 = vpack.c.b16 %v611, %v608
        %v687 = vpack.c.b16 %v612, %v609
        %v688 = vpack.c.b16 %v613, %v610
        %v689 = vpack.c.b16 %v617, %v614
        %v690 = vpack.c.b16 %v618, %v615
        %v691 = vpack.c.b16 %v619, %v616
        %v692 = vpack.c.b16 %v623, %v620
        %v693 = vpack.c.b16 %v624, %v621
        %v694 = vpack.c.b16 %v625, %v622
        %v695 = vpack.c.b16 %v629, %v626
        %v696 = vpack.c.b16 %v630, %v627
        %v697 = vpack.c.b16 %v631, %v628
        %v698 = vpack.c.b16 %v635, %v632
        %v699 = vpack.c.b16 %v636, %v633
        %v700 = vpack.c.b16 %v637, %v634
        %v701 = vpack.c.b16 %v641, %v638
        %v702 = vpack.c.b16 %v642, %v639
        %v703 = vpack.c.b16 %v643, %v640
        %v704 = vpack.c.b16 %v647, %v644
        %v705 = vpack.c.b16 %v648, %v645
        %v706 = vpack.c.b16 %v649, %v646
        %v707 = vpack.c.b16 %v653, %v650
        %v708 = vpack.c.b16 %v654, %v651
        %v709 = vpack.c.b16 %v655, %v652
        %v710 = vpack.c.b16 %v659, %v656
        %v711 = vpack.c.b16 %v660, %v657
        %v712 = vpack.c.b16 %v661, %v658
        %v713 = vpack.c.b16 %v665, %v662
        %v714 = vpack.c.b16 %v666, %v663
        %v715 = vpack.c.b16 %v667, %v664
        %764 = vmatpush.bf16.msra.mxu0 %v689
        %765 = vmatpush.bf16.msra.mxu0 %v686
        %766 = vmatpush.bf16.msra.mxu0 %v683
        %767 = vmatpush.bf16.msra.mxu0 %v680
        %768 = vmatpush.bf16.msra.mxu0 %v677
        %769 = vmatpush.bf16.msra.mxu0 %v674
        %770 = vmatpush.bf16.msra.mxu0 %v671
        %771 = vmatpush.bf16.msra.mxu0 %v668
        %772 = vmatmul.bf16.gmra.mxu0 %v442
        %v773 = vpop.f32.mrf.mxu0
        %v774 = vadd.f32 0.0, %v773
        %v775 = vpop.f32.mrf.mxu0
        %v776 = vadd.f32 0.0, %v775
        %777 = vdwg.mxu0
        %778 = vmatpush.bf16.msra.mxu0 %v713
        %779 = vmatpush.bf16.msra.mxu0 %v710
        %780 = vmatpush.bf16.msra.mxu0 %v707
        %781 = vmatpush.bf16.msra.mxu0 %v704
        %782 = vmatpush.bf16.msra.mxu0 %v701
        %783 = vmatpush.bf16.msra.mxu0 %v698
        %784 = vmatpush.bf16.msra.mxu0 %v695
        %785 = vmatpush.bf16.msra.mxu0 %v692
        %786 = vmatmul.bf16.gmra.mxu0 %v443
        %v787 = vpop.f32.mrf.mxu0
        %v788 = vadd.f32 %v774, %v787
        %v789 = vpop.f32.mrf.mxu0
        %v790 = vadd.f32 %v776, %v789
        %791 = vdwg.mxu0
        %792 = vmatpush.bf16.msra.mxu0 %v690
        %793 = vmatpush.bf16.msra.mxu0 %v687
        %794 = vmatpush.bf16.msra.mxu0 %v684
        %795 = vmatpush.bf16.msra.mxu0 %v681
        %796 = vmatpush.bf16.msra.mxu0 %v678
        %797 = vmatpush.bf16.msra.mxu0 %v675
        %798 = vmatpush.bf16.msra.mxu0 %v672
        %799 = vmatpush.bf16.msra.mxu0 %v669
        %800 = vmatmul.bf16.gmra.mxu0 %v442
        %v801 = vpop.f32.mrf.mxu0
        %v802 = vadd.f32 0.0, %v801
        %v803 = vpop.f32.mrf.mxu0
        %v804 = vadd.f32 0.0, %v803
        %805 = vdwg.mxu0
        %806 = vmatpush.bf16.msra.mxu0 %v714
        %807 = vmatpush.bf16.msra.mxu0 %v711
        %808 = vmatpush.bf16.msra.mxu0 %v708
        %809 = vmatpush.bf16.msra.mxu0 %v705
        %810 = vmatpush.bf16.msra.mxu0 %v702
        %811 = vmatpush.bf16.msra.mxu0 %v699
        %812 = vmatpush.bf16.msra.mxu0 %v696
        %813 = vmatpush.bf16.msra.mxu0 %v693
        %814 = vmatmul.bf16.gmra.mxu0 %v443
        %v815 = vpop.f32.mrf.mxu0
        %v816 = vadd.f32 %v802, %v815
        %v817 = vpop.f32.mrf.mxu0
        %v818 = vadd.f32 %v804, %v817
        %819 = vdwg.mxu0
        %820 = vmatpush.bf16.msra.mxu0 %v691
        %821 = vmatpush.bf16.msra.mxu0 %v688
        %822 = vmatpush.bf16.msra.mxu0 %v685
        %823 = vmatpush.bf16.msra.mxu0 %v682
        %824 = vmatpush.bf16.msra.mxu0 %v679
        %825 = vmatpush.bf16.msra.mxu0 %v676
        %826 = vmatpush.bf16.msra.mxu0 %v673
        %827 = vmatpush.bf16.msra.mxu0 %v670
        %828 = vmatmul.bf16.gmra.mxu0 %v442
        %v829 = vpop.f32.mrf.mxu0
        %v830 = vadd.f32 0.0, %v829
        %v831 = vpop.f32.mrf.mxu0
        %v832 = vadd.f32 0.0, %v831
        %833 = vdwg.mxu0
        %834 = vmatpush.bf16.msra.mxu0 %v715
        %835 = vmatpush.bf16.msra.mxu0 %v712
        %836 = vmatpush.bf16.msra.mxu0 %v709
        %837 = vmatpush.bf16.msra.mxu0 %v706
        %838 = vmatpush.bf16.msra.mxu0 %v703
        %839 = vmatpush.bf16.msra.mxu0 %v700
        %840 = vmatpush.bf16.msra.mxu0 %v697
        %841 = vmatpush.bf16.msra.mxu0 %v694
        %842 = vmatmul.bf16.gmra.mxu0 %v443
        %v843 = vpop.f32.mrf.mxu0
        %v844 = vadd.f32 %v830, %v843
        %v845 = vpop.f32.mrf.mxu0
        %v846 = vadd.f32 %v832, %v845
        %847 = vdwg.mxu0
        %v848 = vadd.f32 %v432, %v788
        %v849 = vadd.f32 %v433, %v816
        %v850 = vadd.f32 %v434, %v844
        %v851 = vadd.f32 %v435, %v790
        %v852 = vadd.f32 %v436, %v818
        %v853 = vadd.f32 %v437, %v846
        %854 = vst [vmem:[%s389] sm:$0xff] %v848
        %855 = vst [vmem:[%s389 + $0x8] sm:$0xff] %v849
        %856 = vst [vmem:[%s389 + $0x10] sm:$0xff] %v850
        %857 = vst [vmem:[%s389 + $0x18] sm:$0xff] %v851
        %858 = vst [vmem:[%s389 + $0x20] sm:$0xff] %v852
        %859 = vst [vmem:[%s389 + $0x28] sm:$0xff] %v853
        %s860 = sand.u32 %s125, 1
        %s861 = sand.u32 %s125, 1
        %s862 = smul.addr %s861, 48
        %s863 = scalar_lea.vmem [#allocation3], %s862
        // Predicated region
        $region63: #{transformer_block_forward.20} parent=53 // pred_check
          %p864 = pneg %p135
        $region64: #{transformer_block_forward.20} parent=53 // pred_check_branch
          %866 = sbr.rel (%p864) target = $region66
        $region65: #{transformer_block_forward.20} parent=53 // pred_region
          %s867 = smul.u32 2, %s19
          %s868 = smul.u32 3, %s20
          %s869 = smul.addr %s867, 6
          %s870 = sadd.s32 %s868, %s869
          %s871 = smul.addr %s870, 8
          %s872 = scalar_lea.vmem %s3, %s871
          // Predicated region
          $region67: #{transformer_block_forward.20} parent=65 // pred_check
            _
          $region68: #{transformer_block_forward.20} parent=65 // pred_check_branch
            %874 = sbr.rel (0) target = $region70
          $region69: #{transformer_block_forward.20} parent=65 // pred_region
            // Predicated region
            $region71: #{transformer_block_forward.20} parent=69 // pred_check
              _
            $region72: #{transformer_block_forward.20} parent=69 // pred_check_branch
              %876 = sbr.rel (0) target = $region74
            $region73: #{transformer_block_forward.20} parent=69 // pred_region
              loop: start=0, step=1, limit=1
              $region75: #{transformer_block_forward.20} parent=73 // loop_pre_header
                _
              $region76: #{transformer_block_forward.20} parent=73 // loop_header
                %s878 = sphi 0, %s882
                %p879 = scmp.ge.s32.totalorder %s878, 1
                %s883 = sphi %s863, %s863
                %s884 = sphi %s872, %s872
              $region77: #{transformer_block_forward.20} parent=73 // loop_header_branch
                %881 = sbr.rel (%p879) target = $region81
              $region78: #{transformer_block_forward.20} parent=73 // loop_body
                %v885 = vld [vmem:[%s883] sm:$0xff]
                %886 = vst [vmem:[%s884] sm:$0xff] %v885
                %v887 = vld [vmem:[%s883 + $0x8] sm:$0xff]
                %888 = vst [vmem:[%s884 + $0x8] sm:$0xff] %v887
                %v889 = vld [vmem:[%s883 + $0x10] sm:$0xff]
                %890 = vst [vmem:[%s884 + $0x10] sm:$0xff] %v889
                %v891 = vld [vmem:[%s883 + $0x18] sm:$0xff]
                %892 = vst [vmem:[%s884 + $0x30] sm:$0xff] %v891
                %v893 = vld [vmem:[%s883 + $0x20] sm:$0xff]
                %894 = vst [vmem:[%s884 + $0x38] sm:$0xff] %v893
                %v895 = vld [vmem:[%s883 + $0x28] sm:$0xff]
                %896 = vst [vmem:[%s884 + $0x40] sm:$0xff] %v895
              $region79: #{transformer_block_forward.20} parent=73 // loop_footer
                %s882 = sadd.s32 1, %s878
              $region80: #{transformer_block_forward.20} parent=73 // loop_footer_branch
                %877 = sbr.rel target = $region76
              $region81: #{transformer_block_forward.20} parent=73 // loop_exit
                _
            $region74: #{transformer_block_forward.20} parent=69 // pred_fallthru
              _
            // Predicated region
            $region82: #{transformer_block_forward.20} parent=69 // pred_check
              _
            $region83: #{transformer_block_forward.20} parent=69 // pred_check_branch
              %898 = sbr.rel target = $region85
            $region84: #{transformer_block_forward.20} parent=69 // pred_region
              _
            $region85: #{transformer_block_forward.20} parent=69 // pred_fallthru
              _
          $region70: #{transformer_block_forward.20} parent=65 // pred_fallthru
            _
          %899 = vnop
        $region66: #{transformer_block_forward.20} parent=53 // pred_fallthru
          _
      $region54: #{transformer_block_forward.20} parent=5 // pred_fallthru
        _
      %p900 = scmp.le.s32.totalorder 2, %s9
      // Predicated region
      $region86: #{transformer_block_forward.20} parent=5 // pred_check
        %p901 = pneg %p900
      $region87: #{transformer_block_forward.20} parent=5 // pred_check_branch
        %903 = sbr.rel (%p901) target = $region89
      $region88: #{transformer_block_forward.20} parent=5 // pred_region
        %s904 = ssub.s32 %s9, 2
        // Predicated region
        $region90: #{transformer_block_forward.20} parent=88 // pred_check
          %p905 = pneg %p141
        $region91: #{transformer_block_forward.20} parent=88 // pred_check_branch
          %907 = sbr.rel (%p905) target = $region93
        $region92: #{transformer_block_forward.20} parent=88 // pred_region
          %s908 = sand.u32 %s126, 1
          %s909 = sand.u32 %s126, 1
          %s910 = smul.addr %s909, 48
          %s911 = scalar_lea.vmem [#allocation3], %s910
        $region93: #{transformer_block_forward.20} parent=88 // pred_fallthru
          _
      $region89: #{transformer_block_forward.20} parent=5 // pred_fallthru
        _
    $region6: #{transformer_block_forward.20} parent=1 // loop_footer
      %s13 = sadd.s32 1, %s9
    $region7: #{transformer_block_forward.20} parent=1 // loop_footer_branch
      %8 = sbr.rel target = $region3
    $region8: #{transformer_block_forward.20} parent=1 // loop_exit
      _

// kernel: transformer_block_forward.18
$region0: #{transformer_block_forward.18}
  #allocation0 [shape = 'u32[]', space=smem, size = 0x4, offset = 0x4, fixed_abs, tag = 'smem constant byte address 0x4 - core index']
  #allocation1 [shape = 'u32[72,128]{1,0:T(1,128)}', space=vmem, size = 0x9000, scoped, tag = 'internal scratch']
  #allocation2 [shape = 'f32[16,512]{1,0:T(8,128)}', space=vmem, size = 0x8000, scoped, tag = 'scratch operand']
  %s0 = inlined_call_operand.vmem [shape: f32[16,256], index: 0, kind: input, shape index: {}]
  %s1 = inlined_call_operand.vmem [shape: bf16[256,1024], index: 1, kind: input, shape index: {}]
  %s2 = inlined_call_operand.vmem [shape: f32[1,1024], index: 2, kind: input, shape index: {}]
  %s3 = inlined_call_operand.vmem [shape: f32[16,1024], index: 3, kind: output, shape index: {}]
  %s4 = sld [smem:[#allocation0]]
  $region95: #{transformer_block_forward.18} parent=0
    _
  %s6 = ssub.s32 1, %s4
  %s7 = scalar_select 0, %s6, %s4
  $region1: #{transformer_block_forward.18} parent=0
    #allocation3 [shape = 'u8[524288]{0}', space=vmem, size = 0x80000, scoped, tag = 'input window, operand 1']
    #allocation4 [shape = 'u8[65536]{0}', space=vmem, size = 0x10000, scoped, tag = 'output window, operand 0']
    loop: start=0, step=1, limit=4
    $region2: #{transformer_block_forward.18} parent=1 // loop_pre_header
      _
    $region3: #{transformer_block_forward.18} parent=1 // loop_header
      %s9 = sphi 0, %s13
      %p10 = scmp.ge.s32.totalorder %s9, 4
      %s16 = sphi 0, %s35
      %s17 = sphi 0, %s31
      %s18 = sphi 0, %s27
      %s19 = sphi 0, %s16
      %s20 = sphi 0, %s17
      %s21 = sphi 0, %s18
      %s22 = sphi 0, %s19
      %s23 = sphi 0, %s20
      %s24 = sphi 0, %s21
      %s40 = sphi 0, %s42
      %s43 = sphi 0, %s40
      %s44 = sphi 0, %s43
      %s60 = sphi 0, %s44
      %s68 = sphi 0, %s70
      %s71 = sphi 0, %s68
      %s72 = sphi 0, %s71
      %s88 = sphi 0, %s72
      %s94 = sphi 0, %s96
      %s97 = sphi 0, %s94
      %s98 = sphi 0, %s97
      %s114 = sphi 0, %s98
      %s122 = sphi 0, %s124
      %s125 = sphi 0, %s122
      %s126 = sphi 0, %s125
      %s142 = sphi 0, %s126
    $region4: #{transformer_block_forward.18} parent=1 // loop_header_branch
      %12 = sbr.rel (%p10) target = $region8
    $region5: #{transformer_block_forward.18} parent=1 // loop_body
      %s14 = ssub.s32 %s9, 1
      %s15 = ssub.s32 %s9, 2
      %s25 = sadd.s32 1, %s18
      %p26 = scmp.ge.s32.totalorder %s25, 1
      %s27 = scalar_select %p26, 0, %s25
      %s28 = sadd.s32 1, %s17
      %s29 = scalar_select %p26, %s28, %s17
      %p30 = scmp.ge.s32.totalorder %s29, 2
      %s31 = scalar_select %p30, 0, %s29
      %s32 = sadd.s32 1, %s16
      %s33 = scalar_select %p30, %s32, %s16
      %p34 = scmp.ge.s32.totalorder %s33, 1
      %s35 = scalar_select %p34, 0, %s33
      %s36 = ssub.s32 %s16, %s35
      %s37 = ssub.s32 %s18, %s27
      %s38 = sor.u32 %s36, %s37
      %p39 = scmp.eq.s32.totalorder %s38, 0
      %s41 = sadd.s32 %s40, 1
      %s42 = scalar_select %p39, %s40, %s41
      %p45 = pneg %p39
      %p46 = scmp.eq.s32.totalorder %s9, 1
      %p47 = por %p45, %p46
      %p48 = scmp.ne.s32.totalorder %s40, %s43
      %p49 = scmp.eq.s32.totalorder %s9, 0
      %p50 = por %p48, %p49
      %p51 = scmp.ne.s32.totalorder %s40, %s43
      %p52 = scmp.eq.s32.totalorder %s14, 1
      %p53 = por %p51, %p52
      %p54 = scmp.ne.s32.totalorder %s43, %s44
      %p55 = scmp.eq.s32.totalorder %s14, 0
      %p56 = por %p54, %p55
      %p57 = scmp.ne.s32.totalorder %s43, %s44
      %p58 = scmp.eq.s32.totalorder %s15, 1
      %p59 = por %p57, %p58
      %p61 = scmp.ne.s32.totalorder %s44, %s60
      %p62 = scmp.eq.s32.totalorder %s15, 0
      %p63 = por %p61, %p62
      %s64 = ssub.s32 %s18, %s27
      %s65 = ssub.s32 %s17, %s31
      %s66 = sor.u32 %s64, %s65
      %p67 = scmp.eq.s32.totalorder %s66, 0
      %s69 = sadd.s32 %s68, 1
      %s70 = scalar_select %p67, %s68, %s69
      %p73 = pneg %p67
      %p74 = scmp.eq.s32.totalorder %s9, 1
      %p75 = por %p73, %p74
      %p76 = scmp.ne.s32.totalorder %s68, %s71
      %p77 = scmp.eq.s32.totalorder %s9, 0
      %p78 = por %p76, %p77
      %p79 = scmp.ne.s32.totalorder %s68, %s71
      %p80 = scmp.eq.s32.totalorder %s14, 1
      %p81 = por %p79, %p80
      %p82 = scmp.ne.s32.totalorder %s71, %s72
      %p83 = scmp.eq.s32.totalorder %s14, 0
      %p84 = por %p82, %p83
      %p85 = scmp.ne.s32.totalorder %s71, %s72
      %p86 = scmp.eq.s32.totalorder %s15, 1
      %p87 = por %p85, %p86
      %p89 = scmp.ne.s32.totalorder %s72, %s88
      %p90 = scmp.eq.s32.totalorder %s15, 0
      %p91 = por %p89, %p90
      %s92 = ssub.s32 %s17, %s31
      %p93 = scmp.eq.s32.totalorder %s92, 0
      %s95 = sadd.s32 %s94, 1
      %s96 = scalar_select %p93, %s94, %s95
      %p99 = pneg %p93
      %p100 = scmp.eq.s32.totalorder %s9, 1
      %p101 = por %p99, %p100
      %p102 = scmp.ne.s32.totalorder %s94, %s97
      %p103 = scmp.eq.s32.totalorder %s9, 0
      %p104 = por %p102, %p103
      %p105 = scmp.ne.s32.totalorder %s94, %s97
      %p106 = scmp.eq.s32.totalorder %s14, 1
      %p107 = por %p105, %p106
      %p108 = scmp.ne.s32.totalorder %s97, %s98
      %p109 = scmp.eq.s32.totalorder %s14, 0
      %p110 = por %p108, %p109
      %p111 = scmp.ne.s32.totalorder %s97, %s98
      %p112 = scmp.eq.s32.totalorder %s15, 1
      %p113 = por %p111, %p112
      %p115 = scmp.ne.s32.totalorder %s98, %s114
      %p116 = scmp.eq.s32.totalorder %s15, 0
      %p117 = por %p115, %p116
      %s118 = ssub.s32 %s16, %s35
      %s119 = ssub.s32 %s17, %s31
      %s120 = sor.u32 %s118, %s119
      %p121 = scmp.eq.s32.totalorder %s120, 0
      %s123 = sadd.s32 %s122, 1
      %s124 = scalar_select %p121, %s122, %s123
      %p127 = pneg %p121
      %p128 = scmp.eq.s32.totalorder %s9, 1
      %p129 = por %p127, %p128
      %p130 = scmp.ne.s32.totalorder %s122, %s125
      %p131 = scmp.eq.s32.totalorder %s9, 0
      %p132 = por %p130, %p131
      %p133 = scmp.ne.s32.totalorder %s122, %s125
      %p134 = scmp.eq.s32.totalorder %s14, 1
      %p135 = por %p133, %p134
      %p136 = scmp.ne.s32.totalorder %s125, %s126
      %p137 = scmp.eq.s32.totalorder %s14, 0
      %p138 = por %p136, %p137
      %p139 = scmp.ne.s32.totalorder %s125, %s126
      %p140 = scmp.eq.s32.totalorder %s15, 1
      %p141 = por %p139, %p140
      %p143 = scmp.ne.s32.totalorder %s126, %s142
      %p144 = scmp.eq.s32.totalorder %s15, 0
      %p145 = por %p143, %p144
      %p146 = scmp.le.s32.totalorder 1, %s9
      %p147 = scmp.lt.s32.totalorder %s9, 3
      %p148 = pnand %p146, %p147
      %p149 = pneg %p148
      // Predicated region
      $region9: #{transformer_block_forward.18} parent=5 // pred_check
        _
      $region10: #{transformer_block_forward.18} parent=5 // pred_check_branch
        %151 = sbr.rel (%p148) target = $region12
      $region11: #{transformer_block_forward.18} parent=5 // pred_region
        %s152 = ssub.s32 %s9, 1
        // Predicated region
        $region13: #{transformer_block_forward.18} parent=11 // pred_check
          %p153 = pneg %p56
        $region14: #{transformer_block_forward.18} parent=11 // pred_check_branch
          %155 = sbr.rel (%p153) target = $region16
        $region15: #{transformer_block_forward.18} parent=11 // pred_region
          %s156 = smul.u32 2, %s19
          %s157 = smul.u32 2, %s21
          %p158 = scmp.lt.s32.totalorder %s156, 1
          %s159 = scalar_select %p158, %s156, 1
          %p160 = scmp.lt.s32.totalorder %s157, 1
          %s161 = scalar_select %p160, %s157, 1
          %s162 = smul.addr %s159, 2
          %s163 = sadd.s32 %s161, %s162
          %s164 = smul.addr %s163, 8
          %s165 = scalar_lea.vmem %s0, %s164
          %s166 = smul.u32 2, %s19
          %s167 = smul.u32 2, %s21
        $region16: #{transformer_block_forward.18} parent=11 // pred_fallthru
          _
      $region12: #{transformer_block_forward.18} parent=5 // pred_fallthru
        _
      %p168 = scmp.lt.s32.totalorder %s9, 2
      // Predicated region
      $region17: #{transformer_block_forward.18} parent=5 // pred_check
        %p169 = pneg %p168
      $region18: #{transformer_block_forward.18} parent=5 // pred_check_branch
        %171 = sbr.rel (%p169) target = $region20
      $region19: #{transformer_block_forward.18} parent=5 // pred_region
        // Predicated region
        $region21: #{transformer_block_forward.18} parent=19 // pred_check
          %p172 = pneg %p78
        $region22: #{transformer_block_forward.18} parent=19 // pred_check_branch
          %174 = sbr.rel (%p172) target = $region24
        $region23: #{transformer_block_forward.18} parent=19 // pred_region
          %s175 = sand.u32 %s68, 1
          %s176 = sand.u32 %s68, 1
          %s177 = smul.addr %s176, 512
          %s178 = scalar_lea.vmem [#allocation3], %s177
          %s179 = smul.u32 32, %s18
          %s180 = smul.u32 4, %s17
          %s181 = smul.addr %s179, 8
          %s182 = sadd.s32 %s180, %s181
          %s183 = smul.addr %s182, 4
          %s184 = scalar_lea.vmem %s1, %s183
          // Predicated region
          $region25: #{transformer_block_forward.18} parent=23 // pred_check
            _
          $region26: #{transformer_block_forward.18} parent=23 // pred_check_branch
            %186 = sbr.rel (0) target = $region28
          $region27: #{transformer_block_forward.18} parent=23 // pred_region
            // Predicated region
            $region29: #{transformer_block_forward.18} parent=27 // pred_check
              _
            $region30: #{transformer_block_forward.18} parent=27 // pred_check_branch
              %188 = sbr.rel (0) target = $region32
            $region31: #{transformer_block_forward.18} parent=27 // pred_region
              loop: start=0, step=1, limit=1
              $region33: #{transformer_block_forward.18} parent=31 // loop_pre_header
                _
              $region34: #{transformer_block_forward.18} parent=31 // loop_header
                %s190 = sphi 0, %s194
                %p191 = scmp.ge.s32.totalorder %s190, 1
                %s195 = sphi %s184, %s184
                %s196 = sphi %s178, %s178
              $region35: #{transformer_block_forward.18} parent=31 // loop_header_branch
                %193 = sbr.rel (%p191) target = $region39
              $region36: #{transformer_block_forward.18} parent=31 // loop_body
                %v197 = vld [vmem:[%s195] sm:$0xff]
                %198 = vst [vmem:[%s196] sm:$0xff] %v197
                %v199 = vld [vmem:[%s195 + $0x8] sm:$0xff]
                %200 = vst [vmem:[%s196 + $0x8] sm:$0xff] %v199
                %v201 = vld [vmem:[%s195 + $0x20] sm:$0xff]
                %202 = vst [vmem:[%s196 + $0x10] sm:$0xff] %v201
                %v203 = vld [vmem:[%s195 + $0x28] sm:$0xff]
                %204 = vst [vmem:[%s196 + $0x18] sm:$0xff] %v203
                %v205 = vld [vmem:[%s195 + $0x40] sm:$0xff]
                %206 = vst [vmem:[%s196 + $0x20] sm:$0xff] %v205
                %v207 = vld [vmem:[%s195 + $0x48] sm:$0xff]
                %208 = vst [vmem:[%s196 + $0x28] sm:$0xff] %v207
                %v209 = vld [vmem:[%s195 + $0x60] sm:$0xff]
                %210 = vst [vmem:[%s196 + $0x30] sm:$0xff] %v209
                %v211 = vld [vmem:[%s195 + $0x68] sm:$0xff]
                %212 = vst [vmem:[%s196 + $0x38] sm:$0xff] %v211
                %v213 = vld [vmem:[%s195 + $0x80] sm:$0xff]
                %214 = vst [vmem:[%s196 + $0x40] sm:$0xff] %v213
                %v215 = vld [vmem:[%s195 + $0x88] sm:$0xff]
                %216 = vst [vmem:[%s196 + $0x48] sm:$0xff] %v215
                %v217 = vld [vmem:[%s195 + $0xa0] sm:$0xff]
                %218 = vst [vmem:[%s196 + $0x50] sm:$0xff] %v217
                %v219 = vld [vmem:[%s195 + $0xa8] sm:$0xff]
                %220 = vst [vmem:[%s196 + $0x58] sm:$0xff] %v219
                %v221 = vld [vmem:[%s195 + $0xc0] sm:$0xff]
                %222 = vst [vmem:[%s196 + $0x60] sm:$0xff] %v221
                %v223 = vld [vmem:[%s195 + $0xc8] sm:$0xff]
                %224 = vst [vmem:[%s196 + $0x68] sm:$0xff] %v223
                %v225 = vld [vmem:[%s195 + $0xe0] sm:$0xff]
                %226 = vst [vmem:[%s196 + $0x70] sm:$0xff] %v225
                %v227 = vld [vmem:[%s195 + $0xe8] sm:$0xff]
                %228 = vst [vmem:[%s196 + $0x78] sm:$0xff] %v227
                %v229 = vld [vmem:[%s195 + $0x100] sm:$0xff]
                %230 = vst [vmem:[%s196 + $0x80] sm:$0xff] %v229
                %v231 = vld [vmem:[%s195 + $0x108] sm:$0xff]
                %232 = vst [vmem:[%s196 + $0x88] sm:$0xff] %v231
                %v233 = vld [vmem:[%s195 + $0x120] sm:$0xff]
                %234 = vst [vmem:[%s196 + $0x90] sm:$0xff] %v233
                %v235 = vld [vmem:[%s195 + $0x128] sm:$0xff]
                %236 = vst [vmem:[%s196 + $0x98] sm:$0xff] %v235
                %v237 = vld [vmem:[%s195 + $0x140] sm:$0xff]
                %238 = vst [vmem:[%s196 + $0xa0] sm:$0xff] %v237
                %v239 = vld [vmem:[%s195 + $0x148] sm:$0xff]
                %240 = vst [vmem:[%s196 + $0xa8] sm:$0xff] %v239
                %v241 = vld [vmem:[%s195 + $0x160] sm:$0xff]
                %242 = vst [vmem:[%s196 + $0xb0] sm:$0xff] %v241
                %v243 = vld [vmem:[%s195 + $0x168] sm:$0xff]
                %244 = vst [vmem:[%s196 + $0xb8] sm:$0xff] %v243
                %v245 = vld [vmem:[%s195 + $0x180] sm:$0xff]
                %246 = vst [vmem:[%s196 + $0xc0] sm:$0xff] %v245
                %v247 = vld [vmem:[%s195 + $0x188] sm:$0xff]
                %248 = vst [vmem:[%s196 + $0xc8] sm:$0xff] %v247
                %v249 = vld [vmem:[%s195 + $0x1a0] sm:$0xff]
                %250 = vst [vmem:[%s196 + $0xd0] sm:$0xff] %v249
                %v251 = vld [vmem:[%s195 + $0x1a8] sm:$0xff]
                %252 = vst [vmem:[%s196 + $0xd8] sm:$0xff] %v251
                %v253 = vld [vmem:[%s195 + $0x1c0] sm:$0xff]
                %254 = vst [vmem:[%s196 + $0xe0] sm:$0xff] %v253
                %v255 = vld [vmem:[%s195 + $0x1c8] sm:$0xff]
                %256 = vst [vmem:[%s196 + $0xe8] sm:$0xff] %v255
                %v257 = vld [vmem:[%s195 + $0x1e0] sm:$0xff]
                %258 = vst [vmem:[%s196 + $0xf0] sm:$0xff] %v257
                %v259 = vld [vmem:[%s195 + $0x1e8] sm:$0xff]
                %260 = vst [vmem:[%s196 + $0xf8] sm:$0xff] %v259
                %v261 = vld [vmem:[%s195 + $0x200] sm:$0xff]
                %262 = vst [vmem:[%s196 + $0x100] sm:$0xff] %v261
                %v263 = vld [vmem:[%s195 + $0x208] sm:$0xff]
                %264 = vst [vmem:[%s196 + $0x108] sm:$0xff] %v263
                %v265 = vld [vmem:[%s195 + $0x220] sm:$0xff]
                %266 = vst [vmem:[%s196 + $0x110] sm:$0xff] %v265
                %v267 = vld [vmem:[%s195 + $0x228] sm:$0xff]
                %268 = vst [vmem:[%s196 + $0x118] sm:$0xff] %v267
                %v269 = vld [vmem:[%s195 + $0x240] sm:$0xff]
                %270 = vst [vmem:[%s196 + $0x120] sm:$0xff] %v269
                %v271 = vld [vmem:[%s195 + $0x248] sm:$0xff]
                %272 = vst [vmem:[%s196 + $0x128] sm:$0xff] %v271
                %v273 = vld [vmem:[%s195 + $0x260] sm:$0xff]
                %274 = vst [vmem:[%s196 + $0x130] sm:$0xff] %v273
                %v275 = vld [vmem:[%s195 + $0x268] sm:$0xff]
                %276 = vst [vmem:[%s196 + $0x138] sm:$0xff] %v275
                %v277 = vld [vmem:[%s195 + $0x280] sm:$0xff]
                %278 = vst [vmem:[%s196 + $0x140] sm:$0xff] %v277
                %v279 = vld [vmem:[%s195 + $0x288] sm:$0xff]
                %280 = vst [vmem:[%s196 + $0x148] sm:$0xff] %v279
                %v281 = vld [vmem:[%s195 + $0x2a0] sm:$0xff]
                %282 = vst [vmem:[%s196 + $0x150] sm:$0xff] %v281
                %v283 = vld [vmem:[%s195 + $0x2a8] sm:$0xff]
                %284 = vst [vmem:[%s196 + $0x158] sm:$0xff] %v283
                %v285 = vld [vmem:[%s195 + $0x2c0] sm:$0xff]
                %286 = vst [vmem:[%s196 + $0x160] sm:$0xff] %v285
                %v287 = vld [vmem:[%s195 + $0x2c8] sm:$0xff]
                %288 = vst [vmem:[%s196 + $0x168] sm:$0xff] %v287
                %v289 = vld [vmem:[%s195 + $0x2e0] sm:$0xff]
                %290 = vst [vmem:[%s196 + $0x170] sm:$0xff] %v289
                %v291 = vld [vmem:[%s195 + $0x2e8] sm:$0xff]
                %292 = vst [vmem:[%s196 + $0x178] sm:$0xff] %v291
                %v293 = vld [vmem:[%s195 + $0x300] sm:$0xff]
                %294 = vst [vmem:[%s196 + $0x180] sm:$0xff] %v293
                %v295 = vld [vmem:[%s195 + $0x308] sm:$0xff]
                %296 = vst [vmem:[%s196 + $0x188] sm:$0xff] %v295
                %v297 = vld [vmem:[%s195 + $0x320] sm:$0xff]
                %298 = vst [vmem:[%s196 + $0x190] sm:$0xff] %v297
                %v299 = vld [vmem:[%s195 + $0x328] sm:$0xff]
                %300 = vst [vmem:[%s196 + $0x198] sm:$0xff] %v299
                %v301 = vld [vmem:[%s195 + $0x340] sm:$0xff]
                %302 = vst [vmem:[%s196 + $0x1a0] sm:$0xff] %v301
                %v303 = vld [vmem:[%s195 + $0x348] sm:$0xff]
                %304 = vst [vmem:[%s196 + $0x1a8] sm:$0xff] %v303
                %v305 = vld [vmem:[%s195 + $0x360] sm:$0xff]
                %306 = vst [vmem:[%s196 + $0x1b0] sm:$0xff] %v305
                %v307 = vld [vmem:[%s195 + $0x368] sm:$0xff]
                %308 = vst [vmem:[%s196 + $0x1b8] sm:$0xff] %v307
                %v309 = vld [vmem:[%s195 + $0x380] sm:$0xff]
                %310 = vst [vmem:[%s196 + $0x1c0] sm:$0xff] %v309
                %v311 = vld [vmem:[%s195 + $0x388] sm:$0xff]
                %312 = vst [vmem:[%s196 + $0x1c8] sm:$0xff] %v311
                %v313 = vld [vmem:[%s195 + $0x3a0] sm:$0xff]
                %314 = vst [vmem:[%s196 + $0x1d0] sm:$0xff] %v313
                %v315 = vld [vmem:[%s195 + $0x3a8] sm:$0xff]
                %316 = vst [vmem:[%s196 + $0x1d8] sm:$0xff] %v315
                %v317 = vld [vmem:[%s195 + $0x3c0] sm:$0xff]
                %318 = vst [vmem:[%s196 + $0x1e0] sm:$0xff] %v317
                %v319 = vld [vmem:[%s195 + $0x3c8] sm:$0xff]
                %320 = vst [vmem:[%s196 + $0x1e8] sm:$0xff] %v319
                %v321 = vld [vmem:[%s195 + $0x3e0] sm:$0xff]
                %322 = vst [vmem:[%s196 + $0x1f0] sm:$0xff] %v321
                %v323 = vld [vmem:[%s195 + $0x3e8] sm:$0xff]
                %324 = vst [vmem:[%s196 + $0x1f8] sm:$0xff] %v323
              $region37: #{transformer_block_forward.18} parent=31 // loop_footer
                %s194 = sadd.s32 1, %s190
              $region38: #{transformer_block_forward.18} parent=31 // loop_footer_branch
                %189 = sbr.rel target = $region34
              $region39: #{transformer_block_forward.18} parent=31 // loop_exit
                _
            $region32: #{transformer_block_forward.18} parent=27 // pred_fallthru
              _
            // Predicated region
            $region40: #{transformer_block_forward.18} parent=27 // pred_check
              _
            $region41: #{transformer_block_forward.18} parent=27 // pred_check_branch
              %326 = sbr.rel target = $region43
            $region42: #{transformer_block_forward.18} parent=27 // pred_region
              _
            $region43: #{transformer_block_forward.18} parent=27 // pred_fallthru
              _
          $region28: #{transformer_block_forward.18} parent=23 // pred_fallthru
            _
          %327 = vnop
        $region24: #{transformer_block_forward.18} parent=19 // pred_fallthru
          _
        // Predicated region
        $region44: #{transformer_block_forward.18} parent=19 // pred_check
          %p328 = pneg %p104
        $region45: #{transformer_block_forward.18} parent=19 // pred_check_branch
          %330 = sbr.rel (%p328) target = $region47
        $region46: #{transformer_block_forward.18} parent=19 // pred_region
          %s331 = smul.u32 4, %s17
          %p332 = scmp.lt.s32.totalorder %s331, 7
          %s333 = scalar_select %p332, %s331, 7
          %s334 = scalar_lea.vmem %s2, %s333
          %s335 = smul.u32 4, %s17
        $region47: #{transformer_block_forward.18} parent=19 // pred_fallthru
          _
      $region20: #{transformer_block_forward.18} parent=5 // pred_fallthru
        _
      %p336 = scmp.le.s32.totalorder 1, %s9
      %p337 = scmp.lt.s32.totalorder %s9, 3
      %p338 = pnand %p336, %p337
      %p339 = pneg %p338
      // Predicated region
      $region48: #{transformer_block_forward.18} parent=5 // pred_check
        _
      $region49: #{transformer_block_forward.18} parent=5 // pred_check_branch
        %341 = sbr.rel (%p338) target = $region51
      $region50: #{transformer_block_forward.18} parent=5 // pred_region
        %s342 = ssub.s32 %s9, 1
        %s343 = sand.u32 %s71, 1
        %s344 = sand.u32 %s71, 1
        %s345 = smul.addr %s344, 512
        %s346 = scalar_lea.vmem [#allocation3], %s345
        // Predicated region
        $region52: #{transformer_block_forward.18} parent=50 // pred_check
          %p347 = pneg %p84
        $region53: #{transformer_block_forward.18} parent=50 // pred_check_branch
          %349 = sbr.rel (%p347) target = $region55
        $region54: #{transformer_block_forward.18} parent=50 // pred_region
          _
        $region55: #{transformer_block_forward.18} parent=50 // pred_fallthru
          _
        %s350 = smul.u32 2, %s19
        %s351 = smul.u32 2, %s21
        %p352 = scmp.lt.s32.totalorder %s350, 1
        %s353 = scalar_select %p352, %s350, 1
        %p354 = scmp.lt.s32.totalorder %s351, 1
        %s355 = scalar_select %p354, %s351, 1
        %s356 = smul.addr %s353, 2
        %s357 = sadd.s32 %s355, %s356
        %s358 = smul.addr %s357, 8
        %s359 = scalar_lea.vmem %s0, %s358
        %p360 = pneg %p56
        %p361 = pneg %p53
        %s362 = sand.u32 %s71, 1
        %s363 = sand.u32 %s71, 1
        %s364 = smul.addr %s363, 512
        %s365 = scalar_lea.vmem [#allocation3], %s364
        %p366 = pneg %p84
        %p367 = pneg %p81
        %s368 = smul.u32 4, %s20
        %p369 = scmp.lt.s32.totalorder %s368, 7
        %s370 = scalar_select %p369, %s368, 7
        %s371 = scalar_lea.vmem %s2, %s370
        %p372 = pneg %p110
        %p373 = pneg %p107
        %p374 = pneg %p138
        %p375 = pneg %p135
        %s376 = sand.u32 %s125, 1
        %s377 = sand.u32 %s125, 1
        %s378 = smul.addr %s377, 64
        %s379 = scalar_lea.vmem [#allocation4], %s378
        %s380 = smul.u32 2, %s19
        %s381 = smul.u32 2, %s21
        %p382 = scmp.lt.s32.totalorder %s380, 1
        %s383 = scalar_select %p382, %s380, 1
        %p384 = scmp.lt.s32.totalorder %s381, 1
        %s385 = scalar_select %p384, %s381, 1
        %s386 = smul.addr %s383, 2
        %s387 = sadd.s32 %s385, %s386
        %s388 = smul.addr %s387, 8
        %s389 = scalar_lea.vmem %s0, %s388
        %s390 = smul.u32 2, %s19
        %s391 = smul.u32 2, %s21
        %s392 = smul.u32 32, %s21
        %s393 = smul.u32 4, %s20
        %s394 = smul.u32 4, %s20
        %p395 = scmp.lt.s32.totalorder %s394, 7
        %s396 = scalar_select %p395, %s394, 7
        %s397 = scalar_lea.vmem %s2, %s396
        %s398 = smul.u32 4, %s20
        %s399 = smul.u32 2, %s19
        %s400 = smul.u32 4, %s20
        %p401 = scmp.eq.s32.totalorder %s21, 0
        // Predicated region
        $region56: #{transformer_block_forward.18} parent=50 // pred_check
          %p402 = pneg %p401
        $region57: #{transformer_block_forward.18} parent=50 // pred_check_branch
          %404 = sbr.rel (%p402) target = $region59
        $region58: #{transformer_block_forward.18} parent=50 // pred_region
          %405 = vst [vmem:[#allocation2] sm:$0xff] 0.0
          %406 = vst [vmem:[#allocation2 + $0x8] sm:$0xff] 0.0
          %407 = vst [vmem:[#allocation2 + $0x10] sm:$0xff] 0.0
          %408 = vst [vmem:[#allocation2 + $0x18] sm:$0xff] 0.0
          %409 = vst [vmem:[#allocation2 + $0x20] sm:$0xff] 0.0
          %410 = vst [vmem:[#allocation2 + $0x28] sm:$0xff] 0.0
          %411 = vst [vmem:[#allocation2 + $0x30] sm:$0xff] 0.0
          %412 = vst [vmem:[#allocation2 + $0x38] sm:$0xff] 0.0
        $region59: #{transformer_block_forward.18} parent=50 // pred_fallthru
          _
        %v413 = vld [vmem:[#allocation2] sm:$0xff]
        %v414 = vld [vmem:[#allocation2 + $0x8] sm:$0xff]
        %v415 = vld [vmem:[#allocation2 + $0x10] sm:$0xff]
        %v416 = vld [vmem:[#allocation2 + $0x18] sm:$0xff]
        %v417 = vld [vmem:[#allocation2 + $0x20] sm:$0xff]
        %v418 = vld [vmem:[#allocation2 + $0x28] sm:$0xff]
        %v419 = vld [vmem:[#allocation2 + $0x30] sm:$0xff]
        %v420 = vld [vmem:[#allocation2 + $0x38] sm:$0xff]
        %v421 = vld [vmem:[%s389] sm:$0xff]
        %v422 = vld [vmem:[%s389 + $0x8] sm:$0xff]
        %v423 = vld [vmem:[%s389 + $0x10] sm:$0xff]
        %v424 = vld [vmem:[%s389 + $0x18] sm:$0xff]
        %v425 = vpack.c.bf16 %v423, %v421
        %v426 = vpack.c.bf16 %v424, %v422
        %v427 = vld [vmem:[%s346] sm:$0xff]
        %v428 = vld [vmem:[%s346 + $0x8] sm:$0xff]
        %v429 = vld [vmem:[%s346 + $0x10] sm:$0xff]
        %v430 = vld [vmem:[%s346 + $0x18] sm:$0xff]
        %v431 = vld [vmem:[%s346 + $0x20] sm:$0xff]
        %v432 = vld [vmem:[%s346 + $0x28] sm:$0xff]
        %v433 = vld [vmem:[%s346 + $0x30] sm:$0xff]
        %v434 = vld [vmem:[%s346 + $0x38] sm:$0xff]
        %v435 = vld [vmem:[%s346 + $0x40] sm:$0xff]
        %v436 = vld [vmem:[%s346 + $0x48] sm:$0xff]
        %v437 = vld [vmem:[%s346 + $0x50] sm:$0xff]
        %v438 = vld [vmem:[%s346 + $0x58] sm:$0xff]
        %v439 = vld [vmem:[%s346 + $0x60] sm:$0xff]
        %v440 = vld [vmem:[%s346 + $0x68] sm:$0xff]
        %v441 = vld [vmem:[%s346 + $0x70] sm:$0xff]
        %v442 = vld [vmem:[%s346 + $0x78] sm:$0xff]
        %v443 = vld [vmem:[%s346 + $0x80] sm:$0xff]
        %v444 = vld [vmem:[%s346 + $0x88] sm:$0xff]
        %v445 = vld [vmem:[%s346 + $0x90] sm:$0xff]
        %v446 = vld [vmem:[%s346 + $0x98] sm:$0xff]
        %v447 = vld [vmem:[%s346 + $0xa0] sm:$0xff]
        %v448 = vld [vmem:[%s346 + $0xa8] sm:$0xff]
        %v449 = vld [vmem:[%s346 + $0xb0] sm:$0xff]
        %v450 = vld [vmem:[%s346 + $0xb8] sm:$0xff]
        %v451 = vld [vmem:[%s346 + $0xc0] sm:$0xff]
        %v452 = vld [vmem:[%s346 + $0xc8] sm:$0xff]
        %v453 = vld [vmem:[%s346 + $0xd0] sm:$0xff]
        %v454 = vld [vmem:[%s346 + $0xd8] sm:$0xff]
        %v455 = vld [vmem:[%s346 + $0xe0] sm:$0xff]
        %v456 = vld [vmem:[%s346 + $0xe8] sm:$0xff]
        %v457 = vld [vmem:[%s346 + $0xf0] sm:$0xff]
        %v458 = vld [vmem:[%s346 + $0xf8] sm:$0xff]
        %v459 = vld [vmem:[%s346 + $0x100] sm:$0xff]
        %v460 = vld [vmem:[%s346 + $0x108] sm:$0xff]
        %v461 = vld [vmem:[%s346 + $0x110] sm:$0xff]
        %v462 = vld [vmem:[%s346 + $0x118] sm:$0xff]
        %v463 = vld [vmem:[%s346 + $0x120] sm:$0xff]
        %v464 = vld [vmem:[%s346 + $0x128] sm:$0xff]
        %v465 = vld [vmem:[%s346 + $0x130] sm:$0xff]
        %v466 = vld [vmem:[%s346 + $0x138] sm:$0xff]
        %v467 = vld [vmem:[%s346 + $0x140] sm:$0xff]
        %v468 = vld [vmem:[%s346 + $0x148] sm:$0xff]
        %v469 = vld [vmem:[%s346 + $0x150] sm:$0xff]
        %v470 = vld [vmem:[%s346 + $0x158] sm:$0xff]
        %v471 = vld [vmem:[%s346 + $0x160] sm:$0xff]
        %v472 = vld [vmem:[%s346 + $0x168] sm:$0xff]
        %v473 = vld [vmem:[%s346 + $0x170] sm:$0xff]
        %v474 = vld [vmem:[%s346 + $0x178] sm:$0xff]
        %v475 = vld [vmem:[%s346 + $0x180] sm:$0xff]
        %v476 = vld [vmem:[%s346 + $0x188] sm:$0xff]
        %v477 = vld [vmem:[%s346 + $0x190] sm:$0xff]
        %v478 = vld [vmem:[%s346 + $0x198] sm:$0xff]
        %v479 = vld [vmem:[%s346 + $0x1a0] sm:$0xff]
        %v480 = vld [vmem:[%s346 + $0x1a8] sm:$0xff]
        %v481 = vld [vmem:[%s346 + $0x1b0] sm:$0xff]
        %v482 = vld [vmem:[%s346 + $0x1b8] sm:$0xff]
        %v483 = vld [vmem:[%s346 + $0x1c0] sm:$0xff]
        %v484 = vld [vmem:[%s346 + $0x1c8] sm:$0xff]
        %v485 = vld [vmem:[%s346 + $0x1d0] sm:$0xff]
        %v486 = vld [vmem:[%s346 + $0x1d8] sm:$0xff]
        %v487 = vld [vmem:[%s346 + $0x1e0] sm:$0xff]
        %v488 = vld [vmem:[%s346 + $0x1e8] sm:$0xff]
        %v489 = vld [vmem:[%s346 + $0x1f0] sm:$0xff]
        %v490 = vld [vmem:[%s346 + $0x1f8] sm:$0xff]
        %v555 = vunpack.c.l.b16 %v427
        %v556 = vunpack.c.h.b16 %v427
        %v557 = vunpack.c.l.b16 %v428
        %v558 = vunpack.c.h.b16 %v428
        %v559 = vunpack.c.l.b16 %v429
        %v560 = vunpack.c.h.b16 %v429
        %v561 = vunpack.c.l.b16 %v430
        %v562 = vunpack.c.h.b16 %v430
        %v563 = vunpack.c.l.b16 %v431
        %v564 = vunpack.c.h.b16 %v431
        %v565 = vunpack.c.l.b16 %v432
        %v566 = vunpack.c.h.b16 %v432
        %v567 = vunpack.c.l.b16 %v433
        %v568 = vunpack.c.h.b16 %v433
        %v569 = vunpack.c.l.b16 %v434
        %v570 = vunpack.c.h.b16 %v434
        %v571 = vunpack.c.l.b16 %v435
        %v572 = vunpack.c.h.b16 %v435
        %v573 = vunpack.c.l.b16 %v436
        %v574 = vunpack.c.h.b16 %v436
        %v575 = vunpack.c.l.b16 %v437
        %v576 = vunpack.c.h.b16 %v437
        %v577 = vunpack.c.l.b16 %v438
        %v578 = vunpack.c.h.b16 %v438
        %v579 = vunpack.c.l.b16 %v439
        %v580 = vunpack.c.h.b16 %v439
        %v581 = vunpack.c.l.b16 %v440
        %v582 = vunpack.c.h.b16 %v440
        %v583 = vunpack.c.l.b16 %v441
        %v584 = vunpack.c.h.b16 %v441
        %v585 = vunpack.c.l.b16 %v442
        %v586 = vunpack.c.h.b16 %v442
        %v587 = vunpack.c.l.b16 %v443
        %v588 = vunpack.c.h.b16 %v443
        %v589 = vunpack.c.l.b16 %v444
        %v590 = vunpack.c.h.b16 %v444
        %v591 = vunpack.c.l.b16 %v445
        %v592 = vunpack.c.h.b16 %v445
        %v593 = vunpack.c.l.b16 %v446
        %v594 = vunpack.c.h.b16 %v446
        %v595 = vunpack.c.l.b16 %v447
        %v596 = vunpack.c.h.b16 %v447
        %v597 = vunpack.c.l.b16 %v448
        %v598 = vunpack.c.h.b16 %v448
        %v599 = vunpack.c.l.b16 %v449
        %v600 = vunpack.c.h.b16 %v449
        %v601 = vunpack.c.l.b16 %v450
        %v602 = vunpack.c.h.b16 %v450
        %v603 = vunpack.c.l.b16 %v451
        %v604 = vunpack.c.h.b16 %v451
        %v605 = vunpack.c.l.b16 %v452
        %v606 = vunpack.c.h.b16 %v452
        %v607 = vunpack.c.l.b16 %v453
        %v608 = vunpack.c.h.b16 %v453
        %v609 = vunpack.c.l.b16 %v454
        %v610 = vunpack.c.h.b16 %v454
        %v611 = vunpack.c.l.b16 %v455
        %v612 = vunpack.c.h.b16 %v455
        %v613 = vunpack.c.l.b16 %v456
        %v614 = vunpack.c.h.b16 %v456
        %v615 = vunpack.c.l.b16 %v457
        %v616 = vunpack.c.h.b16 %v457
        %v617 = vunpack.c.l.b16 %v458
        %v618 = vunpack.c.h.b16 %v458
        %v619 = vunpack.c.l.b16 %v459
        %v620 = vunpack.c.h.b16 %v459
        %v621 = vunpack.c.l.b16 %v460
        %v622 = vunpack.c.h.b16 %v460
        %v623 = vunpack.c.l.b16 %v461
        %v624 = vunpack.c.h.b16 %v461
        %v625 = vunpack.c.l.b16 %v462
        %v626 = vunpack.c.h.b16 %v462
        %v627 = vunpack.c.l.b16 %v463
        %v628 = vunpack.c.h.b16 %v463
        %v629 = vunpack.c.l.b16 %v464
        %v630 = vunpack.c.h.b16 %v464
        %v631 = vunpack.c.l.b16 %v465
        %v632 = vunpack.c.h.b16 %v465
        %v633 = vunpack.c.l.b16 %v466
        %v634 = vunpack.c.h.b16 %v466
        %v635 = vunpack.c.l.b16 %v467
        %v636 = vunpack.c.h.b16 %v467
        %v637 = vunpack.c.l.b16 %v468
        %v638 = vunpack.c.h.b16 %v468
        %v639 = vunpack.c.l.b16 %v469
        %v640 = vunpack.c.h.b16 %v469
        %v641 = vunpack.c.l.b16 %v470
        %v642 = vunpack.c.h.b16 %v470
        %v643 = vunpack.c.l.b16 %v471
        %v644 = vunpack.c.h.b16 %v471
        %v645 = vunpack.c.l.b16 %v472
        %v646 = vunpack.c.h.b16 %v472
        %v647 = vunpack.c.l.b16 %v473
        %v648 = vunpack.c.h.b16 %v473
        %v649 = vunpack.c.l.b16 %v474
        %v650 = vunpack.c.h.b16 %v474
        %v651 = vunpack.c.l.b16 %v475
        %v652 = vunpack.c.h.b16 %v475
        %v653 = vunpack.c.l.b16 %v476
        %v654 = vunpack.c.h.b16 %v476
        %v655 = vunpack.c.l.b16 %v477
        %v656 = vunpack.c.h.b16 %v477
        %v657 = vunpack.c.l.b16 %v478
        %v658 = vunpack.c.h.b16 %v478
        %v659 = vunpack.c.l.b16 %v479
        %v660 = vunpack.c.h.b16 %v479
        %v661 = vunpack.c.l.b16 %v480
        %v662 = vunpack.c.h.b16 %v480
        %v663 = vunpack.c.l.b16 %v481
        %v664 = vunpack.c.h.b16 %v481
        %v665 = vunpack.c.l.b16 %v482
        %v666 = vunpack.c.h.b16 %v482
        %v667 = vunpack.c.l.b16 %v483
        %v668 = vunpack.c.h.b16 %v483
        %v669 = vunpack.c.l.b16 %v484
        %v670 = vunpack.c.h.b16 %v484
        %v671 = vunpack.c.l.b16 %v485
        %v672 = vunpack.c.h.b16 %v485
        %v673 = vunpack.c.l.b16 %v486
        %v674 = vunpack.c.h.b16 %v486
        %v675 = vunpack.c.l.b16 %v487
        %v676 = vunpack.c.h.b16 %v487
        %v677 = vunpack.c.l.b16 %v488
        %v678 = vunpack.c.h.b16 %v488
        %v679 = vunpack.c.l.b16 %v489
        %v680 = vunpack.c.h.b16 %v489
        %v681 = vunpack.c.l.b16 %v490
        %v682 = vunpack.c.h.b16 %v490
        %v683 = vpack.c.b16 %v559, %v555
        %v684 = vpack.c.b16 %v560, %v556
        %v685 = vpack.c.b16 %v561, %v557
        %v686 = vpack.c.b16 %v562, %v558
        %v687 = vpack.c.b16 %v567, %v563
        %v688 = vpack.c.b16 %v568, %v564
        %v689 = vpack.c.b16 %v569, %v565
        %v690 = vpack.c.b16 %v570, %v566
        %v691 = vpack.c.b16 %v575, %v571
        %v692 = vpack.c.b16 %v576, %v572
        %v693 = vpack.c.b16 %v577, %v573
        %v694 = vpack.c.b16 %v578, %v574
        %v695 = vpack.c.b16 %v583, %v579
        %v696 = vpack.c.b16 %v584, %v580
        %v697 = vpack.c.b16 %v585, %v581
        %v698 = vpack.c.b16 %v586, %v582
        %v699 = vpack.c.b16 %v591, %v587
        %v700 = vpack.c.b16 %v592, %v588
        %v701 = vpack.c.b16 %v593, %v589
        %v702 = vpack.c.b16 %v594, %v590
        %v703 = vpack.c.b16 %v599, %v595
        %v704 = vpack.c.b16 %v600, %v596
        %v705 = vpack.c.b16 %v601, %v597
        %v706 = vpack.c.b16 %v602, %v598
        %v707 = vpack.c.b16 %v607, %v603
        %v708 = vpack.c.b16 %v608, %v604
        %v709 = vpack.c.b16 %v609, %v605
        %v710 = vpack.c.b16 %v610, %v606
        %v711 = vpack.c.b16 %v615, %v611
        %v712 = vpack.c.b16 %v616, %v612
        %v713 = vpack.c.b16 %v617, %v613
        %v714 = vpack.c.b16 %v618, %v614
        %v715 = vpack.c.b16 %v623, %v619
        %v716 = vpack.c.b16 %v624, %v620
        %v717 = vpack.c.b16 %v625, %v621
        %v718 = vpack.c.b16 %v626, %v622
        %v719 = vpack.c.b16 %v631, %v627
        %v720 = vpack.c.b16 %v632, %v628
        %v721 = vpack.c.b16 %v633, %v629
        %v722 = vpack.c.b16 %v634, %v630
        %v723 = vpack.c.b16 %v639, %v635
        %v724 = vpack.c.b16 %v640, %v636
        %v725 = vpack.c.b16 %v641, %v637
        %v726 = vpack.c.b16 %v642, %v638
        %v727 = vpack.c.b16 %v647, %v643
        %v728 = vpack.c.b16 %v648, %v644
        %v729 = vpack.c.b16 %v649, %v645
        %v730 = vpack.c.b16 %v650, %v646
        %v731 = vpack.c.b16 %v655, %v651
        %v732 = vpack.c.b16 %v656, %v652
        %v733 = vpack.c.b16 %v657, %v653
        %v734 = vpack.c.b16 %v658, %v654
        %v735 = vpack.c.b16 %v663, %v659
        %v736 = vpack.c.b16 %v664, %v660
        %v737 = vpack.c.b16 %v665, %v661
        %v738 = vpack.c.b16 %v666, %v662
        %v739 = vpack.c.b16 %v671, %v667
        %v740 = vpack.c.b16 %v672, %v668
        %v741 = vpack.c.b16 %v673, %v669
        %v742 = vpack.c.b16 %v674, %v670
        %v743 = vpack.c.b16 %v679, %v675
        %v744 = vpack.c.b16 %v680, %v676
        %v745 = vpack.c.b16 %v681, %v677
        %v746 = vpack.c.b16 %v682, %v678
        %811 = vmatpush.bf16.msra.mxu0 %v711
        %812 = vmatpush.bf16.msra.mxu0 %v707
        %813 = vmatpush.bf16.msra.mxu0 %v703
        %814 = vmatpush.bf16.msra.mxu0 %v699
        %815 = vmatpush.bf16.msra.mxu0 %v695
        %816 = vmatpush.bf16.msra.mxu0 %v691
        %817 = vmatpush.bf16.msra.mxu0 %v687
        %818 = vmatpush.bf16.msra.mxu0 %v683
        %819 = vmatmul.bf16.gmra.mxu0 %v425
        %v820 = vpop.f32.mrf.mxu0
        %v821 = vadd.f32 0.0, %v820
        %v822 = vpop.f32.mrf.mxu0
        %v823 = vadd.f32 0.0, %v822
        %824 = vdwg.mxu0
        %825 = vmatpush.bf16.msra.mxu0 %v743
        %826 = vmatpush.bf16.msra.mxu0 %v739
        %827 = vmatpush.bf16.msra.mxu0 %v735
        %828 = vmatpush.bf16.msra.mxu0 %v731
        %829 = vmatpush.bf16.msra.mxu0 %v727
        %830 = vmatpush.bf16.msra.mxu0 %v723
        %831 = vmatpush.bf16.msra.mxu0 %v719
        %832 = vmatpush.bf16.msra.mxu0 %v715
        %833 = vmatmul.bf16.gmra.mxu0 %v426
        %v834 = vpop.f32.mrf.mxu0
        %v835 = vadd.f32 %v821, %v834
        %v836 = vpop.f32.mrf.mxu0
        %v837 = vadd.f32 %v823, %v836
        %838 = vdwg.mxu0
        %839 = vmatpush.bf16.msra.mxu0 %v712
        %840 = vmatpush.bf16.msra.mxu0 %v708
        %841 = vmatpush.bf16.msra.mxu0 %v704
        %842 = vmatpush.bf16.msra.mxu0 %v700
        %843 = vmatpush.bf16.msra.mxu0 %v696
        %844 = vmatpush.bf16.msra.mxu0 %v692
        %845 = vmatpush.bf16.msra.mxu0 %v688
        %846 = vmatpush.bf16.msra.mxu0 %v684
        %847 = vmatmul.bf16.gmra.mxu0 %v425
        %v848 = vpop.f32.mrf.mxu0
        %v849 = vadd.f32 0.0, %v848
        %v850 = vpop.f32.mrf.mxu0
        %v851 = vadd.f32 0.0, %v850
        %852 = vdwg.mxu0
        %853 = vmatpush.bf16.msra.mxu0 %v744
        %854 = vmatpush.bf16.msra.mxu0 %v740
        %855 = vmatpush.bf16.msra.mxu0 %v736
        %856 = vmatpush.bf16.msra.mxu0 %v732
        %857 = vmatpush.bf16.msra.mxu0 %v728
        %858 = vmatpush.bf16.msra.mxu0 %v724
        %859 = vmatpush.bf16.msra.mxu0 %v720
        %860 = vmatpush.bf16.msra.mxu0 %v716
        %861 = vmatmul.bf16.gmra.mxu0 %v426
        %v862 = vpop.f32.mrf.mxu0
        %v863 = vadd.f32 %v849, %v862
        %v864 = vpop.f32.mrf.mxu0
        %v865 = vadd.f32 %v851, %v864
        %866 = vdwg.mxu0
        %867 = vmatpush.bf16.msra.mxu0 %v713
        %868 = vmatpush.bf16.msra.mxu0 %v709
        %869 = vmatpush.bf16.msra.mxu0 %v705
        %870 = vmatpush.bf16.msra.mxu0 %v701
        %871 = vmatpush.bf16.msra.mxu0 %v697
        %872 = vmatpush.bf16.msra.mxu0 %v693
        %873 = vmatpush.bf16.msra.mxu0 %v689
        %874 = vmatpush.bf16.msra.mxu0 %v685
        %875 = vmatmul.bf16.gmra.mxu0 %v425
        %v876 = vpop.f32.mrf.mxu0
        %v877 = vadd.f32 0.0, %v876
        %v878 = vpop.f32.mrf.mxu0
        %v879 = vadd.f32 0.0, %v878
        %880 = vdwg.mxu0
        %881 = vmatpush.bf16.msra.mxu0 %v745
        %882 = vmatpush.bf16.msra.mxu0 %v741
        %883 = vmatpush.bf16.msra.mxu0 %v737
        %884 = vmatpush.bf16.msra.mxu0 %v733
        %885 = vmatpush.bf16.msra.mxu0 %v729
        %886 = vmatpush.bf16.msra.mxu0 %v725
        %887 = vmatpush.bf16.msra.mxu0 %v721
        %888 = vmatpush.bf16.msra.mxu0 %v717
        %889 = vmatmul.bf16.gmra.mxu0 %v426
        %v890 = vpop.f32.mrf.mxu0
        %v891 = vadd.f32 %v877, %v890
        %v892 = vpop.f32.mrf.mxu0
        %v893 = vadd.f32 %v879, %v892
        %894 = vdwg.mxu0
        %895 = vmatpush.bf16.msra.mxu0 %v714
        %896 = vmatpush.bf16.msra.mxu0 %v710
        %897 = vmatpush.bf16.msra.mxu0 %v706
        %898 = vmatpush.bf16.msra.mxu0 %v702
        %899 = vmatpush.bf16.msra.mxu0 %v698
        %900 = vmatpush.bf16.msra.mxu0 %v694
        %901 = vmatpush.bf16.msra.mxu0 %v690
        %902 = vmatpush.bf16.msra.mxu0 %v686
        %903 = vmatmul.bf16.gmra.mxu0 %v425
        %v904 = vpop.f32.mrf.mxu0
        %v905 = vadd.f32 0.0, %v904
        %v906 = vpop.f32.mrf.mxu0
        %v907 = vadd.f32 0.0, %v906
        %908 = vdwg.mxu0
        %909 = vmatpush.bf16.msra.mxu0 %v746
        %910 = vmatpush.bf16.msra.mxu0 %v742
        %911 = vmatpush.bf16.msra.mxu0 %v738
        %912 = vmatpush.bf16.msra.mxu0 %v734
        %913 = vmatpush.bf16.msra.mxu0 %v730
        %914 = vmatpush.bf16.msra.mxu0 %v726
        %915 = vmatpush.bf16.msra.mxu0 %v722
        %916 = vmatpush.bf16.msra.mxu0 %v718
        %917 = vmatmul.bf16.gmra.mxu0 %v426
        %v918 = vpop.f32.mrf.mxu0
        %v919 = vadd.f32 %v905, %v918
        %v920 = vpop.f32.mrf.mxu0
        %v921 = vadd.f32 %v907, %v920
        %922 = vdwg.mxu0
        %v923 = vadd.f32 %v413, %v835
        %v924 = vadd.f32 %v414, %v863
        %v925 = vadd.f32 %v415, %v891
        %v926 = vadd.f32 %v416, %v919
        %v927 = vadd.f32 %v417, %v837
        %v928 = vadd.f32 %v418, %v865
        %v929 = vadd.f32 %v419, %v893
        %v930 = vadd.f32 %v420, %v921
        %931 = vst [vmem:[#allocation2] sm:$0xff] %v923
        %932 = vst [vmem:[#allocation2 + $0x8] sm:$0xff] %v924
        %933 = vst [vmem:[#allocation2 + $0x10] sm:$0xff] %v925
        %934 = vst [vmem:[#allocation2 + $0x18] sm:$0xff] %v926
        %935 = vst [vmem:[#allocation2 + $0x20] sm:$0xff] %v927
        %936 = vst [vmem:[#allocation2 + $0x28] sm:$0xff] %v928
        %937 = vst [vmem:[#allocation2 + $0x30] sm:$0xff] %v929
        %938 = vst [vmem:[#allocation2 + $0x38] sm:$0xff] %v930
        // Predicated region
        $region60: #{transformer_block_forward.18} parent=50 // pred_check
          %p939 = pneg %p401
        $region61: #{transformer_block_forward.18} parent=50 // pred_check_branch
          %941 = sbr.rel (%p939) target = $region63
        $region62: #{transformer_block_forward.18} parent=50 // pred_region
          %v942 = vld [vmem:[#allocation2] sm:$0xff]
          %v943 = vld [vmem:[#allocation2 + $0x8] sm:$0xff]
          %v944 = vld [vmem:[#allocation2 + $0x10] sm:$0xff]
          %v945 = vld [vmem:[#allocation2 + $0x18] sm:$0xff]
          %v946 = vld [vmem:[#allocation2 + $0x20] sm:$0xff]
          %v947 = vld [vmem:[#allocation2 + $0x28] sm:$0xff]
          %v948 = vld [vmem:[#allocation2 + $0x30] sm:$0xff]
          %v949 = vld [vmem:[#allocation2 + $0x38] sm:$0xff]
          %v950 = vld [vmem:[%s397] sm:$0xf]
          %v952 = vperm.slane %v950, 0
          %v953 = vperm.slane %v950, 1
          %v954 = vperm.slane %v950, 2
          %v955 = vperm.slane %v950, 3
          %v960 = vadd.f32 %v942, %v952
          %v961 = vadd.f32 %v943, %v953
          %v962 = vadd.f32 %v944, %v954
          %v963 = vadd.f32 %v945, %v955
          %v964 = vadd.f32 %v946, %v952
          %v965 = vadd.f32 %v947, %v953
          %v966 = vadd.f32 %v948, %v954
          %v967 = vadd.f32 %v949, %v955
          %v968 = vmul.f32 %v960, 0.5
          %v969 = vmul.f32 %v961, 0.5
          %v970 = vmul.f32 %v962, 0.5
          %v971 = vmul.f32 %v963, 0.5
          %v972 = vmul.f32 %v964, 0.5
          %v973 = vmul.f32 %v965, 0.5
          %v974 = vmul.f32 %v966, 0.5
          %v975 = vmul.f32 %v967, 0.5
          %v976 = vmul.f32 %v960, 0.044715
          %v977 = vmul.f32 %v961, 0.044715
          %v978 = vmul.f32 %v962, 0.044715
          %v979 = vmul.f32 %v963, 0.044715
          %v980 = vmul.f32 %v964, 0.044715
          %v981 = vmul.f32 %v965, 0.044715
          %v982 = vmul.f32 %v966, 0.044715
          %v983 = vmul.f32 %v967, 0.044715
          %v984 = vmul.f32 %v976, %v960
          %v985 = vmul.f32 %v977, %v961
          %v986 = vmul.f32 %v978, %v962
          %v987 = vmul.f32 %v979, %v963
          %v988 = vmul.f32 %v980, %v964
          %v989 = vmul.f32 %v981, %v965
          %v990 = vmul.f32 %v982, %v966
          %v991 = vmul.f32 %v983, %v967
          %v992 = vmul.f32 %v984, %v960
          %v993 = vmul.f32 %v985, %v961
          %v994 = vmul.f32 %v986, %v962
          %v995 = vmul.f32 %v987, %v963
          %v996 = vmul.f32 %v988, %v964
          %v997 = vmul.f32 %v989, %v965
          %v998 = vmul.f32 %v990, %v966
          %v999 = vmul.f32 %v991, %v967
          %v1000 = vadd.f32 %v960, %v992
          %v1001 = vadd.f32 %v961, %v993
          %v1002 = vadd.f32 %v962, %v994
          %v1003 = vadd.f32 %v963, %v995
          %v1004 = vadd.f32 %v964, %v996
          %v1005 = vadd.f32 %v965, %v997
          %v1006 = vadd.f32 %v966, %v998
          %v1007 = vadd.f32 %v967, %v999
          %v1008 = vmul.f32 %v1000, 0.7978846
          %v1009 = vmul.f32 %v1001, 0.7978846
          %v1010 = vmul.f32 %v1002, 0.7978846
          %v1011 = vmul.f32 %v1003, 0.7978846
          %v1012 = vmul.f32 %v1004, 0.7978846
          %v1013 = vmul.f32 %v1005, 0.7978846
          %v1014 = vmul.f32 %v1006, 0.7978846
          %v1015 = vmul.f32 %v1007, 0.7978846
          %v1016 = vtanh.pop %v1008
          %v1017 = vtanh.pop %v1009
          %v1018 = vtanh.pop %v1010
          %v1019 = vtanh.pop %v1011
          %v1020 = vtanh.pop %v1012
          %v1021 = vtanh.pop %v1013
          %v1022 = vtanh.pop %v1014
          %v1023 = vtanh.pop %v1015
          %v1024 = vadd.f32 %v1016, 1.0
          %v1025 = vadd.f32 %v1017, 1.0
          %v1026 = vadd.f32 %v1018, 1.0
          %v1027 = vadd.f32 %v1019, 1.0
          %v1028 = vadd.f32 %v1020, 1.0
          %v1029 = vadd.f32 %v1021, 1.0
          %v1030 = vadd.f32 %v1022, 1.0
          %v1031 = vadd.f32 %v1023, 1.0
          %v1032 = vmul.f32 %v968, %v1024
          %v1033 = vmul.f32 %v969, %v1025
          %v1034 = vmul.f32 %v970, %v1026
          %v1035 = vmul.f32 %v971, %v1027
          %v1036 = vmul.f32 %v972, %v1028
          %v1037 = vmul.f32 %v973, %v1029
          %v1038 = vmul.f32 %v974, %v1030
          %v1039 = vmul.f32 %v975, %v1031
          %1040 = vst [vmem:[%s379] sm:$0xff] %v1032
          %1041 = vst [vmem:[%s379 + $0x8] sm:$0xff] %v1033
          %1042 = vst [vmem:[%s379 + $0x10] sm:$0xff] %v1034
          %1043 = vst [vmem:[%s379 + $0x18] sm:$0xff] %v1035
          %1044 = vst [vmem:[%s379 + $0x20] sm:$0xff] %v1036
          %1045 = vst [vmem:[%s379 + $0x28] sm:$0xff] %v1037
          %1046 = vst [vmem:[%s379 + $0x30] sm:$0xff] %v1038
          %1047 = vst [vmem:[%s379 + $0x38] sm:$0xff] %v1039
        $region63: #{transformer_block_forward.18} parent=50 // pred_fallthru
          _
        %s1048 = sand.u32 %s125, 1
        %s1049 = sand.u32 %s125, 1
        %s1050 = smul.addr %s1049, 64
        %s1051 = scalar_lea.vmem [#allocation4], %s1050
        // Predicated region
        $region64: #{transformer_block_forward.18} parent=50 // pred_check
          %p1052 = pneg %p135
        $region65: #{transformer_block_forward.18} parent=50 // pred_check_branch
          %1054 = sbr.rel (%p1052) target = $region67
        $region66: #{transformer_block_forward.18} parent=50 // pred_region
          %s1055 = smul.u32 2, %s19
          %s1056 = smul.u32 4, %s20
          %s1057 = smul.addr %s1055, 8
          %s1058 = sadd.s32 %s1056, %s1057
          %s1059 = smul.addr %s1058, 8
          %s1060 = scalar_lea.vmem %s3, %s1059
          // Predicated region
          $region68: #{transformer_block_forward.18} parent=66 // pred_check
            _
          $region69: #{transformer_block_forward.18} parent=66 // pred_check_branch
            %1062 = sbr.rel (0) target = $region71
          $region70: #{transformer_block_forward.18} parent=66 // pred_region
            // Predicated region
            $region72: #{transformer_block_forward.18} parent=70 // pred_check
              _
            $region73: #{transformer_block_forward.18} parent=70 // pred_check_branch
              %1064 = sbr.rel (0) target = $region75
            $region74: #{transformer_block_forward.18} parent=70 // pred_region
              loop: start=0, step=1, limit=1
              $region76: #{transformer_block_forward.18} parent=74 // loop_pre_header
                _
              $region77: #{transformer_block_forward.18} parent=74 // loop_header
                %s1066 = sphi 0, %s1070
                %p1067 = scmp.ge.s32.totalorder %s1066, 1
                %s1071 = sphi %s1051, %s1051
                %s1072 = sphi %s1060, %s1060
              $region78: #{transformer_block_forward.18} parent=74 // loop_header_branch
                %1069 = sbr.rel (%p1067) target = $region82
              $region79: #{transformer_block_forward.18} parent=74 // loop_body
                %v1073 = vld [vmem:[%s1071] sm:$0xff]
                %1074 = vst [vmem:[%s1072] sm:$0xff] %v1073
                %v1075 = vld [vmem:[%s1071 + $0x8] sm:$0xff]
                %1076 = vst [vmem:[%s1072 + $0x8] sm:$0xff] %v1075
                %v1077 = vld [vmem:[%s1071 + $0x10] sm:$0xff]
                %1078 = vst [vmem:[%s1072 + $0x10] sm:$0xff] %v1077
                %v1079 = vld [vmem:[%s1071 + $0x18] sm:$0xff]
                %1080 = vst [vmem:[%s1072 + $0x18] sm:$0xff] %v1079
                %v1081 = vld [vmem:[%s1071 + $0x20] sm:$0xff]
                %1082 = vst [vmem:[%s1072 + $0x40] sm:$0xff] %v1081
                %v1083 = vld [vmem:[%s1071 + $0x28] sm:$0xff]
                %1084 = vst [vmem:[%s1072 + $0x48] sm:$0xff] %v1083
                %v1085 = vld [vmem:[%s1071 + $0x30] sm:$0xff]
                %1086 = vst [vmem:[%s1072 + $0x50] sm:$0xff] %v1085
                %v1087 = vld [vmem:[%s1071 + $0x38] sm:$0xff]
                %1088 = vst [vmem:[%s1072 + $0x58] sm:$0xff] %v1087
              $region80: #{transformer_block_forward.18} parent=74 // loop_footer
                %s1070 = sadd.s32 1, %s1066
              $region81: #{transformer_block_forward.18} parent=74 // loop_footer_branch
                %1065 = sbr.rel target = $region77
              $region82: #{transformer_block_forward.18} parent=74 // loop_exit
                _
            $region75: #{transformer_block_forward.18} parent=70 // pred_fallthru
              _
            // Predicated region
            $region83: #{transformer_block_forward.18} parent=70 // pred_check
              _
            $region84: #{transformer_block_forward.18} parent=70 // pred_check_branch
              %1090 = sbr.rel target = $region86
            $region85: #{transformer_block_forward.18} parent=70 // pred_region
              _
            $region86: #{transformer_block_forward.18} parent=70 // pred_fallthru
              _
          $region71: #{transformer_block_forward.18} parent=66 // pred_fallthru
            _
          %1091 = vnop
        $region67: #{transformer_block_forward.18} parent=50 // pred_fallthru
          _
      $region51: #{transformer_block_forward.18} parent=5 // pred_fallthru
        _
      %p1092 = scmp.le.s32.totalorder 2, %s9
      // Predicated region
      $region87: #{transformer_block_forward.18} parent=5 // pred_check
        %p1093 = pneg %p1092
      $region88: #{transformer_block_forward.18} parent=5 // pred_check_branch
        %1095 = sbr.rel (%p1093) target = $region90
      $region89: #{transformer_block_forward.18} parent=5 // pred_region
        %s1096 = ssub.s32 %s9, 2
        // Predicated region
        $region91: #{transformer_block_forward.18} parent=89 // pred_check
          %p1097 = pneg %p141
        $region92: #{transformer_block_forward.18} parent=89 // pred_check_branch
          %1099 = sbr.rel (%p1097) target = $region94
        $region93: #{transformer_block_forward.18} parent=89 // pred_region
          %s1100 = sand.u32 %s126, 1
          %s1101 = sand.u32 %s126, 1
          %s1102 = smul.addr %s1101, 64
          %s1103 = scalar_lea.vmem [#allocation4], %s1102
        $region94: #{transformer_block_forward.18} parent=89 // pred_fallthru
          _
      $region90: #{transformer_block_forward.18} parent=5 // pred_fallthru
        _
    $region6: #{transformer_block_forward.18} parent=1 // loop_footer
      %s13 = sadd.s32 1, %s9
    $region7: #{transformer_block_forward.18} parent=1 // loop_footer_branch
      %8 = sbr.rel target = $region3
    $region8: #{transformer_block_forward.18} parent=1 // loop_exit
      _

// kernel: transformer_block_forward.25
$region0: #{transformer_block_forward.25}
  #allocation0 [shape = 'u32[]', space=smem, size = 0x4, offset = 0x4, fixed_abs, tag = 'smem constant byte address 0x4 - core index']
  #allocation1 [shape = 'u32[72,128]{1,0:T(1,128)}', space=vmem, size = 0x9000, scoped, tag = 'internal scratch']
  #allocation2 [shape = 'f32[2,256]{1,0:T(2,128)}', space=vmem, size = 0x800, scoped, tag = 'scratch operand']
  %s0 = inlined_call_operand.vmem [shape: f32[2,256], index: 0, kind: input, shape index: {}]
  %s1 = inlined_call_operand.vmem [shape: bf16[256,256], index: 1, kind: input, shape index: {}]
  %s2 = inlined_call_operand.vmem [shape: f32[1,256], index: 2, kind: input, shape index: {}]
  %s3 = inlined_call_operand.hbm [shape: f32[2,256], index: 3, kind: output, shape index: {}]
  %s4 = sld [smem:[#allocation0]]
  $region30: #{transformer_block_forward.25} parent=0
    _
  %s6 = ssub.s32 1, %s4
  %s7 = scalar_select 0, %s6, %s4
  $region1: #{transformer_block_forward.25} parent=0
    #allocation3 [shape = 'u8[2048]{0}', space=vmem, size = 0x800, scoped, tag = 'output window, operand 0, single buffered']
    #allocation4 [shape = 's32[1]{0}', space=sflag, size = 0x4, scoped, tag = 'scoped memory for transformer_block_forward.25']
    %8 = vsyncpa [#allocation4], 0
    // Predicated region
    $region2: #{transformer_block_forward.25} parent=1 // pred_check
      _
    $region3: #{transformer_block_forward.25} parent=1 // pred_check_branch
      %10 = sbr.rel (0) target = $region5
    $region4: #{transformer_block_forward.25} parent=1 // pred_region
      _
    $region5: #{transformer_block_forward.25} parent=1 // pred_fallthru
      _
    // Predicated region
    $region6: #{transformer_block_forward.25} parent=1 // pred_check
      _
    $region7: #{transformer_block_forward.25} parent=1 // pred_check_branch
      %12 = sbr.rel (0) target = $region9
    $region8: #{transformer_block_forward.25} parent=1 // pred_region
      _
    $region9: #{transformer_block_forward.25} parent=1 // pred_fallthru
      _
    // Predicated region
    $region10: #{transformer_block_forward.25} parent=1 // pred_check
      _
    $region11: #{transformer_block_forward.25} parent=1 // pred_check_branch
      %14 = sbr.rel (0) target = $region13
    $region12: #{transformer_block_forward.25} parent=1 // pred_region
      _
    $region13: #{transformer_block_forward.25} parent=1 // pred_fallthru
      _
    %p15 = scmp.eq.s32.totalorder 0, 0
    // Predicated region
    $region14: #{transformer_block_forward.25} parent=1 // pred_check
      %p16 = pneg %p15
    $region15: #{transformer_block_forward.25} parent=1 // pred_check_branch
      %18 = sbr.rel (%p16) target = $region17
    $region16: #{transformer_block_forward.25} parent=1 // pred_region
      %19 = vst [vmem:[#allocation2] sm:$0xf] 0.0
    $region17: #{transformer_block_forward.25} parent=1 // pred_fallthru
      _
    %v20 = vld [vmem:[#allocation2] sm:$0xf]
    %v21 = vld [vmem:[%s0] sm:$0xf]
    %23 = vst [vmem:[#allocation1] ss:$4 sm:$0xff] %v21
    %v24 = vld.sshfl [vmem:[#allocation1] sm:$0xff pattern:$0x73625140]
    %v25 = vld.sshfl [vmem:[#allocation1 + $0x8] sm:$0xff pattern:$0x73625140]
    %v28 = vpack.c.bf16 %v24, %v24
    %v29 = vpack.c.bf16 %v25, %v25
    %v30 = vld [vmem:[%s1] sm:$0xff]
    %v31 = vld [vmem:[%s1 + $0x8] sm:$0xff]
    %v32 = vld [vmem:[%s1 + $0x10] sm:$0xff]
    %v33 = vld [vmem:[%s1 + $0x18] sm:$0xff]
    %v34 = vld [vmem:[%s1 + $0x20] sm:$0xff]
    %v35 = vld [vmem:[%s1 + $0x28] sm:$0xff]
    %v36 = vld [vmem:[%s1 + $0x30] sm:$0xff]
    %v37 = vld [vmem:[%s1 + $0x38] sm:$0xff]
    %v38 = vld [vmem:[%s1 + $0x40] sm:$0xff]
    %v39 = vld [vmem:[%s1 + $0x48] sm:$0xff]
    %v40 = vld [vmem:[%s1 + $0x50] sm:$0xff]
    %v41 = vld [vmem:[%s1 + $0x58] sm:$0xff]
    %v42 = vld [vmem:[%s1 + $0x60] sm:$0xff]
    %v43 = vld [vmem:[%s1 + $0x68] sm:$0xff]
    %v44 = vld [vmem:[%s1 + $0x70] sm:$0xff]
    %v45 = vld [vmem:[%s1 + $0x78] sm:$0xff]
    %v46 = vld [vmem:[%s1 + $0x80] sm:$0xff]
    %v47 = vld [vmem:[%s1 + $0x88] sm:$0xff]
    %v48 = vld [vmem:[%s1 + $0x90] sm:$0xff]
    %v49 = vld [vmem:[%s1 + $0x98] sm:$0xff]
    %v50 = vld [vmem:[%s1 + $0xa0] sm:$0xff]
    %v51 = vld [vmem:[%s1 + $0xa8] sm:$0xff]
    %v52 = vld [vmem:[%s1 + $0xb0] sm:$0xff]
    %v53 = vld [vmem:[%s1 + $0xb8] sm:$0xff]
    %v54 = vld [vmem:[%s1 + $0xc0] sm:$0xff]
    %v55 = vld [vmem:[%s1 + $0xc8] sm:$0xff]
    %v56 = vld [vmem:[%s1 + $0xd0] sm:$0xff]
    %v57 = vld [vmem:[%s1 + $0xd8] sm:$0xff]
    %v58 = vld [vmem:[%s1 + $0xe0] sm:$0xff]
    %v59 = vld [vmem:[%s1 + $0xe8] sm:$0xff]
    %v60 = vld [vmem:[%s1 + $0xf0] sm:$0xff]
    %v61 = vld [vmem:[%s1 + $0xf8] sm:$0xff]
    %v94 = vunpack.c.l.b16 %v30
    %v95 = vunpack.c.h.b16 %v30
    %v96 = vunpack.c.l.b16 %v31
    %v97 = vunpack.c.h.b16 %v31
    %v98 = vunpack.c.l.b16 %v32
    %v99 = vunpack.c.h.b16 %v32
    %v100 = vunpack.c.l.b16 %v33
    %v101 = vunpack.c.h.b16 %v33
    %v102 = vunpack.c.l.b16 %v34
    %v103 = vunpack.c.h.b16 %v34
    %v104 = vunpack.c.l.b16 %v35
    %v105 = vunpack.c.h.b16 %v35
    %v106 = vunpack.c.l.b16 %v36
    %v107 = vunpack.c.h.b16 %v36
    %v108 = vunpack.c.l.b16 %v37
    %v109 = vunpack.c.h.b16 %v37
    %v110 = vunpack.c.l.b16 %v38
    %v111 = vunpack.c.h.b16 %v38
    %v112 = vunpack.c.l.b16 %v39
    %v113 = vunpack.c.h.b16 %v39
    %v114 = vunpack.c.l.b16 %v40
    %v115 = vunpack.c.h.b16 %v40
    %v116 = vunpack.c.l.b16 %v41
    %v117 = vunpack.c.h.b16 %v41
    %v118 = vunpack.c.l.b16 %v42
    %v119 = vunpack.c.h.b16 %v42
    %v120 = vunpack.c.l.b16 %v43
    %v121 = vunpack.c.h.b16 %v43
    %v122 = vunpack.c.l.b16 %v44
    %v123 = vunpack.c.h.b16 %v44
    %v124 = vunpack.c.l.b16 %v45
    %v125 = vunpack.c.h.b16 %v45
    %v126 = vunpack.c.l.b16 %v46
    %v127 = vunpack.c.h.b16 %v46
    %v128 = vunpack.c.l.b16 %v47
    %v129 = vunpack.c.h.b16 %v47
    %v130 = vunpack.c.l.b16 %v48
    %v131 = vunpack.c.h.b16 %v48
    %v132 = vunpack.c.l.b16 %v49
    %v133 = vunpack.c.h.b16 %v49
    %v134 = vunpack.c.l.b16 %v50
    %v135 = vunpack.c.h.b16 %v50
    %v136 = vunpack.c.l.b16 %v51
    %v137 = vunpack.c.h.b16 %v51
    %v138 = vunpack.c.l.b16 %v52
    %v139 = vunpack.c.h.b16 %v52
    %v140 = vunpack.c.l.b16 %v53
    %v141 = vunpack.c.h.b16 %v53
    %v142 = vunpack.c.l.b16 %v54
    %v143 = vunpack.c.h.b16 %v54
    %v144 = vunpack.c.l.b16 %v55
    %v145 = vunpack.c.h.b16 %v55
    %v146 = vunpack.c.l.b16 %v56
    %v147 = vunpack.c.h.b16 %v56
    %v148 = vunpack.c.l.b16 %v57
    %v149 = vunpack.c.h.b16 %v57
    %v150 = vunpack.c.l.b16 %v58
    %v151 = vunpack.c.h.b16 %v58
    %v152 = vunpack.c.l.b16 %v59
    %v153 = vunpack.c.h.b16 %v59
    %v154 = vunpack.c.l.b16 %v60
    %v155 = vunpack.c.h.b16 %v60
    %v156 = vunpack.c.l.b16 %v61
    %v157 = vunpack.c.h.b16 %v61
    %v158 = vpack.c.b16 %v96, %v94
    %v159 = vpack.c.b16 %v97, %v95
    %v160 = vpack.c.b16 %v100, %v98
    %v161 = vpack.c.b16 %v101, %v99
    %v162 = vpack.c.b16 %v104, %v102
    %v163 = vpack.c.b16 %v105, %v103
    %v164 = vpack.c.b16 %v108, %v106
    %v165 = vpack.c.b16 %v109, %v107
    %v166 = vpack.c.b16 %v112, %v110
    %v167 = vpack.c.b16 %v113, %v111
    %v168 = vpack.c.b16 %v116, %v114
    %v169 = vpack.c.b16 %v117, %v115
    %v170 = vpack.c.b16 %v120, %v118
    %v171 = vpack.c.b16 %v121, %v119
    %v172 = vpack.c.b16 %v124, %v122
    %v173 = vpack.c.b16 %v125, %v123
    %v174 = vpack.c.b16 %v128, %v126
    %v175 = vpack.c.b16 %v129, %v127
    %v176 = vpack.c.b16 %v132, %v130
    %v177 = vpack.c.b16 %v133, %v131
    %v178 = vpack.c.b16 %v136, %v134
    %v179 = vpack.c.b16 %v137, %v135
    %v180 = vpack.c.b16 %v140, %v138
    %v181 = vpack.c.b16 %v141, %v139
    %v182 = vpack.c.b16 %v144, %v142
    %v183 = vpack.c.b16 %v145, %v143
    %v184 = vpack.c.b16 %v148, %v146
    %v185 = vpack.c.b16 %v149, %v147
    %v186 = vpack.c.b16 %v152, %v150
    %v187 = vpack.c.b16 %v153, %v151
    %v188 = vpack.c.b16 %v156, %v154
    %v189 = vpack.c.b16 %v157, %v155
    %222 = vmatpush.bf16.msra.mxu0 %v172
    %223 = vmatpush.bf16.msra.mxu0 %v170
    %224 = vmatpush.bf16.msra.mxu0 %v168
    %225 = vmatpush.bf16.msra.mxu0 %v166
    %226 = vmatpush.bf16.msra.mxu0 %v164
    %227 = vmatpush.bf16.msra.mxu0 %v162
    %228 = vmatpush.bf16.msra.mxu0 %v160
    %229 = vmatpush.bf16.msra.mxu0 %v158
    %230 = vmatmul.bf16.gmra.mxu0 %v28
    %v231 = vpop.f32.mrf.mxu0
    %v232 = vadd.f32 0.0, %v231
    %v233 = vpop.f32.mrf.mxu0
    %234 = vdwg.mxu0
    %235 = vmatpush.bf16.msra.mxu0 %v188
    %236 = vmatpush.bf16.msra.mxu0 %v186
    %237 = vmatpush.bf16.msra.mxu0 %v184
    %238 = vmatpush.bf16.msra.mxu0 %v182
    %239 = vmatpush.bf16.msra.mxu0 %v180
    %240 = vmatpush.bf16.msra.mxu0 %v178
    %241 = vmatpush.bf16.msra.mxu0 %v176
    %242 = vmatpush.bf16.msra.mxu0 %v174
    %243 = vmatmul.bf16.gmra.mxu0 %v29
    %v244 = vpop.f32.mrf.mxu0
    %v245 = vadd.f32 %v232, %v244
    %v246 = vpop.f32.mrf.mxu0
    %247 = vdwg.mxu0
    %248 = vmatpush.bf16.msra.mxu0 %v173
    %249 = vmatpush.bf16.msra.mxu0 %v171
    %250 = vmatpush.bf16.msra.mxu0 %v169
    %251 = vmatpush.bf16.msra.mxu0 %v167
    %252 = vmatpush.bf16.msra.mxu0 %v165
    %253 = vmatpush.bf16.msra.mxu0 %v163
    %254 = vmatpush.bf16.msra.mxu0 %v161
    %255 = vmatpush.bf16.msra.mxu0 %v159
    %256 = vmatmul.bf16.gmra.mxu0 %v28
    %v257 = vpop.f32.mrf.mxu0
    %v258 = vadd.f32 0.0, %v257
    %v259 = vpop.f32.mrf.mxu0
    %260 = vdwg.mxu0
    %261 = vmatpush.bf16.msra.mxu0 %v189
    %262 = vmatpush.bf16.msra.mxu0 %v187
    %263 = vmatpush.bf16.msra.mxu0 %v185
    %264 = vmatpush.bf16.msra.mxu0 %v183
    %265 = vmatpush.bf16.msra.mxu0 %v181
    %266 = vmatpush.bf16.msra.mxu0 %v179
    %267 = vmatpush.bf16.msra.mxu0 %v177
    %268 = vmatpush.bf16.msra.mxu0 %v175
    %269 = vmatmul.bf16.gmra.mxu0 %v29
    %v270 = vpop.f32.mrf.mxu0
    %v271 = vadd.f32 %v258, %v270
    %v272 = vpop.f32.mrf.mxu0
    %273 = vdwg.mxu0
    %v276 = vrot.slane %v271, 6
    %vm277 = vcmask 1041408
    %v278 = vsel %vm277, %v245, %v276
    %v280 = vadd.f32 %v20, %v278
    %281 = vst [vmem:[#allocation2] sm:$0xf] %v280
    // Predicated region
    $region18: #{transformer_block_forward.25} parent=1 // pred_check
      %p282 = pneg %p15
    $region19: #{transformer_block_forward.25} parent=1 // pred_check_branch
      %284 = sbr.rel (%p282) target = $region21
    $region20: #{transformer_block_forward.25} parent=1 // pred_region
      %v285 = vld [vmem:[#allocation2] sm:$0xf]
      %v286 = vld [vmem:[%s2] sm:$0x3]
      %v288 = vperm.slane %v286, 0
      %v289 = vperm.slane %v286, 1
      %v290 = vrot.slane %v289, 6
      %v291 = vsel %vm277, %v288, %v290
      %v293 = vadd.f32 %v285, %v291
      %v294 = vtanh.pop %v293
      %295 = vst [vmem:[#allocation3] sm:$0xf] %v294
    $region21: #{transformer_block_forward.25} parent=1 // pred_fallthru
      _
    // Predicated region
    $region22: #{transformer_block_forward.25} parent=1 // pred_check
      _
    $region23: #{transformer_block_forward.25} parent=1 // pred_check_branch
      %297 = sbr.rel (0) target = $region25
    $region24: #{transformer_block_forward.25} parent=1 // pred_region
      %299 = vsyncadd [#allocation4], 0
      %s301 = sshll.u32 [#allocation3], 4
      %s302 = int_to_ptr.vmem [resolvable:$true] %s301
      %s303 = sshll.u32 %s3, 4
      %s304 = int_to_ptr.hbm [resolvable:$true] %s303
      %306 = dma.vmem_to_hbm [thread:$0]  %s302, 64, %s304, [#allocation4]
    $region25: #{transformer_block_forward.25} parent=1 // pred_fallthru
      _
    // Predicated region
    $region26: #{transformer_block_forward.25} parent=1 // pred_check
      _
    $region27: #{transformer_block_forward.25} parent=1 // pred_check_branch
      %308 = sbr.rel (0) target = $region29
    $region28: #{transformer_block_forward.25} parent=1 // pred_region
      %310 = dma.done [#allocation4], 64
    $region29: #{transformer_block_forward.25} parent=1 // pred_fallthru
      _
    %311 = vsyncpa [#allocation4], 1

</llo_original>
